<compile_context>
chip_gen: v6e
topology: v6e:2x2x1
jax: 0.10.0
libtpu: 0.0.40
codegen_flags: <defaults>
</compile_context>

<pallas_src>
from math import ceil

import jax
import jax.numpy as jnp
from jax.experimental import pallas as pl
from jax.experimental.pallas import tpu as pltpu

_LANE = 128        # lane width used for the packed weight slab / output row
_NEG = -1e30       # ~-inf bias for padded (non-existent) classes


# ----------------------------- fused kernel ----------------------------------

def _make_diffpool_kernel(meta, level_names):
    """meta: name -> (row_offset, (rows, cols)) into the packed weight slab.
    level_names: [(embed_prefix, pool_prefix_or_None), ...] per level."""

    def kernel(x_ref, adj_ref, w_ref, out_ref):
        def get(name):
            off, (r, c) = meta[name]
            return w_ref[off:off + r, :c]          # static slice of the slab

        def sage(h_bf, adj_norm_bf, prefix, idx):
            # legacy DenseSAGEConv: mean aggregation (self loop + 1/deg already
            # folded into adj_norm_bf), then Linear.
            agg = jnp.dot(adj_norm_bf, h_bf, preferred_element_type=jnp.float32)
            return (jnp.dot(agg, get(f"{prefix}/w{idx}"),
                            preferred_element_type=jnp.float32)
                    + get(f"{prefix}/b{idx}"))

        def block(x_bf, adj_norm_bf, prefix):
            h1 = jnp.maximum(sage(x_bf, adj_norm_bf, prefix, 1), 0.0)
            h2 = jnp.maximum(sage(h1.astype(jnp.bfloat16), adj_norm_bf, prefix, 2), 0.0)
            # Linear(cat([h1, h2], -1)) == h1 @ Wl[:H] + h2 @ Wl[H:] + b
            return (jnp.dot(h1, get(f"{prefix}/wla"), preferred_element_type=jnp.float32)
                    + jnp.dot(h2, get(f"{prefix}/wlb"), preferred_element_type=jnp.float32)
                    + get(f"{prefix}/bl"))

        x = x_ref[0]          # [n, Fin] f32
        adj = adj_ref[0]      # [n, n]   f32 (original adj, used for diff-pool)
        xmeans = []

        for embed_name, pool_name in level_names:
            n = adj.shape[0]
            row = jax.lax.broadcasted_iota(jnp.int32, (n, n), 0)
            col = jax.lax.broadcasted_iota(jnp.int32, (n, n), 1)
            adj_loop = jnp.where(row == col, 1.0, adj)           # forced self loops
            deg = jnp.maximum(jnp.sum(adj_loop, axis=-1, keepdims=True), 1.0)
            # fold 1/deg into the adjacency once; single bf16 cast reused below
            adj_norm_bf = (adj_loop * pl.reciprocal(deg, approx=True)).astype(jnp.bfloat16)
            x_bf = x.astype(jnp.bfloat16)

            x_emb = jnp.maximum(block(x_bf, adj_norm_bf, embed_name), 0.0)   # [n, H]
            xmeans.append(jnp.mean(x_emb, axis=0, keepdims=True))            # [1, H]

            if pool_name is not None:
                # (the last level's pool Block / dense_diff_pool never reach the
                #  module output in the reference forward -> skipped there)
                s = block(x_bf, adj_norm_bf, pool_name)                       # [n, C]
                s = s - jnp.max(s, axis=-1, keepdims=True)
                es = jnp.exp(s)
                s_soft = es * pl.reciprocal(jnp.sum(es, axis=-1, keepdims=True),
                                            approx=True)                     # [n, C]
                st_bf = s_soft.T.astype(jnp.bfloat16)     # transposed ONCE, reused
                s_bf = s_soft.astype(jnp.bfloat16)
                x = jnp.dot(st_bf, x_emb.astype(jnp.bfloat16),
                            preferred_element_type=jnp.float32)               # [C, H]
                sa = jnp.dot(st_bf, adj.astype(jnp.bfloat16),
                             preferred_element_type=jnp.float32)              # [C, n]
                adj = jnp.dot(sa.astype(jnp.bfloat16), s_bf,
                              preferred_element_type=jnp.float32)             # [C, C]

        # ---- MLP head: log_softmax(lin2(relu(lin1(cat(xmeans))))) ----
        # cat(xmeans) @ W1 rewritten as sum_l xmean_l @ W1[l*H:(l+1)*H]
        h = get("lin1/b")                                                     # [1, H]
        for l, xm in enumerate(xmeans):
            h = h + jnp.dot(xm, get(f"lin1/w{l}"), preferred_element_type=jnp.float32)
        h = jnp.maximum(h, 0.0)
        # TODO(synk): dropout(p=0.5) is identity in eval mode; training-mode RNG
        # dropout is not implemented.
        logits = (jnp.dot(h, get("lin2/w"), preferred_element_type=jnp.float32)
                  + get("lin2/b"))                                            # [1, 128]
        m = jnp.max(logits, axis=-1, keepdims=True)
        z = logits - m
        out_ref[0] = z - jnp.log(jnp.sum(jnp.exp(z), axis=-1, keepdims=True))

    return kernel


# ----------------------------- weight packing ---------------------------------

def _pack_params(params):
    """Flatten every weight/bias into one f32 [rows, 128] slab (8-aligned rows)."""
    embeds = [params["embed_block1"]] + list(params["embed_blocks"])
    pools = [params["pool_block1"]] + list(params["pool_blocks"])
    L = len(embeds)
    H = params["embed_block1"][2].shape[1]            # hidden width
    num_classes = params["lin2"][0].shape[1]

    entries, level_names = [], []

    def add_block(prefix, blk):
        for name, t in zip(("w1", "b1", "w2", "b2", "wla", "wlb", "bl"), blk):
            entries.append((f"{prefix}/{name}", t))

    for l in range(L):
        e_name, p_name = f"embed{l}", f"pool{l}"
        add_block(e_name, embeds[l])
        if l < L - 1:
            add_block(p_name, pools[l])
            level_names.append((e_name, p_name))
        else:
            level_names.append((e_name, None))        # dead pool block skipped

    w1, b1 = params["lin1"]
    for l in range(L):
        entries.append((f"lin1/w{l}", w1[l * H:(l + 1) * H]))
    entries.append(("lin1/b", b1))

    # lin2 pre-padded to 128 lanes so the final logits/output row is lane dense.
    w2, b2 = params["lin2"]
    w2p = jnp.pad(w2.astype(jnp.float32), ((0, 0), (0, _LANE - num_classes)))
    b2p = jnp.full((1, _LANE), _NEG, jnp.float32)
    b2p = b2p.at[:, :num_classes].set(jnp.reshape(b2, (1, num_classes)).astype(jnp.float32))
    entries.append(("lin2/w", w2p))
    entries.append(("lin2/b", b2p))

    parts, meta, off = [], {}, 0
    for name, a in entries:
        a = jnp.asarray(a, jnp.float32)
        if a.ndim == 1:
            a = a[None, :]
        r, c = a.shape
        a = jnp.pad(a, ((0, (-r) % 8), (0, _LANE - c)))     # 8-aligned rows, 128 lanes
        meta[name] = (off, (r, c))
        parts.append(a)
        off += a.shape[0]
    slab = jnp.concatenate(parts, axis=0)

    clusters = [pools[l][2].shape[1] for l in range(L - 1)]
    return slab, meta, level_names, clusters, H, num_classes


def _estimate_cost(B, N, Fin, H, clusters, slab_size):
    flops, trans = 0, 0
    n, fin = N, Fin
    L = len(clusters) + 1
    for l in range(L):
        flops += 2 * n * n * fin + 2 * n * fin * H           # embed conv1
        flops += 2 * n * n * H + 2 * n * H * H                # embed conv2
        flops += 4 * n * H * H                                # embed lin
        if l < L - 1:
            C = clusters[l]
            flops += 2 * n * n * fin + 2 * n * fin * H        # pool conv1
            flops += 2 * n * n * H + 2 * n * H * C            # pool conv2
            flops += 2 * n * H * C + 2 * n * C * C            # pool lin
            flops += 2 * C * n * H + 2 * C * n * n + 2 * C * n * C  # diff-pool
            trans += n * C + n
            n, fin = C, H
    flops += 2 * L * H * H + 2 * H * _LANE                    # head
    trans += _LANE
    bytes_accessed = 4 * (B * (N * Fin + N * N + _LANE) + slab_size)
    return pl.CostEstimate(flops=int(B * flops), transcendentals=int(B * trans),
                           bytes_accessed=int(bytes_accessed))


# ----------------------------- forward wrapper --------------------------------

def diffpool_forward(x, adj, params):
    B, N, Fin = x.shape
    slab, meta, level_names, clusters, H, num_classes = _pack_params(params)
    kernel = _make_diffpool_kernel(meta, level_names)

    out = pl.pallas_call(
        kernel,
        grid=(B,),
        in_specs=[
            pl.BlockSpec((1, N, Fin), lambda b: (b, 0, 0)),
            pl.BlockSpec((1, N, N), lambda b: (b, 0, 0)),
            pl.BlockSpec(slab.shape, lambda b: (0, 0)),   # weight slab: one DMA, resident
        ],
        out_specs=pl.BlockSpec((1, 1, _LANE), lambda b: (b, 0, 0)),
        out_shape=jax.ShapeDtypeStruct((B, 1, _LANE), jnp.float32),
        compiler_params=pltpu.CompilerParams(
            dimension_semantics=("parallel",),
            vmem_limit_bytes=32 * 1024 * 1024),
        cost_estimate=_estimate_cost(B, N, Fin, H, clusters, int(slab.size)),
    )(x, adj, slab)
    return out[:, 0, :num_classes]


# ----------------------------- parameter init --------------------------------

def _init_linear(key, fan_in, fan_out):
    kw, kb = jax.random.split(key)
    bound = 1.0 / (fan_in ** 0.5)
    w = jax.random.uniform(kw, (fan_in, fan_out), jnp.float32, -bound, bound)
    b = jax.random.uniform(kb, (1, fan_out), jnp.float32, -bound, bound)
    return w, b


def _init_block(key, in_ch, hid_ch, out_ch):
    k1, k2, k3 = jax.random.split(key, 3)
    w1, b1 = _init_linear(k1, in_ch, hid_ch)            # DenseSAGEConv(in, hid)
    w2, b2 = _init_linear(k2, hid_ch, out_ch)           # DenseSAGEConv(hid, out)
    wl, bl = _init_linear(k3, hid_ch + out_ch, out_ch)  # Linear(hid+out, out)
    # pre-split the concat-linear so the kernel never concatenates
    return (w1, b1, w2, b2, wl[:hid_ch], wl[hid_ch:], bl)


def init_diffpool_params(key, num_layers, hidden,
                         in_channels=4, num_nodes=90, num_classes=2):
    keys = jax.random.split(key, 2 * max(num_layers, 2) + 4)
    ki = iter(keys)
    params = {
        "embed_block1": _init_block(next(ki), in_channels, hidden, hidden),
        "pool_block1": _init_block(next(ki), in_channels, hidden, num_nodes),
        "embed_blocks": [],
        "pool_blocks": [],
    }
    nodes = num_nodes
    for _ in range(num_layers // 2 - 1):
        nodes = ceil(0.25 * nodes)
        params["embed_blocks"].append(_init_block(next(ki), hidden, hidden, hidden))
        params["pool_blocks"].append(_init_block(next(ki), hidden, hidden, nodes))
    n_levels = len(params["embed_blocks"]) + 1
    params["lin1"] = _init_linear(next(ki), n_levels * hidden, hidden)
    params["lin2"] = _init_linear(next(ki), hidden, num_classes)
    return params


if __name__ == "__main__":
    NUM_LAYERS = 4     # -> one hierarchical pooling level after the first
    HIDDEN = 32
    NUM_NODES = 90     # fixed by the DiffPool module
    IN_CHANNELS = 4
    NUM_CLASSES = 2
    B = 2

    key = jax.random.PRNGKey(0)
    kx, ka, kp = jax.random.split(key, 3)

    x = jax.random.normal(kx, (B, NUM_NODES, IN_CHANNELS), jnp.float32)

    # deterministic random symmetric 0/1 dense adjacency (no self loops;
    # the SAGE convs force the diagonal to 1 themselves)
    a = (jax.random.uniform(ka, (B, NUM_NODES, NUM_NODES)) < 0.1).astype(jnp.float32)
    adj = jnp.maximum(a, jnp.swapaxes(a, 1, 2))
    adj = adj * (1.0 - jnp.eye(NUM_NODES, dtype=jnp.float32))

    params = init_diffpool_params(kp, NUM_LAYERS, HIDDEN,
                                  IN_CHANNELS, NUM_NODES, NUM_CLASSES)

    fwd = jax.jit(diffpool_forward)
    out = fwd(x, adj, params)
    jax.block_until_ready(out)

    assert out.shape == (B, NUM_CLASSES), out.shape
    assert bool(jnp.all(jnp.isfinite(out)))
    row_sums = jnp.sum(jnp.exp(out), axis=-1)          # log_softmax rows
    assert bool(jnp.all(jnp.abs(row_sums - 1.0) < 1e-3)), row_sums

    print("KERNEL_OK")
</pallas_src>

<mosaic_0001>
module attributes {stable_mosaic.version = 11 : i64} {
  func.func @kernel(%arg0: i32, %arg1: memref<1x90x4xf32, #tpu.memory_space<vmem>>, %arg2: memref<1x90x90xf32, #tpu.memory_space<vmem>>, %arg3: memref<584x128xf32, #tpu.memory_space<vmem>>, %arg4: memref<1x1x128xf32, #tpu.memory_space<vmem>>) attributes {dimension_semantics = [#tpu.dimension_semantics<parallel>], iteration_bounds = array<i64: 2>, scalar_prefetch = 0 : i64, scratch_operands = 0 : i64, tpu.core_type = #tpu.core_type<tc>, window_params = [{transform_indices = @transform_0, window_bounds = array<i64: 1, 90, 4>}, {transform_indices = @transform_1, window_bounds = array<i64: 1, 90, 90>}, {pipeline_mode = #tpu.pipeline_mode<synchronous>, transform_indices = @transform_2, window_bounds = array<i64: 584, 128>}, {transform_indices = @transform_3, window_bounds = array<i64: 1, 1, 128>}]} {
    %c0 = arith.constant 0 : index
    %c0_0 = arith.constant 0 : index
    %c0_1 = arith.constant 0 : index
    %0 = vector.load %arg1[%c0, %c0_0, %c0_1] : memref<1x90x4xf32, #tpu.memory_space<vmem>>, vector<1x90x4xf32>
    %1 = vector.shape_cast %0 : vector<1x90x4xf32> to vector<90x4xf32>
    %c0_2 = arith.constant 0 : index
    %c0_3 = arith.constant 0 : index
    %c0_4 = arith.constant 0 : index
    %2 = vector.load %arg2[%c0_2, %c0_3, %c0_4] : memref<1x90x90xf32, #tpu.memory_space<vmem>>, vector<1x90x90xf32>
    %3 = vector.shape_cast %2 : vector<1x90x90xf32> to vector<90x90xf32>
    %4 = tpu.iota {dimensions = array<i32: 0>} : vector<90x90xi32>
    %5 = tpu.iota {dimensions = array<i32: 1>} : vector<90x90xi32>
    %6 = arith.cmpi eq, %4, %5 : vector<90x90xi32>
    %cst = arith.constant 1.000000e+00 : f32
    %7 = vector.broadcast %cst : f32 to vector<90x90xf32>
    %8 = arith.select %6, %7, %3 : vector<90x90xi1>, vector<90x90xf32>
    %cst_5 = arith.constant dense<0.000000e+00> : vector<90xf32>
    %9 = vector.multi_reduction <add>, %8, %cst_5 [1] : vector<90x90xf32> to vector<90xf32>
    %10 = vector.shape_cast %9 : vector<90xf32> to vector<90x1xf32>
    %cst_6 = arith.constant 1.000000e+00 : f32
    %11 = vector.broadcast %cst_6 : f32 to vector<90x1xf32>
    %12 = arith.maximumf %10, %11 : vector<90x1xf32>
    %13 = tpu.reciprocal %12 {approx = true} : vector<90x1xf32> -> vector<90x1xf32>
    %14 = vector.broadcast %13 : vector<90x1xf32> to vector<90x90xf32>
    %15 = arith.mulf %8, %14 : vector<90x90xf32>
    %16 = arith.truncf %15 : vector<90x90xf32> to vector<90x90xbf16>
    %17 = arith.truncf %1 : vector<90x4xf32> to vector<90x4xbf16>
    %cst_7 = arith.constant dense<0.000000e+00> : vector<90x4xf32>
    %18 = tpu.matmul %16, %17, %cst_7 {dimension_numbers = #tpu.dot_dimension_numbers<[1], [0], [0], [1], [0, 0, 1, 1], [], []>} : vector<90x90xbf16>, vector<90x4xbf16>, vector<90x4xf32> -> vector<90x4xf32>
    %c0_8 = arith.constant 0 : index
    %c0_9 = arith.constant 0 : index
    %19 = vector.load %arg3[%c0_8, %c0_9] : memref<584x128xf32, #tpu.memory_space<vmem>>, vector<4x32xf32>
    %cst_10 = arith.constant dense<0.000000e+00> : vector<90x32xf32>
    %20 = tpu.matmul %18, %19, %cst_10 {dimension_numbers = #tpu.dot_dimension_numbers<[1], [0], [0], [1], [0, 0, 1, 1], [], []>} : vector<90x4xf32>, vector<4x32xf32>, vector<90x32xf32> -> vector<90x32xf32>
    %c8 = arith.constant 8 : index
    %c0_11 = arith.constant 0 : index
    %21 = vector.load %arg3[%c8, %c0_11] : memref<584x128xf32, #tpu.memory_space<vmem>>, vector<1x32xf32>
    %22 = vector.broadcast %21 : vector<1x32xf32> to vector<90x32xf32>
    %23 = arith.addf %20, %22 : vector<90x32xf32>
    %cst_12 = arith.constant 0.000000e+00 : f32
    %24 = vector.broadcast %cst_12 : f32 to vector<90x32xf32>
    %25 = arith.maximumf %23, %24 : vector<90x32xf32>
    %26 = arith.truncf %25 : vector<90x32xf32> to vector<90x32xbf16>
    %cst_13 = arith.constant dense<0.000000e+00> : vector<90x32xf32>
    %27 = tpu.matmul %16, %26, %cst_13 {dimension_numbers = #tpu.dot_dimension_numbers<[1], [0], [0], [1], [0, 0, 1, 1], [], []>} : vector<90x90xbf16>, vector<90x32xbf16>, vector<90x32xf32> -> vector<90x32xf32>
    %c16 = arith.constant 16 : index
    %c0_14 = arith.constant 0 : index
    %28 = vector.load %arg3[%c16, %c0_14] : memref<584x128xf32, #tpu.memory_space<vmem>>, vector<32x32xf32>
    %cst_15 = arith.constant dense<0.000000e+00> : vector<90x32xf32>
    %29 = tpu.matmul %27, %28, %cst_15 {dimension_numbers = #tpu.dot_dimension_numbers<[1], [0], [0], [1], [0, 0, 1, 1], [], []>} : vector<90x32xf32>, vector<32x32xf32>, vector<90x32xf32> -> vector<90x32xf32>
    %c48 = arith.constant 48 : index
    %c0_16 = arith.constant 0 : index
    %30 = vector.load %arg3[%c48, %c0_16] : memref<584x128xf32, #tpu.memory_space<vmem>>, vector<1x32xf32>
    %31 = vector.broadcast %30 : vector<1x32xf32> to vector<90x32xf32>
    %32 = arith.addf %29, %31 : vector<90x32xf32>
    %cst_17 = arith.constant 0.000000e+00 : f32
    %33 = vector.broadcast %cst_17 : f32 to vector<90x32xf32>
    %34 = arith.maximumf %32, %33 : vector<90x32xf32>
    %c56 = arith.constant 56 : index
    %c0_18 = arith.constant 0 : index
    %35 = vector.load %arg3[%c56, %c0_18] : memref<584x128xf32, #tpu.memory_space<vmem>>, vector<32x32xf32>
    %cst_19 = arith.constant dense<0.000000e+00> : vector<90x32xf32>
    %36 = tpu.matmul %25, %35, %cst_19 {dimension_numbers = #tpu.dot_dimension_numbers<[1], [0], [0], [1], [0, 0, 1, 1], [], []>} : vector<90x32xf32>, vector<32x32xf32>, vector<90x32xf32> -> vector<90x32xf32>
    %c88 = arith.constant 88 : index
    %c0_20 = arith.constant 0 : index
    %37 = vector.load %arg3[%c88, %c0_20] : memref<584x128xf32, #tpu.memory_space<vmem>>, vector<32x32xf32>
    %cst_21 = arith.constant dense<0.000000e+00> : vector<90x32xf32>
    %38 = tpu.matmul %34, %37, %cst_21 {dimension_numbers = #tpu.dot_dimension_numbers<[1], [0], [0], [1], [0, 0, 1, 1], [], []>} : vector<90x32xf32>, vector<32x32xf32>, vector<90x32xf32> -> vector<90x32xf32>
    %39 = arith.addf %36, %38 : vector<90x32xf32>
    %c120 = arith.constant 120 : index
    %c0_22 = arith.constant 0 : index
    %40 = vector.load %arg3[%c120, %c0_22] : memref<584x128xf32, #tpu.memory_space<vmem>>, vector<1x32xf32>
    %41 = vector.broadcast %40 : vector<1x32xf32> to vector<90x32xf32>
    %42 = arith.addf %39, %41 : vector<90x32xf32>
    %cst_23 = arith.constant 0.000000e+00 : f32
    %43 = vector.broadcast %cst_23 : f32 to vector<90x32xf32>
    %44 = arith.maximumf %42, %43 : vector<90x32xf32>
    %cst_24 = arith.constant dense<0.000000e+00> : vector<32xf32>
    %45 = vector.multi_reduction <add>, %44, %cst_24 [0] : vector<90x32xf32> to vector<32xf32>
    %46 = vector.shape_cast %45 : vector<32xf32> to vector<1x32xf32>
    %cst_25 = arith.constant 9.000000e+01 : f32
    %47 = vector.broadcast %cst_25 : f32 to vector<1x32xf32>
    %48 = arith.divf %46, %47 : vector<1x32xf32>
    %cst_26 = arith.constant dense<0.000000e+00> : vector<90x4xf32>
    %49 = tpu.matmul %16, %17, %cst_26 {dimension_numbers = #tpu.dot_dimension_numbers<[1], [0], [0], [1], [0, 0, 1, 1], [], []>} : vector<90x90xbf16>, vector<90x4xbf16>, vector<90x4xf32> -> vector<90x4xf32>
    %c128 = arith.constant 128 : index
    %c0_27 = arith.constant 0 : index
    %50 = vector.load %arg3[%c128, %c0_27] : memref<584x128xf32, #tpu.memory_space<vmem>>, vector<4x32xf32>
    %cst_28 = arith.constant dense<0.000000e+00> : vector<90x32xf32>
    %51 = tpu.matmul %49, %50, %cst_28 {dimension_numbers = #tpu.dot_dimension_numbers<[1], [0], [0], [1], [0, 0, 1, 1], [], []>} : vector<90x4xf32>, vector<4x32xf32>, vector<90x32xf32> -> vector<90x32xf32>
    %c136 = arith.constant 136 : index
    %c0_29 = arith.constant 0 : index
    %52 = vector.load %arg3[%c136, %c0_29] : memref<584x128xf32, #tpu.memory_space<vmem>>, vector<1x32xf32>
    %53 = vector.broadcast %52 : vector<1x32xf32> to vector<90x32xf32>
    %54 = arith.addf %51, %53 : vector<90x32xf32>
    %cst_30 = arith.constant 0.000000e+00 : f32
    %55 = vector.broadcast %cst_30 : f32 to vector<90x32xf32>
    %56 = arith.maximumf %54, %55 : vector<90x32xf32>
    %57 = arith.truncf %56 : vector<90x32xf32> to vector<90x32xbf16>
    %cst_31 = arith.constant dense<0.000000e+00> : vector<90x32xf32>
    %58 = tpu.matmul %16, %57, %cst_31 {dimension_numbers = #tpu.dot_dimension_numbers<[1], [0], [0], [1], [0, 0, 1, 1], [], []>} : vector<90x90xbf16>, vector<90x32xbf16>, vector<90x32xf32> -> vector<90x32xf32>
    %c144 = arith.constant 144 : index
    %c0_32 = arith.constant 0 : index
    %59 = vector.load %arg3[%c144, %c0_32] : memref<584x128xf32, #tpu.memory_space<vmem>>, vector<32x90xf32>
    %cst_33 = arith.constant dense<0.000000e+00> : vector<90x90xf32>
    %60 = tpu.matmul %58, %59, %cst_33 {dimension_numbers = #tpu.dot_dimension_numbers<[1], [0], [0], [1], [0, 0, 1, 1], [], []>} : vector<90x32xf32>, vector<32x90xf32>, vector<90x90xf32> -> vector<90x90xf32>
    %c176 = arith.constant 176 : index
    %c0_34 = arith.constant 0 : index
    %61 = vector.load %arg3[%c176, %c0_34] : memref<584x128xf32, #tpu.memory_space<vmem>>, vector<1x90xf32>
    %62 = vector.broadcast %61 : vector<1x90xf32> to vector<90x90xf32>
    %63 = arith.addf %60, %62 : vector<90x90xf32>
    %cst_35 = arith.constant 0.000000e+00 : f32
    %64 = vector.broadcast %cst_35 : f32 to vector<90x90xf32>
    %65 = arith.maximumf %63, %64 : vector<90x90xf32>
    %c184 = arith.constant 184 : index
    %c0_36 = arith.constant 0 : index
    %66 = vector.load %arg3[%c184, %c0_36] : memref<584x128xf32, #tpu.memory_space<vmem>>, vector<32x90xf32>
    %cst_37 = arith.constant dense<0.000000e+00> : vector<90x90xf32>
    %67 = tpu.matmul %56, %66, %cst_37 {dimension_numbers = #tpu.dot_dimension_numbers<[1], [0], [0], [1], [0, 0, 1, 1], [], []>} : vector<90x32xf32>, vector<32x90xf32>, vector<90x90xf32> -> vector<90x90xf32>
    %c216 = arith.constant 216 : index
    %c0_38 = arith.constant 0 : index
    %68 = vector.load %arg3[%c216, %c0_38] : memref<584x128xf32, #tpu.memory_space<vmem>>, vector<90x90xf32>
    %cst_39 = arith.constant dense<0.000000e+00> : vector<90x90xf32>
    %69 = tpu.matmul %65, %68, %cst_39 {dimension_numbers = #tpu.dot_dimension_numbers<[1], [0], [0], [1], [0, 0, 1, 1], [], []>} : vector<90x90xf32>, vector<90x90xf32>, vector<90x90xf32> -> vector<90x90xf32>
    %70 = arith.addf %67, %69 : vector<90x90xf32>
    %c312 = arith.constant 312 : index
    %c0_40 = arith.constant 0 : index
    %71 = vector.load %arg3[%c312, %c0_40] : memref<584x128xf32, #tpu.memory_space<vmem>>, vector<1x90xf32>
    %72 = vector.broadcast %71 : vector<1x90xf32> to vector<90x90xf32>
    %73 = arith.addf %70, %72 : vector<90x90xf32>
    %cst_41 = arith.constant dense<0xFF800000> : vector<90xf32>
    %74 = vector.multi_reduction <maximumf>, %73, %cst_41 [1] : vector<90x90xf32> to vector<90xf32>
    %75 = vector.shape_cast %74 : vector<90xf32> to vector<90x1xf32>
    %76 = vector.broadcast %75 : vector<90x1xf32> to vector<90x90xf32>
    %77 = arith.subf %73, %76 : vector<90x90xf32>
    %78 = math.exp %77 : vector<90x90xf32>
    %cst_42 = arith.constant dense<0.000000e+00> : vector<90xf32>
    %79 = vector.multi_reduction <add>, %78, %cst_42 [1] : vector<90x90xf32> to vector<90xf32>
    %80 = vector.shape_cast %79 : vector<90xf32> to vector<90x1xf32>
    %81 = tpu.reciprocal %80 {approx = true} : vector<90x1xf32> -> vector<90x1xf32>
    %82 = vector.broadcast %81 : vector<90x1xf32> to vector<90x90xf32>
    %83 = arith.mulf %78, %82 : vector<90x90xf32>
    %84 = tpu.transpose %83, [1, 0] : vector<90x90xf32> -> vector<90x90xf32>
    %85 = arith.truncf %84 : vector<90x90xf32> to vector<90x90xbf16>
    %86 = arith.truncf %83 : vector<90x90xf32> to vector<90x90xbf16>
    %87 = arith.truncf %44 : vector<90x32xf32> to vector<90x32xbf16>
    %cst_43 = arith.constant dense<0.000000e+00> : vector<90x32xf32>
    %88 = tpu.matmul %85, %87, %cst_43 {dimension_numbers = #tpu.dot_dimension_numbers<[1], [0], [0], [1], [0, 0, 1, 1], [], []>} : vector<90x90xbf16>, vector<90x32xbf16>, vector<90x32xf32> -> vector<90x32xf32>
    %89 = arith.truncf %3 : vector<90x90xf32> to vector<90x90xbf16>
    %cst_44 = arith.constant dense<0.000000e+00> : vector<90x90xf32>
    %90 = tpu.matmul %85, %89, %cst_44 {dimension_numbers = #tpu.dot_dimension_numbers<[1], [0], [0], [1], [0, 0, 1, 1], [], []>} : vector<90x90xbf16>, vector<90x90xbf16>, vector<90x90xf32> -> vector<90x90xf32>
    %91 = arith.truncf %90 : vector<90x90xf32> to vector<90x90xbf16>
    %cst_45 = arith.constant dense<0.000000e+00> : vector<90x90xf32>
    %92 = tpu.matmul %91, %86, %cst_45 {dimension_numbers = #tpu.dot_dimension_numbers<[1], [0], [0], [1], [0, 0, 1, 1], [], []>} : vector<90x90xbf16>, vector<90x90xbf16>, vector<90x90xf32> -> vector<90x90xf32>
    %93 = tpu.iota {dimensions = array<i32: 0>} : vector<90x90xi32>
    %94 = tpu.iota {dimensions = array<i32: 1>} : vector<90x90xi32>
    %95 = arith.cmpi eq, %93, %94 : vector<90x90xi32>
    %cst_46 = arith.constant 1.000000e+00 : f32
    %96 = vector.broadcast %cst_46 : f32 to vector<90x90xf32>
    %97 = arith.select %95, %96, %92 : vector<90x90xi1>, vector<90x90xf32>
    %cst_47 = arith.constant dense<0.000000e+00> : vector<90xf32>
    %98 = vector.multi_reduction <add>, %97, %cst_47 [1] : vector<90x90xf32> to vector<90xf32>
    %99 = vector.shape_cast %98 : vector<90xf32> to vector<90x1xf32>
    %cst_48 = arith.constant 1.000000e+00 : f32
    %100 = vector.broadcast %cst_48 : f32 to vector<90x1xf32>
    %101 = arith.maximumf %99, %100 : vector<90x1xf32>
    %102 = tpu.reciprocal %101 {approx = true} : vector<90x1xf32> -> vector<90x1xf32>
    %103 = vector.broadcast %102 : vector<90x1xf32> to vector<90x90xf32>
    %104 = arith.mulf %97, %103 : vector<90x90xf32>
    %105 = arith.truncf %104 : vector<90x90xf32> to vector<90x90xbf16>
    %106 = arith.truncf %88 : vector<90x32xf32> to vector<90x32xbf16>
    %cst_49 = arith.constant dense<0.000000e+00> : vector<90x32xf32>
    %107 = tpu.matmul %105, %106, %cst_49 {dimension_numbers = #tpu.dot_dimension_numbers<[1], [0], [0], [1], [0, 0, 1, 1], [], []>} : vector<90x90xbf16>, vector<90x32xbf16>, vector<90x32xf32> -> vector<90x32xf32>
    %c320 = arith.constant 320 : index
    %c0_50 = arith.constant 0 : index
    %108 = vector.load %arg3[%c320, %c0_50] : memref<584x128xf32, #tpu.memory_space<vmem>>, vector<32x32xf32>
    %cst_51 = arith.constant dense<0.000000e+00> : vector<90x32xf32>
    %109 = tpu.matmul %107, %108, %cst_51 {dimension_numbers = #tpu.dot_dimension_numbers<[1], [0], [0], [1], [0, 0, 1, 1], [], []>} : vector<90x32xf32>, vector<32x32xf32>, vector<90x32xf32> -> vector<90x32xf32>
    %c352 = arith.constant 352 : index
    %c0_52 = arith.constant 0 : index
    %110 = vector.load %arg3[%c352, %c0_52] : memref<584x128xf32, #tpu.memory_space<vmem>>, vector<1x32xf32>
    %111 = vector.broadcast %110 : vector<1x32xf32> to vector<90x32xf32>
    %112 = arith.addf %109, %111 : vector<90x32xf32>
    %cst_53 = arith.constant 0.000000e+00 : f32
    %113 = vector.broadcast %cst_53 : f32 to vector<90x32xf32>
    %114 = arith.maximumf %112, %113 : vector<90x32xf32>
    %115 = arith.truncf %114 : vector<90x32xf32> to vector<90x32xbf16>
    %cst_54 = arith.constant dense<0.000000e+00> : vector<90x32xf32>
    %116 = tpu.matmul %105, %115, %cst_54 {dimension_numbers = #tpu.dot_dimension_numbers<[1], [0], [0], [1], [0, 0, 1, 1], [], []>} : vector<90x90xbf16>, vector<90x32xbf16>, vector<90x32xf32> -> vector<90x32xf32>
    %c360 = arith.constant 360 : index
    %c0_55 = arith.constant 0 : index
    %117 = vector.load %arg3[%c360, %c0_55] : memref<584x128xf32, #tpu.memory_space<vmem>>, vector<32x32xf32>
    %cst_56 = arith.constant dense<0.000000e+00> : vector<90x32xf32>
    %118 = tpu.matmul %116, %117, %cst_56 {dimension_numbers = #tpu.dot_dimension_numbers<[1], [0], [0], [1], [0, 0, 1, 1], [], []>} : vector<90x32xf32>, vector<32x32xf32>, vector<90x32xf32> -> vector<90x32xf32>
    %c392 = arith.constant 392 : index
    %c0_57 = arith.constant 0 : index
    %119 = vector.load %arg3[%c392, %c0_57] : memref<584x128xf32, #tpu.memory_space<vmem>>, vector<1x32xf32>
    %120 = vector.broadcast %119 : vector<1x32xf32> to vector<90x32xf32>
    %121 = arith.addf %118, %120 : vector<90x32xf32>
    %cst_58 = arith.constant 0.000000e+00 : f32
    %122 = vector.broadcast %cst_58 : f32 to vector<90x32xf32>
    %123 = arith.maximumf %121, %122 : vector<90x32xf32>
    %c400 = arith.constant 400 : index
    %c0_59 = arith.constant 0 : index
    %124 = vector.load %arg3[%c400, %c0_59] : memref<584x128xf32, #tpu.memory_space<vmem>>, vector<32x32xf32>
    %cst_60 = arith.constant dense<0.000000e+00> : vector<90x32xf32>
    %125 = tpu.matmul %114, %124, %cst_60 {dimension_numbers = #tpu.dot_dimension_numbers<[1], [0], [0], [1], [0, 0, 1, 1], [], []>} : vector<90x32xf32>, vector<32x32xf32>, vector<90x32xf32> -> vector<90x32xf32>
    %c432 = arith.constant 432 : index
    %c0_61 = arith.constant 0 : index
    %126 = vector.load %arg3[%c432, %c0_61] : memref<584x128xf32, #tpu.memory_space<vmem>>, vector<32x32xf32>
    %cst_62 = arith.constant dense<0.000000e+00> : vector<90x32xf32>
    %127 = tpu.matmul %123, %126, %cst_62 {dimension_numbers = #tpu.dot_dimension_numbers<[1], [0], [0], [1], [0, 0, 1, 1], [], []>} : vector<90x32xf32>, vector<32x32xf32>, vector<90x32xf32> -> vector<90x32xf32>
    %128 = arith.addf %125, %127 : vector<90x32xf32>
    %c464 = arith.constant 464 : index
    %c0_63 = arith.constant 0 : index
    %129 = vector.load %arg3[%c464, %c0_63] : memref<584x128xf32, #tpu.memory_space<vmem>>, vector<1x32xf32>
    %130 = vector.broadcast %129 : vector<1x32xf32> to vector<90x32xf32>
    %131 = arith.addf %128, %130 : vector<90x32xf32>
    %cst_64 = arith.constant 0.000000e+00 : f32
    %132 = vector.broadcast %cst_64 : f32 to vector<90x32xf32>
    %133 = arith.maximumf %131, %132 : vector<90x32xf32>
    %cst_65 = arith.constant dense<0.000000e+00> : vector<32xf32>
    %134 = vector.multi_reduction <add>, %133, %cst_65 [0] : vector<90x32xf32> to vector<32xf32>
    %135 = vector.shape_cast %134 : vector<32xf32> to vector<1x32xf32>
    %cst_66 = arith.constant 9.000000e+01 : f32
    %136 = vector.broadcast %cst_66 : f32 to vector<1x32xf32>
    %137 = arith.divf %135, %136 : vector<1x32xf32>
    %c536 = arith.constant 536 : index
    %c0_67 = arith.constant 0 : index
    %138 = vector.load %arg3[%c536, %c0_67] : memref<584x128xf32, #tpu.memory_space<vmem>>, vector<1x32xf32>
    %c472 = arith.constant 472 : index
    %c0_68 = arith.constant 0 : index
    %139 = vector.load %arg3[%c472, %c0_68] : memref<584x128xf32, #tpu.memory_space<vmem>>, vector<32x32xf32>
    %cst_69 = arith.constant dense<0.000000e+00> : vector<1x32xf32>
    %140 = tpu.matmul %48, %139, %cst_69 {dimension_numbers = #tpu.dot_dimension_numbers<[1], [0], [0], [1], [0, 0, 1, 1], [], []>} : vector<1x32xf32>, vector<32x32xf32>, vector<1x32xf32> -> vector<1x32xf32>
    %141 = arith.addf %138, %140 : vector<1x32xf32>
    %c504 = arith.constant 504 : index
    %c0_70 = arith.constant 0 : index
    %142 = vector.load %arg3[%c504, %c0_70] : memref<584x128xf32, #tpu.memory_space<vmem>>, vector<32x32xf32>
    %cst_71 = arith.constant dense<0.000000e+00> : vector<1x32xf32>
    %143 = tpu.matmul %137, %142, %cst_71 {dimension_numbers = #tpu.dot_dimension_numbers<[1], [0], [0], [1], [0, 0, 1, 1], [], []>} : vector<1x32xf32>, vector<32x32xf32>, vector<1x32xf32> -> vector<1x32xf32>
    %144 = arith.addf %141, %143 : vector<1x32xf32>
    %cst_72 = arith.constant 0.000000e+00 : f32
    %145 = vector.broadcast %cst_72 : f32 to vector<1x32xf32>
    %146 = arith.maximumf %144, %145 : vector<1x32xf32>
    %c544 = arith.constant 544 : index
    %c0_73 = arith.constant 0 : index
    %147 = vector.load %arg3[%c544, %c0_73] : memref<584x128xf32, #tpu.memory_space<vmem>>, vector<32x128xf32>
    %cst_74 = arith.constant dense<0.000000e+00> : vector<1x128xf32>
    %148 = tpu.matmul %146, %147, %cst_74 {dimension_numbers = #tpu.dot_dimension_numbers<[1], [0], [0], [1], [0, 0, 1, 1], [], []>} : vector<1x32xf32>, vector<32x128xf32>, vector<1x128xf32> -> vector<1x128xf32>
    %c576 = arith.constant 576 : index
    %c0_75 = arith.constant 0 : index
    %149 = vector.load %arg3[%c576, %c0_75] : memref<584x128xf32, #tpu.memory_space<vmem>>, vector<1x128xf32>
    %150 = arith.addf %148, %149 : vector<1x128xf32>
    %cst_76 = arith.constant dense<0xFF800000> : vector<1xf32>
    %151 = vector.multi_reduction <maximumf>, %150, %cst_76 [1] : vector<1x128xf32> to vector<1xf32>
    %152 = vector.shape_cast %151 : vector<1xf32> to vector<1x1xf32>
    %153 = vector.broadcast %152 : vector<1x1xf32> to vector<1x128xf32>
    %154 = arith.subf %150, %153 : vector<1x128xf32>
    %155 = math.exp %154 : vector<1x128xf32>
    %cst_77 = arith.constant dense<0.000000e+00> : vector<1xf32>
    %156 = vector.multi_reduction <add>, %155, %cst_77 [1] : vector<1x128xf32> to vector<1xf32>
    %157 = vector.shape_cast %156 : vector<1xf32> to vector<1x1xf32>
    %158 = math.log %157 : vector<1x1xf32>
    %159 = vector.broadcast %158 : vector<1x1xf32> to vector<1x128xf32>
    %160 = arith.subf %154, %159 : vector<1x128xf32>
    %c0_78 = arith.constant 0 : index
    %c0_79 = arith.constant 0 : index
    %c0_80 = arith.constant 0 : index
    %161 = vector.load %arg4[%c0_78, %c0_79, %c0_80] : memref<1x1x128xf32, #tpu.memory_space<vmem>>, vector<1x1x128xf32>
    %162 = vector.shape_cast %161 : vector<1x1x128xf32> to vector<1x128xf32>
    %163 = vector.shape_cast %160 : vector<1x128xf32> to vector<1x1x128xf32>
    tpu.vector_store %arg4[%c0_78, %c0_79, %c0_80], %163 {strides = array<i32>} : memref<1x1x128xf32, #tpu.memory_space<vmem>>, vector<1x1x128xf32>,
    return
  }
  func.func @transform_0(%arg0: i32) -> (i32, i32, i32) {
    %c0_i32 = arith.constant 0 : i32
    %c0_i32_0 = arith.constant 0 : i32
    %c0_i32_1 = arith.constant 0 : i32
    return %arg0, %c0_i32, %c0_i32_0 : i32, i32, i32
  }
  func.func @transform_1(%arg0: i32) -> (i32, i32, i32) {
    %c0_i32 = arith.constant 0 : i32
    %c0_i32_0 = arith.constant 0 : i32
    %c0_i32_1 = arith.constant 0 : i32
    return %arg0, %c0_i32, %c0_i32_0 : i32, i32, i32
  }
  func.func @transform_2(%arg0: i32) -> (i32, i32) {
    %c0_i32 = arith.constant 0 : i32
    %c0_i32_0 = arith.constant 0 : i32
    %c0_i32_1 = arith.constant 0 : i32
    return %c0_i32, %c0_i32_0 : i32, i32
  }
  func.func @transform_3(%arg0: i32) -> (i32, i32, i32) {
    %c0_i32 = arith.constant 0 : i32
    %c0_i32_0 = arith.constant 0 : i32
    %c0_i32_1 = arith.constant 0 : i32
    return %arg0, %c0_i32, %c0_i32_0 : i32, i32, i32
  }
}

</mosaic_0001>

<llo_original>
// kernel: diffpool_forward.1
$region0: #{diffpool_forward.1}
  #allocation0 [shape = 'u32[]', space=smem, size = 0x4, offset = 0x4, fixed_abs, tag = 'smem constant byte address 0x4 - core index']
  #allocation1 [shape = 'u32[144,128]{1,0:T(1,128)}', space=vmem, size = 0x12000, scoped, tag = 'internal scratch']
  %s0 = inlined_call_operand.vmem [shape: f32[2,90,4], index: 0, kind: input, shape index: {}]
  %s1 = inlined_call_operand.vmem [shape: f32[2,90,90], index: 1, kind: input, shape index: {}]
  %s2 = inlined_call_operand.vmem [shape: f32[584,128], index: 2, kind: input, shape index: {}]
  %s3 = inlined_call_operand.hbm [shape: f32[2,1,128], index: 3, kind: output, shape index: {}]
  %s4 = sld [smem:[#allocation0]]
  $region45: #{diffpool_forward.1} parent=0
    _
  %s6 = ssub.s32 1, %s4
  %s7 = scalar_select 0, %s6, %s4
  $region1: #{diffpool_forward.1} parent=0
    #allocation2 [shape = 'u8[1024]{0}', space=vmem, size = 0x400, scoped, tag = 'output window, operand 0']
    #allocation3 [shape = 's32[2]{0}', space=sflag, size = 0x8, scoped, tag = 'scoped memory for diffpool_forward.1']
    %8 = vsyncpa [#allocation3], 0
    %s9 = scalar_lea.sflag [#allocation3], 1
    %10 = vsyncpa %s9, 0
    loop: start=0, step=1, limit=4
    $region2: #{diffpool_forward.1} parent=1 // loop_pre_header
      _
    $region3: #{diffpool_forward.1} parent=1 // loop_header
      %s12 = sphi 0, %s16
      %p13 = scmp.ge.s32.totalorder %s12, 4
      %s22 = sphi 0, %s24
      %s25 = sphi 0, %s22
      %s26 = sphi 0, %s25
      %s42 = sphi 0, %s26
      %s48 = sphi 0, %s50
      %s51 = sphi 0, %s48
      %s52 = sphi 0, %s51
      %s68 = sphi 0, %s52
      %s72 = sphi 0, %s72
      %s74 = sphi 0, %s72
      %s75 = sphi 0, %s74
      %s89 = sphi 0, %s75
      %s95 = sphi 0, %s97
      %s98 = sphi 0, %s95
      %s99 = sphi 0, %s98
      %s115 = sphi 0, %s99
    $region4: #{diffpool_forward.1} parent=1 // loop_header_branch
      %15 = sbr.rel (%p13) target = $region8
    $region5: #{diffpool_forward.1} parent=1 // loop_body
      %s17 = ssub.s32 %s12, 1
      %s18 = ssub.s32 %s12, 2
      %s19 = sadd.s32 %s12, 1
      %s20 = ssub.s32 %s12, %s19
      %p21 = scmp.eq.s32.totalorder %s20, 0
      %s23 = sadd.s32 %s22, 1
      %s24 = scalar_select %p21, %s22, %s23
      %p27 = pneg %p21
      %p28 = scmp.eq.s32.totalorder %s12, 1
      %p29 = por %p27, %p28
      %p30 = scmp.ne.s32.totalorder %s22, %s25
      %p31 = scmp.eq.s32.totalorder %s12, 0
      %p32 = por %p30, %p31
      %p33 = scmp.ne.s32.totalorder %s22, %s25
      %p34 = scmp.eq.s32.totalorder %s17, 1
      %p35 = por %p33, %p34
      %p36 = scmp.ne.s32.totalorder %s25, %s26
      %p37 = scmp.eq.s32.totalorder %s17, 0
      %p38 = por %p36, %p37
      %p39 = scmp.ne.s32.totalorder %s25, %s26
      %p40 = scmp.eq.s32.totalorder %s18, 1
      %p41 = por %p39, %p40
      %p43 = scmp.ne.s32.totalorder %s26, %s42
      %p44 = scmp.eq.s32.totalorder %s18, 0
      %p45 = por %p43, %p44
      %s46 = ssub.s32 %s12, %s19
      %p47 = scmp.eq.s32.totalorder %s46, 0
      %s49 = sadd.s32 %s48, 1
      %s50 = scalar_select %p47, %s48, %s49
      %p53 = pneg %p47
      %p54 = scmp.eq.s32.totalorder %s12, 1
      %p55 = por %p53, %p54
      %p56 = scmp.ne.s32.totalorder %s48, %s51
      %p57 = scmp.eq.s32.totalorder %s12, 0
      %p58 = por %p56, %p57
      %p59 = scmp.ne.s32.totalorder %s48, %s51
      %p60 = scmp.eq.s32.totalorder %s17, 1
      %p61 = por %p59, %p60
      %p62 = scmp.ne.s32.totalorder %s51, %s52
      %p63 = scmp.eq.s32.totalorder %s17, 0
      %p64 = por %p62, %p63
      %p65 = scmp.ne.s32.totalorder %s51, %s52
      %p66 = scmp.eq.s32.totalorder %s18, 1
      %p67 = por %p65, %p66
      %p69 = scmp.ne.s32.totalorder %s52, %s68
      %p70 = scmp.eq.s32.totalorder %s18, 0
      %p71 = por %p69, %p70
      %s73 = sadd.s32 %s72, 1
      %p76 = scmp.eq.s32.totalorder %s12, 1
      %p77 = scmp.ne.s32.totalorder %s72, %s74
      %p78 = scmp.eq.s32.totalorder %s12, 0
      %p79 = por %p77, %p78
      %p80 = scmp.ne.s32.totalorder %s72, %s74
      %p81 = scmp.eq.s32.totalorder %s17, 1
      %p82 = por %p80, %p81
      %p83 = scmp.ne.s32.totalorder %s74, %s75
      %p84 = scmp.eq.s32.totalorder %s17, 0
      %p85 = por %p83, %p84
      %p86 = scmp.ne.s32.totalorder %s74, %s75
      %p87 = scmp.eq.s32.totalorder %s18, 1
      %p88 = por %p86, %p87
      %p90 = scmp.ne.s32.totalorder %s75, %s89
      %p91 = scmp.eq.s32.totalorder %s18, 0
      %p92 = por %p90, %p91
      %s93 = ssub.s32 %s12, %s19
      %p94 = scmp.eq.s32.totalorder %s93, 0
      %s96 = sadd.s32 %s95, 1
      %s97 = scalar_select %p94, %s95, %s96
      %p100 = pneg %p94
      %p101 = scmp.eq.s32.totalorder %s12, 1
      %p102 = por %p100, %p101
      %p103 = scmp.ne.s32.totalorder %s95, %s98
      %p104 = scmp.eq.s32.totalorder %s12, 0
      %p105 = por %p103, %p104
      %p106 = scmp.ne.s32.totalorder %s95, %s98
      %p107 = scmp.eq.s32.totalorder %s17, 1
      %p108 = por %p106, %p107
      %p109 = scmp.ne.s32.totalorder %s98, %s99
      %p110 = scmp.eq.s32.totalorder %s17, 0
      %p111 = por %p109, %p110
      %p112 = scmp.ne.s32.totalorder %s98, %s99
      %p113 = scmp.eq.s32.totalorder %s18, 1
      %p114 = por %p112, %p113
      %p116 = scmp.ne.s32.totalorder %s99, %s115
      %p117 = scmp.eq.s32.totalorder %s18, 0
      %p118 = por %p116, %p117
      %p119 = scmp.le.s32.totalorder 1, %s12
      %p120 = scmp.lt.s32.totalorder %s12, 3
      %p121 = pnand %p119, %p120
      %p122 = pneg %p121
      // Predicated region
      $region9: #{diffpool_forward.1} parent=5 // pred_check
        _
      $region10: #{diffpool_forward.1} parent=5 // pred_check_branch
        %124 = sbr.rel (%p121) target = $region12
      $region11: #{diffpool_forward.1} parent=5 // pred_region
        %s125 = ssub.s32 %s12, 1
        // Predicated region
        $region13: #{diffpool_forward.1} parent=11 // pred_check
          %p126 = pneg %p85
        $region14: #{diffpool_forward.1} parent=11 // pred_check_branch
          %128 = sbr.rel (%p126) target = $region16
        $region15: #{diffpool_forward.1} parent=11 // pred_region
          _
        $region16: #{diffpool_forward.1} parent=11 // pred_fallthru
          _
      $region12: #{diffpool_forward.1} parent=5 // pred_fallthru
        _
      %p129 = scmp.lt.s32.totalorder %s12, 2
      // Predicated region
      $region17: #{diffpool_forward.1} parent=5 // pred_check
        %p130 = pneg %p129
      $region18: #{diffpool_forward.1} parent=5 // pred_check_branch
        %132 = sbr.rel (%p130) target = $region20
      $region19: #{diffpool_forward.1} parent=5 // pred_region
        // Predicated region
        $region21: #{diffpool_forward.1} parent=19 // pred_check
          %p133 = pneg %p32
        $region22: #{diffpool_forward.1} parent=19 // pred_check_branch
          %135 = sbr.rel (%p133) target = $region24
        $region23: #{diffpool_forward.1} parent=19 // pred_region
          %p136 = scmp.lt.s32.totalorder %s12, 1
          %s137 = scalar_select %p136, %s12, 1
          %s138 = smul.addr %s137, 12
          %s139 = smul.addr %s138, 8
          %s140 = scalar_lea.vmem %s0, %s139
        $region24: #{diffpool_forward.1} parent=19 // pred_fallthru
          _
        // Predicated region
        $region25: #{diffpool_forward.1} parent=19 // pred_check
          %p141 = pneg %p58
        $region26: #{diffpool_forward.1} parent=19 // pred_check_branch
          %143 = sbr.rel (%p141) target = $region28
        $region27: #{diffpool_forward.1} parent=19 // pred_region
          %p144 = scmp.lt.s32.totalorder %s12, 1
          %s145 = scalar_select %p144, %s12, 1
          %s146 = smul.addr %s145, 12
          %s147 = smul.addr %s146, 8
          %s148 = scalar_lea.vmem %s1, %s147
        $region28: #{diffpool_forward.1} parent=19 // pred_fallthru
          _
      $region20: #{diffpool_forward.1} parent=5 // pred_fallthru
        _
      %p149 = scmp.le.s32.totalorder 1, %s12
      %p150 = scmp.lt.s32.totalorder %s12, 3
      %p151 = pnand %p149, %p150
      %p152 = pneg %p151
      // Predicated region
      $region29: #{diffpool_forward.1} parent=5 // pred_check
        _
      $region30: #{diffpool_forward.1} parent=5 // pred_check_branch
        %154 = sbr.rel (%p151) target = $region32
      $region31: #{diffpool_forward.1} parent=5 // pred_region
        %s155 = ssub.s32 %s12, 1
        %p156 = scmp.lt.s32.totalorder %s17, 1
        %s157 = scalar_select %p156, %s17, 1
        %s158 = smul.addr %s157, 12
        %s159 = smul.addr %s158, 8
        %s160 = scalar_lea.vmem %s0, %s159
        %p161 = pneg %p38
        %p162 = pneg %p35
        %p163 = scmp.lt.s32.totalorder %s17, 1
        %s164 = scalar_select %p163, %s17, 1
        %s165 = smul.addr %s164, 12
        %s166 = smul.addr %s165, 8
        %s167 = scalar_lea.vmem %s1, %s166
        %p168 = pneg %p64
        %p169 = pneg %p61
        %p170 = pneg %p85
        %p171 = pneg %p82
        %p172 = pneg %p111
        %p173 = pneg %p108
        %s174 = sand.u32 %s98, 1
        %s175 = scalar_lea.sflag [#allocation3], %s174
        %s176 = sand.u32 %s98, 1
        %s177 = scalar_lea.vmem [#allocation2], %s176
        %p178 = scmp.lt.s32.totalorder %s17, 1
        %s179 = scalar_select %p178, %s17, 1
        %s180 = smul.addr %s179, 12
        %s181 = smul.addr %s180, 8
        %s182 = scalar_lea.vmem %s0, %s181
        %p183 = scmp.lt.s32.totalorder %s17, 1
        %s184 = scalar_select %p183, %s17, 1
        %s185 = smul.addr %s184, 12
        %s186 = smul.addr %s185, 8
        %s187 = scalar_lea.vmem %s1, %s186
        %v189 = vld [vmem:[%s182] sm:$0xff]
        %v190 = vld [vmem:[%s182 + $0x8] sm:$0xff]
        %v191 = vld [vmem:[%s182 + $0x10] sm:$0xff]
        %v192 = vld [vmem:[%s182 + $0x18] sm:$0xff]
        %v193 = vld [vmem:[%s182 + $0x20] sm:$0xff]
        %v194 = vld [vmem:[%s182 + $0x28] sm:$0xff]
        %v195 = vld [vmem:[%s182 + $0x30] sm:$0xff]
        %v196 = vld [vmem:[%s182 + $0x38] sm:$0xff]
        %v197 = vld [vmem:[%s182 + $0x40] sm:$0xff]
        %v198 = vld [vmem:[%s182 + $0x48] sm:$0xff]
        %v199 = vld [vmem:[%s182 + $0x50] sm:$0xff]
        %v200 = vld [vmem:[%s182 + $0x58] sm:$0x3]
        %v201 = vld [vmem:[%s187] sm:$0xff]
        %v202 = vld [vmem:[%s187 + $0x8] sm:$0xff]
        %v203 = vld [vmem:[%s187 + $0x10] sm:$0xff]
        %v204 = vld [vmem:[%s187 + $0x18] sm:$0xff]
        %v205 = vld [vmem:[%s187 + $0x20] sm:$0xff]
        %v206 = vld [vmem:[%s187 + $0x28] sm:$0xff]
        %v207 = vld [vmem:[%s187 + $0x30] sm:$0xff]
        %v208 = vld [vmem:[%s187 + $0x38] sm:$0xff]
        %v209 = vld [vmem:[%s187 + $0x40] sm:$0xff]
        %v210 = vld [vmem:[%s187 + $0x48] sm:$0xff]
        %v211 = vld [vmem:[%s187 + $0x50] sm:$0xff]
        %v212 = vld [vmem:[%s187 + $0x58] sm:$0x3]
        %v213 = vlaneseq
        %v214 = vshrl.u32 %v213, 7
        %v215 = vadd.s32 %v214, 8
        %v216 = vadd.s32 %v214, 16
        %v217 = vadd.s32 %v214, 24
        %v218 = vadd.s32 %v214, 32
        %v219 = vadd.s32 %v214, 40
        %v220 = vadd.s32 %v214, 48
        %v221 = vadd.s32 %v214, 56
        %v222 = vadd.s32 %v214, 64
        %v223 = vadd.s32 %v214, 72
        %v224 = vadd.s32 %v214, 80
        %v225 = vadd.s32 %v214, 88
        %v226 = vlaneseq
        %v227 = vand.u32 %v226, 127
        %vm228 = vcmp.eq.s32.totalorder %v214, %v227
        %vm229 = vcmp.eq.s32.totalorder %v215, %v227
        %vm230 = vcmp.eq.s32.totalorder %v216, %v227
        %vm231 = vcmp.eq.s32.totalorder %v217, %v227
        %vm232 = vcmp.eq.s32.totalorder %v218, %v227
        %vm233 = vcmp.eq.s32.totalorder %v219, %v227
        %vm234 = vcmp.eq.s32.totalorder %v220, %v227
        %vm235 = vcmp.eq.s32.totalorder %v221, %v227
        %vm236 = vcmp.eq.s32.totalorder %v222, %v227
        %vm237 = vcmp.eq.s32.totalorder %v223, %v227
        %vm238 = vcmp.eq.s32.totalorder %v224, %v227
        %vm239 = vcmp.eq.s32.totalorder %v225, %v227
        %v240 = vsel %vm228, 1.0, %v201
        %v241 = vsel %vm229, 1.0, %v202
        %v242 = vsel %vm230, 1.0, %v203
        %v243 = vsel %vm231, 1.0, %v204
        %v244 = vsel %vm232, 1.0, %v205
        %v245 = vsel %vm233, 1.0, %v206
        %v246 = vsel %vm234, 1.0, %v207
        %v247 = vsel %vm235, 1.0, %v208
        %v248 = vsel %vm236, 1.0, %v209
        %v249 = vsel %vm237, 1.0, %v210
        %v250 = vsel %vm238, 1.0, %v211
        %v251 = vsel %vm239, 1.0, %v212
        %vm252 = vcmask 736256
        %v253 = vsel %vm252, %v240, 0.0
        %254 = vadd.xlane.f32.xlu0 %v253
        %v255 = vpop.xlane.xlu0 %254
        %v256 = vsel %vm252, %v241, 0.0
        %257 = vadd.xlane.f32.xlu0 %v256
        %v258 = vpop.xlane.xlu0 %257
        %v259 = vsel %vm252, %v242, 0.0
        %260 = vadd.xlane.f32.xlu0 %v259
        %v261 = vpop.xlane.xlu0 %260
        %v262 = vsel %vm252, %v243, 0.0
        %263 = vadd.xlane.f32.xlu0 %v262
        %v264 = vpop.xlane.xlu0 %263
        %v265 = vsel %vm252, %v244, 0.0
        %266 = vadd.xlane.f32.xlu0 %v265
        %v267 = vpop.xlane.xlu0 %266
        %v268 = vsel %vm252, %v245, 0.0
        %269 = vadd.xlane.f32.xlu0 %v268
        %v270 = vpop.xlane.xlu0 %269
        %v271 = vsel %vm252, %v246, 0.0
        %272 = vadd.xlane.f32.xlu0 %v271
        %v273 = vpop.xlane.xlu0 %272
        %v274 = vsel %vm252, %v247, 0.0
        %275 = vadd.xlane.f32.xlu0 %v274
        %v276 = vpop.xlane.xlu0 %275
        %v277 = vsel %vm252, %v248, 0.0
        %278 = vadd.xlane.f32.xlu0 %v277
        %v279 = vpop.xlane.xlu0 %278
        %v280 = vsel %vm252, %v249, 0.0
        %281 = vadd.xlane.f32.xlu0 %v280
        %v282 = vpop.xlane.xlu0 %281
        %v283 = vsel %vm252, %v250, 0.0
        %284 = vadd.xlane.f32.xlu0 %v283
        %v285 = vpop.xlane.xlu0 %284
        %vm286 = vcmask 730112
        %v287 = vsel %vm286, %v251, 0.0
        %288 = vadd.xlane.f32.xlu0 %v287
        %v289 = vpop.xlane.xlu0 %288
        %v290 = vmax.f32 %v255, 1.0
        %v291 = vmax.f32 %v258, 1.0
        %v292 = vmax.f32 %v261, 1.0
        %v293 = vmax.f32 %v264, 1.0
        %v294 = vmax.f32 %v267, 1.0
        %v295 = vmax.f32 %v270, 1.0
        %v296 = vmax.f32 %v273, 1.0
        %v297 = vmax.f32 %v276, 1.0
        %v298 = vmax.f32 %v279, 1.0
        %v299 = vmax.f32 %v282, 1.0
        %v300 = vmax.f32 %v285, 1.0
        %v301 = vmax.f32 %v289, 1.0
        %v302 = vrcp.pop %v290
        %v303 = vrcp.pop %v291
        %v304 = vrcp.pop %v292
        %v305 = vrcp.pop %v293
        %v306 = vrcp.pop %v294
        %v307 = vrcp.pop %v295
        %v308 = vrcp.pop %v296
        %v309 = vrcp.pop %v297
        %v310 = vrcp.pop %v298
        %v311 = vrcp.pop %v299
        %v312 = vrcp.pop %v300
        %v313 = vrcp.pop %v301
        %v314 = vmul.f32 %v240, %v302
        %v315 = vmul.f32 %v241, %v303
        %v316 = vmul.f32 %v242, %v304
        %v317 = vmul.f32 %v243, %v305
        %v318 = vmul.f32 %v244, %v306
        %v319 = vmul.f32 %v245, %v307
        %v320 = vmul.f32 %v246, %v308
        %v321 = vmul.f32 %v247, %v309
        %v322 = vmul.f32 %v248, %v310
        %v323 = vmul.f32 %v249, %v311
        %v324 = vmul.f32 %v250, %v312
        %v325 = vmul.f32 %v251, %v313
        %v326 = vpack.c.bf16 %v315, %v314
        %v327 = vpack.c.bf16 %v317, %v316
        %v328 = vpack.c.bf16 %v319, %v318
        %v329 = vpack.c.bf16 %v321, %v320
        %v330 = vpack.c.bf16 %v323, %v322
        %v331 = vpack.c.bf16 %v325, %v324
        %v332 = vpack.c.bf16 %v190, %v189
        %v333 = vpack.c.bf16 %v192, %v191
        %v334 = vpack.c.bf16 %v194, %v193
        %v335 = vpack.c.bf16 %v196, %v195
        %v336 = vpack.c.bf16 %v198, %v197
        %v337 = vpack.c.bf16 %v200, %v199
        %v339 = vsel %vm252, %v326, 0
        %v342 = vsel %vm252, %v327, 0
        %v345 = vsel %vm252, %v328, 0
        %v348 = vsel %vm252, %v329, 0
        %v351 = vsel %vm252, %v330, 0
        %v354 = vsel %vm252, %v331, 0
        %vm356 = vcmask 1044480
        %v358 = vsel %vm356, %v337, 0
        %360 = vmatprep.subr.bf16.mxu0 0
        %361 = vmatpush1.bf16.msra.mxu0 0
        %362 = vmatprep.subr.bf16.mxu0 0
        %363 = vmatpush1.bf16.msra.mxu0 0
        %364 = vmatprep.subr.bf16.mxu0 0
        %365 = vmatpush1.bf16.msra.mxu0 %v358
        %366 = vmatprep.subr.bf16.mxu0 0
        %367 = vmatpush1.bf16.msra.mxu0 %v336
        %368 = vmatprep.subr.bf16.mxu0 0
        %369 = vmatpush1.bf16.msra.mxu0 %v335
        %370 = vmatprep.subr.bf16.mxu0 0
        %371 = vmatpush1.bf16.msra.mxu0 %v334
        %372 = vmatprep.subr.bf16.mxu0 0
        %373 = vmatpush1.bf16.msra.mxu0 %v333
        %374 = vmatprep.subr.bf16.mxu0 0
        %375 = vmatpush1.bf16.msra.mxu0 %v332
        %376 = vmatprep.subr.bf16.mxu0 0
        %377 = vmatpush2.bf16.msra.mxu0 0
        %378 = vmatprep.subr.bf16.mxu0 0
        %379 = vmatpush2.bf16.msra.mxu0 0
        %380 = vmatprep.subr.bf16.mxu0 0
        %381 = vmatpush2.bf16.msra.mxu0 0
        %382 = vmatprep.subr.bf16.mxu0 0
        %383 = vmatpush2.bf16.msra.mxu0 0
        %384 = vmatprep.subr.bf16.mxu0 0
        %385 = vmatpush2.bf16.msra.mxu0 0
        %386 = vmatprep.subr.bf16.mxu0 0
        %387 = vmatpush2.bf16.msra.mxu0 0
        %388 = vmatprep.subr.bf16.mxu0 0
        %389 = vmatpush2.bf16.msra.mxu0 0
        %390 = vmatprep.subr.bf16.mxu0 0
        %391 = vmatpush2.bf16.msra.mxu0 0
        %392 = vmatprep.mubr.bf16.mxu0 0
        %393 = vmatmul.mubr.bf16.gmra.mxu0 %v339
        %v394 = vpop.f32.mrf.mxu0
        %v395 = vadd.f32 0.0, %v394
        %v396 = vpop.f32.mrf.mxu0
        %v397 = vpop.f32.mrf.mxu0
        %v398 = vadd.f32 0.0, %v397
        %v399 = vpop.f32.mrf.mxu0
        %400 = vmatprep.mubr.bf16.mxu0 0
        %401 = vmatmul.mubr.bf16.gmra.mxu0 %v342
        %v402 = vpop.f32.mrf.mxu0
        %v403 = vadd.f32 0.0, %v402
        %v404 = vpop.f32.mrf.mxu0
        %v405 = vpop.f32.mrf.mxu0
        %v406 = vadd.f32 0.0, %v405
        %v407 = vpop.f32.mrf.mxu0
        %408 = vmatprep.mubr.bf16.mxu0 0
        %409 = vmatmul.mubr.bf16.gmra.mxu0 %v345
        %v410 = vpop.f32.mrf.mxu0
        %v411 = vadd.f32 0.0, %v410
        %v412 = vpop.f32.mrf.mxu0
        %v413 = vpop.f32.mrf.mxu0
        %v414 = vadd.f32 0.0, %v413
        %v415 = vpop.f32.mrf.mxu0
        %416 = vmatprep.mubr.bf16.mxu0 0
        %417 = vmatmul.mubr.bf16.gmra.mxu0 %v348
        %v418 = vpop.f32.mrf.mxu0
        %v419 = vadd.f32 0.0, %v418
        %v420 = vpop.f32.mrf.mxu0
        %v421 = vpop.f32.mrf.mxu0
        %v422 = vadd.f32 0.0, %v421
        %v423 = vpop.f32.mrf.mxu0
        %424 = vmatprep.mubr.bf16.mxu0 0
        %425 = vmatmul.mubr.bf16.gmra.mxu0 %v351
        %v426 = vpop.f32.mrf.mxu0
        %v427 = vadd.f32 0.0, %v426
        %v428 = vpop.f32.mrf.mxu0
        %v429 = vpop.f32.mrf.mxu0
        %v430 = vadd.f32 0.0, %v429
        %v431 = vpop.f32.mrf.mxu0
        %432 = vmatprep.mubr.bf16.mxu0 0
        %433 = vmatmul.mubr.bf16.gmra.mxu0 %v354
        %v434 = vpop.f32.mrf.mxu0
        %v435 = vadd.f32 0.0, %v434
        %v436 = vpop.f32.mrf.mxu0
        %v437 = vpop.f32.mrf.mxu0
        %v438 = vadd.f32 0.0, %v437
        %v439 = vpop.f32.mrf.mxu0
        %440 = vdwg.mxu0
        %v441 = vld [vmem:[%s2] sm:$0xf]
        %v442 = vld [vmem:[%s2 + $0x8] sm:$0x1]
        %v443 = vlaneseq
        %v444 = vshrl.u32 %v443, 7
        %v445 = vsub.s32 0, %v444
        %v446 = vrot.slane %v442, %v445
        %vm447 = vcmask 31744
        %v449 = vsel %vm447, %v395, 0
        %v452 = vsel %vm447, %v398, 0
        %v455 = vsel %vm447, %v403, 0
        %v458 = vsel %vm447, %v406, 0
        %v461 = vsel %vm447, %v411, 0
        %v464 = vsel %vm447, %v414, 0
        %v467 = vsel %vm447, %v419, 0
        %v470 = vsel %vm447, %v422, 0
        %v473 = vsel %vm447, %v427, 0
        %v476 = vsel %vm447, %v430, 0
        %v479 = vsel %vm447, %v435, 0
        %v482 = vsel %vm447, %v438, 0
        %vm484 = vcmask 1043456
        %v486 = vsel %vm484, %v441, 0
        %488 = vmatprep.subr.mxu0 0.0
        %489 = vmatpush1.msra.mxu0 0.0
        %490 = vmatprep.subr.mxu0 0.0
        %491 = vmatpush1.msra.mxu0 0.0
        %492 = vmatprep.subr.mxu0 0.0
        %493 = vmatpush1.msra.mxu0 0.0
        %494 = vmatprep.subr.mxu0 0.0
        %495 = vmatpush1.msra.mxu0 0.0
        %496 = vmatprep.subr.mxu0 0.0
        %497 = vmatpush1.msra.mxu0 0.0
        %498 = vmatprep.subr.mxu0 0.0
        %499 = vmatpush1.msra.mxu0 0.0
        %500 = vmatprep.subr.mxu0 0.0
        %501 = vmatpush1.msra.mxu0 0.0
        %502 = vmatprep.subr.mxu0 0.0
        %503 = vmatpush1.msra.mxu0 0.0
        %504 = vmatprep.subr.mxu0 0.0
        %505 = vmatpush1.msra.mxu0 0.0
        %506 = vmatprep.subr.mxu0 0.0
        %507 = vmatpush1.msra.mxu0 0.0
        %508 = vmatprep.subr.mxu0 0.0
        %509 = vmatpush1.msra.mxu0 0.0
        %510 = vmatprep.subr.mxu0 0.0
        %511 = vmatpush1.msra.mxu0 0.0
        %512 = vmatprep.subr.mxu0 0.0
        %513 = vmatpush1.msra.mxu0 0.0
        %514 = vmatprep.subr.mxu0 0.0
        %515 = vmatpush1.msra.mxu0 0.0
        %516 = vmatprep.subr.mxu0 0.0
        %517 = vmatpush1.msra.mxu0 0.0
        %518 = vmatprep.subr.mxu0 0.0
        %519 = vmatpush1.msra.mxu0 %v486
        %520 = vmatprep.subr.mxu0 0.0
        %521 = vmatpush2.msra.mxu0 0.0
        %522 = vmatprep.subr.mxu0 0.0
        %523 = vmatpush2.msra.mxu0 0.0
        %524 = vmatprep.subr.mxu0 0.0
        %525 = vmatpush2.msra.mxu0 0.0
        %526 = vmatprep.subr.mxu0 0.0
        %527 = vmatpush2.msra.mxu0 0.0
        %528 = vmatprep.subr.mxu0 0.0
        %529 = vmatpush2.msra.mxu0 0.0
        %530 = vmatprep.subr.mxu0 0.0
        %531 = vmatpush2.msra.mxu0 0.0
        %532 = vmatprep.subr.mxu0 0.0
        %533 = vmatpush2.msra.mxu0 0.0
        %534 = vmatprep.subr.mxu0 0.0
        %535 = vmatpush2.msra.mxu0 0.0
        %536 = vmatprep.subr.mxu0 0.0
        %537 = vmatpush2.msra.mxu0 0.0
        %538 = vmatprep.subr.mxu0 0.0
        %539 = vmatpush2.msra.mxu0 0.0
        %540 = vmatprep.subr.mxu0 0.0
        %541 = vmatpush2.msra.mxu0 0.0
        %542 = vmatprep.subr.mxu0 0.0
        %543 = vmatpush2.msra.mxu0 0.0
        %544 = vmatprep.subr.mxu0 0.0
        %545 = vmatpush2.msra.mxu0 0.0
        %546 = vmatprep.subr.mxu0 0.0
        %547 = vmatpush2.msra.mxu0 0.0
        %548 = vmatprep.subr.mxu0 0.0
        %549 = vmatpush2.msra.mxu0 0.0
        %550 = vmatprep.subr.mxu0 0.0
        %551 = vmatpush2.msra.mxu0 0.0
        %552 = vmatprep.mubr.f32.mxu0 0.0
        %553 = vmatmul.mubr.f32.gmra.mxu0 %v449
        %v554 = vpop.f32.mrf.mxu0
        %v555 = vadd.f32 %v446, %v554
        %v556 = vpop.f32.mrf.mxu0
        %557 = vmatprep.mubr.f32.mxu0 0.0
        %558 = vmatmul.mubr.f32.gmra.mxu0 %v452
        %v559 = vpop.f32.mrf.mxu0
        %v560 = vadd.f32 %v446, %v559
        %v561 = vpop.f32.mrf.mxu0
        %562 = vmatprep.mubr.f32.mxu0 0.0
        %563 = vmatmul.mubr.f32.gmra.mxu0 %v455
        %v564 = vpop.f32.mrf.mxu0
        %v565 = vadd.f32 %v446, %v564
        %v566 = vpop.f32.mrf.mxu0
        %567 = vmatprep.mubr.f32.mxu0 0.0
        %568 = vmatmul.mubr.f32.gmra.mxu0 %v458
        %v569 = vpop.f32.mrf.mxu0
        %v570 = vadd.f32 %v446, %v569
        %v571 = vpop.f32.mrf.mxu0
        %572 = vmatprep.mubr.f32.mxu0 0.0
        %573 = vmatmul.mubr.f32.gmra.mxu0 %v461
        %v574 = vpop.f32.mrf.mxu0
        %v575 = vadd.f32 %v446, %v574
        %v576 = vpop.f32.mrf.mxu0
        %577 = vmatprep.mubr.f32.mxu0 0.0
        %578 = vmatmul.mubr.f32.gmra.mxu0 %v464
        %v579 = vpop.f32.mrf.mxu0
        %v580 = vadd.f32 %v446, %v579
        %v581 = vpop.f32.mrf.mxu0
        %582 = vmatprep.mubr.f32.mxu0 0.0
        %583 = vmatmul.mubr.f32.gmra.mxu0 %v467
        %v584 = vpop.f32.mrf.mxu0
        %v585 = vadd.f32 %v446, %v584
        %v586 = vpop.f32.mrf.mxu0
        %587 = vmatprep.mubr.f32.mxu0 0.0
        %588 = vmatmul.mubr.f32.gmra.mxu0 %v470
        %v589 = vpop.f32.mrf.mxu0
        %v590 = vadd.f32 %v446, %v589
        %v591 = vpop.f32.mrf.mxu0
        %592 = vmatprep.mubr.f32.mxu0 0.0
        %593 = vmatmul.mubr.f32.gmra.mxu0 %v473
        %v594 = vpop.f32.mrf.mxu0
        %v595 = vadd.f32 %v446, %v594
        %v596 = vpop.f32.mrf.mxu0
        %597 = vmatprep.mubr.f32.mxu0 0.0
        %598 = vmatmul.mubr.f32.gmra.mxu0 %v476
        %v599 = vpop.f32.mrf.mxu0
        %v600 = vadd.f32 %v446, %v599
        %v601 = vpop.f32.mrf.mxu0
        %602 = vmatprep.mubr.f32.mxu0 0.0
        %603 = vmatmul.mubr.f32.gmra.mxu0 %v479
        %v604 = vpop.f32.mrf.mxu0
        %v605 = vadd.f32 %v446, %v604
        %v606 = vpop.f32.mrf.mxu0
        %607 = vmatprep.mubr.f32.mxu0 0.0
        %608 = vmatmul.mubr.f32.gmra.mxu0 %v482
        %v609 = vpop.f32.mrf.mxu0
        %v610 = vadd.f32 %v446, %v609
        %v611 = vpop.f32.mrf.mxu0
        %612 = vdwg.mxu0
        %v613 = vmax.f32 %v555, 0.0
        %v614 = vmax.f32 %v560, 0.0
        %v615 = vmax.f32 %v565, 0.0
        %v616 = vmax.f32 %v570, 0.0
        %v617 = vmax.f32 %v575, 0.0
        %v618 = vmax.f32 %v580, 0.0
        %v619 = vmax.f32 %v585, 0.0
        %v620 = vmax.f32 %v590, 0.0
        %v621 = vmax.f32 %v595, 0.0
        %v622 = vmax.f32 %v600, 0.0
        %v623 = vmax.f32 %v605, 0.0
        %v624 = vmax.f32 %v610, 0.0
        %v625 = vpack.c.bf16 %v614, %v613
        %v626 = vpack.c.bf16 %v616, %v615
        %v627 = vpack.c.bf16 %v618, %v617
        %v628 = vpack.c.bf16 %v620, %v619
        %v629 = vpack.c.bf16 %v622, %v621
        %v630 = vpack.c.bf16 %v624, %v623
        %v632 = vsel %vm356, %v630, 0
        %634 = vmatprep.subr.bf16.mxu0 0
        %635 = vmatpush1.bf16.msra.mxu0 0
        %636 = vmatprep.subr.bf16.mxu0 0
        %637 = vmatpush1.bf16.msra.mxu0 0
        %638 = vmatprep.subr.bf16.mxu0 0
        %639 = vmatpush1.bf16.msra.mxu0 %v632
        %640 = vmatprep.subr.bf16.mxu0 0
        %641 = vmatpush1.bf16.msra.mxu0 %v629
        %642 = vmatprep.subr.bf16.mxu0 0
        %643 = vmatpush1.bf16.msra.mxu0 %v628
        %644 = vmatprep.subr.bf16.mxu0 0
        %645 = vmatpush1.bf16.msra.mxu0 %v627
        %646 = vmatprep.subr.bf16.mxu0 0
        %647 = vmatpush1.bf16.msra.mxu0 %v626
        %648 = vmatprep.subr.bf16.mxu0 0
        %649 = vmatpush1.bf16.msra.mxu0 %v625
        %650 = vmatprep.subr.bf16.mxu0 0
        %651 = vmatpush2.bf16.msra.mxu0 0
        %652 = vmatprep.subr.bf16.mxu0 0
        %653 = vmatpush2.bf16.msra.mxu0 0
        %654 = vmatprep.subr.bf16.mxu0 0
        %655 = vmatpush2.bf16.msra.mxu0 0
        %656 = vmatprep.subr.bf16.mxu0 0
        %657 = vmatpush2.bf16.msra.mxu0 0
        %658 = vmatprep.subr.bf16.mxu0 0
        %659 = vmatpush2.bf16.msra.mxu0 0
        %660 = vmatprep.subr.bf16.mxu0 0
        %661 = vmatpush2.bf16.msra.mxu0 0
        %662 = vmatprep.subr.bf16.mxu0 0
        %663 = vmatpush2.bf16.msra.mxu0 0
        %664 = vmatprep.subr.bf16.mxu0 0
        %665 = vmatpush2.bf16.msra.mxu0 0
        %666 = vmatprep.mubr.bf16.mxu0 0
        %667 = vmatmul.mubr.bf16.gmra.mxu0 %v339
        %v668 = vpop.f32.mrf.mxu0
        %v669 = vadd.f32 0.0, %v668
        %v670 = vpop.f32.mrf.mxu0
        %v671 = vpop.f32.mrf.mxu0
        %v672 = vadd.f32 0.0, %v671
        %v673 = vpop.f32.mrf.mxu0
        %674 = vmatprep.mubr.bf16.mxu0 0
        %675 = vmatmul.mubr.bf16.gmra.mxu0 %v342
        %v676 = vpop.f32.mrf.mxu0
        %v677 = vadd.f32 0.0, %v676
        %v678 = vpop.f32.mrf.mxu0
        %v679 = vpop.f32.mrf.mxu0
        %v680 = vadd.f32 0.0, %v679
        %v681 = vpop.f32.mrf.mxu0
        %682 = vmatprep.mubr.bf16.mxu0 0
        %683 = vmatmul.mubr.bf16.gmra.mxu0 %v345
        %v684 = vpop.f32.mrf.mxu0
        %v685 = vadd.f32 0.0, %v684
        %v686 = vpop.f32.mrf.mxu0
        %v687 = vpop.f32.mrf.mxu0
        %v688 = vadd.f32 0.0, %v687
        %v689 = vpop.f32.mrf.mxu0
        %690 = vmatprep.mubr.bf16.mxu0 0
        %691 = vmatmul.mubr.bf16.gmra.mxu0 %v348
        %v692 = vpop.f32.mrf.mxu0
        %v693 = vadd.f32 0.0, %v692
        %v694 = vpop.f32.mrf.mxu0
        %v695 = vpop.f32.mrf.mxu0
        %v696 = vadd.f32 0.0, %v695
        %v697 = vpop.f32.mrf.mxu0
        %698 = vmatprep.mubr.bf16.mxu0 0
        %699 = vmatmul.mubr.bf16.gmra.mxu0 %v351
        %v700 = vpop.f32.mrf.mxu0
        %v701 = vadd.f32 0.0, %v700
        %v702 = vpop.f32.mrf.mxu0
        %v703 = vpop.f32.mrf.mxu0
        %v704 = vadd.f32 0.0, %v703
        %v705 = vpop.f32.mrf.mxu0
        %706 = vmatprep.mubr.bf16.mxu0 0
        %707 = vmatmul.mubr.bf16.gmra.mxu0 %v354
        %v708 = vpop.f32.mrf.mxu0
        %v709 = vadd.f32 0.0, %v708
        %v710 = vpop.f32.mrf.mxu0
        %v711 = vpop.f32.mrf.mxu0
        %v712 = vadd.f32 0.0, %v711
        %v713 = vpop.f32.mrf.mxu0
        %714 = vdwg.mxu0
        %v715 = vld [vmem:[%s2 + $0x10] sm:$0xff]
        %v716 = vld [vmem:[%s2 + $0x18] sm:$0xff]
        %v717 = vld [vmem:[%s2 + $0x20] sm:$0xff]
        %v718 = vld [vmem:[%s2 + $0x28] sm:$0xff]
        %v719 = vld [vmem:[%s2 + $0x30] sm:$0x1]
        %v720 = vlaneseq
        %v721 = vshrl.u32 %v720, 7
        %v722 = vsub.s32 0, %v721
        %v723 = vrot.slane %v719, %v722
        %vm724 = vcmask 261120
        %v726 = vsel %vm724, %v669, 0
        %v729 = vsel %vm724, %v672, 0
        %v732 = vsel %vm724, %v677, 0
        %v735 = vsel %vm724, %v680, 0
        %v738 = vsel %vm724, %v685, 0
        %v741 = vsel %vm724, %v688, 0
        %v744 = vsel %vm724, %v693, 0
        %v747 = vsel %vm724, %v696, 0
        %v750 = vsel %vm724, %v701, 0
        %v753 = vsel %vm724, %v704, 0
        %v756 = vsel %vm724, %v709, 0
        %v759 = vsel %vm724, %v712, 0
        %761 = vmatprep.subr.mxu0 0.0
        %762 = vmatpush1.msra.mxu0 0.0
        %763 = vmatprep.subr.mxu0 0.0
        %764 = vmatpush1.msra.mxu0 0.0
        %765 = vmatprep.subr.mxu0 0.0
        %766 = vmatpush1.msra.mxu0 0.0
        %767 = vmatprep.subr.mxu0 0.0
        %768 = vmatpush1.msra.mxu0 0.0
        %769 = vmatprep.subr.mxu0 0.0
        %770 = vmatpush1.msra.mxu0 0.0
        %771 = vmatprep.subr.mxu0 0.0
        %772 = vmatpush1.msra.mxu0 0.0
        %773 = vmatprep.subr.mxu0 0.0
        %774 = vmatpush1.msra.mxu0 0.0
        %775 = vmatprep.subr.mxu0 0.0
        %776 = vmatpush1.msra.mxu0 0.0
        %777 = vmatprep.subr.mxu0 0.0
        %778 = vmatpush1.msra.mxu0 0.0
        %779 = vmatprep.subr.mxu0 0.0
        %780 = vmatpush1.msra.mxu0 0.0
        %781 = vmatprep.subr.mxu0 0.0
        %782 = vmatpush1.msra.mxu0 0.0
        %783 = vmatprep.subr.mxu0 0.0
        %784 = vmatpush1.msra.mxu0 0.0
        %785 = vmatprep.subr.mxu0 0.0
        %786 = vmatpush1.msra.mxu0 %v718
        %787 = vmatprep.subr.mxu0 0.0
        %788 = vmatpush1.msra.mxu0 %v717
        %789 = vmatprep.subr.mxu0 0.0
        %790 = vmatpush1.msra.mxu0 %v716
        %791 = vmatprep.subr.mxu0 0.0
        %792 = vmatpush1.msra.mxu0 %v715
        %793 = vmatprep.subr.mxu0 0.0
        %794 = vmatpush2.msra.mxu0 0.0
        %795 = vmatprep.subr.mxu0 0.0
        %796 = vmatpush2.msra.mxu0 0.0
        %797 = vmatprep.subr.mxu0 0.0
        %798 = vmatpush2.msra.mxu0 0.0
        %799 = vmatprep.subr.mxu0 0.0
        %800 = vmatpush2.msra.mxu0 0.0
        %801 = vmatprep.subr.mxu0 0.0
        %802 = vmatpush2.msra.mxu0 0.0
        %803 = vmatprep.subr.mxu0 0.0
        %804 = vmatpush2.msra.mxu0 0.0
        %805 = vmatprep.subr.mxu0 0.0
        %806 = vmatpush2.msra.mxu0 0.0
        %807 = vmatprep.subr.mxu0 0.0
        %808 = vmatpush2.msra.mxu0 0.0
        %809 = vmatprep.subr.mxu0 0.0
        %810 = vmatpush2.msra.mxu0 0.0
        %811 = vmatprep.subr.mxu0 0.0
        %812 = vmatpush2.msra.mxu0 0.0
        %813 = vmatprep.subr.mxu0 0.0
        %814 = vmatpush2.msra.mxu0 0.0
        %815 = vmatprep.subr.mxu0 0.0
        %816 = vmatpush2.msra.mxu0 0.0
        %817 = vmatprep.subr.mxu0 0.0
        %818 = vmatpush2.msra.mxu0 0.0
        %819 = vmatprep.subr.mxu0 0.0
        %820 = vmatpush2.msra.mxu0 0.0
        %821 = vmatprep.subr.mxu0 0.0
        %822 = vmatpush2.msra.mxu0 0.0
        %823 = vmatprep.subr.mxu0 0.0
        %824 = vmatpush2.msra.mxu0 0.0
        %825 = vmatprep.mubr.f32.mxu0 0.0
        %826 = vmatmul.mubr.f32.gmra.mxu0 %v726
        %v827 = vpop.f32.mrf.mxu0
        %v828 = vadd.f32 %v723, %v827
        %v829 = vpop.f32.mrf.mxu0
        %830 = vmatprep.mubr.f32.mxu0 0.0
        %831 = vmatmul.mubr.f32.gmra.mxu0 %v729
        %v832 = vpop.f32.mrf.mxu0
        %v833 = vadd.f32 %v723, %v832
        %v834 = vpop.f32.mrf.mxu0
        %835 = vmatprep.mubr.f32.mxu0 0.0
        %836 = vmatmul.mubr.f32.gmra.mxu0 %v732
        %v837 = vpop.f32.mrf.mxu0
        %v838 = vadd.f32 %v723, %v837
        %v839 = vpop.f32.mrf.mxu0
        %840 = vmatprep.mubr.f32.mxu0 0.0
        %841 = vmatmul.mubr.f32.gmra.mxu0 %v735
        %v842 = vpop.f32.mrf.mxu0
        %v843 = vadd.f32 %v723, %v842
        %v844 = vpop.f32.mrf.mxu0
        %845 = vmatprep.mubr.f32.mxu0 0.0
        %846 = vmatmul.mubr.f32.gmra.mxu0 %v738
        %v847 = vpop.f32.mrf.mxu0
        %v848 = vadd.f32 %v723, %v847
        %v849 = vpop.f32.mrf.mxu0
        %850 = vmatprep.mubr.f32.mxu0 0.0
        %851 = vmatmul.mubr.f32.gmra.mxu0 %v741
        %v852 = vpop.f32.mrf.mxu0
        %v853 = vadd.f32 %v723, %v852
        %v854 = vpop.f32.mrf.mxu0
        %855 = vmatprep.mubr.f32.mxu0 0.0
        %856 = vmatmul.mubr.f32.gmra.mxu0 %v744
        %v857 = vpop.f32.mrf.mxu0
        %v858 = vadd.f32 %v723, %v857
        %v859 = vpop.f32.mrf.mxu0
        %860 = vmatprep.mubr.f32.mxu0 0.0
        %861 = vmatmul.mubr.f32.gmra.mxu0 %v747
        %v862 = vpop.f32.mrf.mxu0
        %v863 = vadd.f32 %v723, %v862
        %v864 = vpop.f32.mrf.mxu0
        %865 = vmatprep.mubr.f32.mxu0 0.0
        %866 = vmatmul.mubr.f32.gmra.mxu0 %v750
        %v867 = vpop.f32.mrf.mxu0
        %v868 = vadd.f32 %v723, %v867
        %v869 = vpop.f32.mrf.mxu0
        %870 = vmatprep.mubr.f32.mxu0 0.0
        %871 = vmatmul.mubr.f32.gmra.mxu0 %v753
        %v872 = vpop.f32.mrf.mxu0
        %v873 = vadd.f32 %v723, %v872
        %v874 = vpop.f32.mrf.mxu0
        %875 = vmatprep.mubr.f32.mxu0 0.0
        %876 = vmatmul.mubr.f32.gmra.mxu0 %v756
        %v877 = vpop.f32.mrf.mxu0
        %v878 = vadd.f32 %v723, %v877
        %v879 = vpop.f32.mrf.mxu0
        %880 = vmatprep.mubr.f32.mxu0 0.0
        %881 = vmatmul.mubr.f32.gmra.mxu0 %v759
        %v882 = vpop.f32.mrf.mxu0
        %v883 = vadd.f32 %v723, %v882
        %v884 = vpop.f32.mrf.mxu0
        %885 = vdwg.mxu0
        %v886 = vmax.f32 %v828, 0.0
        %v887 = vmax.f32 %v833, 0.0
        %v888 = vmax.f32 %v838, 0.0
        %v889 = vmax.f32 %v843, 0.0
        %v890 = vmax.f32 %v848, 0.0
        %v891 = vmax.f32 %v853, 0.0
        %v892 = vmax.f32 %v858, 0.0
        %v893 = vmax.f32 %v863, 0.0
        %v894 = vmax.f32 %v868, 0.0
        %v895 = vmax.f32 %v873, 0.0
        %v896 = vmax.f32 %v878, 0.0
        %v897 = vmax.f32 %v883, 0.0
        %v898 = vld [vmem:[%s2 + $0x38] sm:$0xff]
        %v899 = vld [vmem:[%s2 + $0x40] sm:$0xff]
        %v900 = vld [vmem:[%s2 + $0x48] sm:$0xff]
        %v901 = vld [vmem:[%s2 + $0x50] sm:$0xff]
        %v902 = vld [vmem:[%s2 + $0x58] sm:$0xff]
        %v903 = vld [vmem:[%s2 + $0x60] sm:$0xff]
        %v904 = vld [vmem:[%s2 + $0x68] sm:$0xff]
        %v905 = vld [vmem:[%s2 + $0x70] sm:$0xff]
        %v907 = vsel %vm724, %v886, 0
        %v910 = vsel %vm724, %v887, 0
        %v913 = vsel %vm724, %v888, 0
        %v916 = vsel %vm724, %v889, 0
        %v919 = vsel %vm724, %v890, 0
        %v922 = vsel %vm724, %v891, 0
        %v925 = vsel %vm724, %v892, 0
        %v928 = vsel %vm724, %v893, 0
        %v931 = vsel %vm724, %v894, 0
        %v934 = vsel %vm724, %v895, 0
        %v937 = vsel %vm724, %v896, 0
        %v940 = vsel %vm724, %v897, 0
        %942 = vmatprep.subr.mxu0 0.0
        %943 = vmatpush1.msra.mxu0 0.0
        %944 = vmatprep.subr.mxu0 0.0
        %945 = vmatpush1.msra.mxu0 0.0
        %946 = vmatprep.subr.mxu0 0.0
        %947 = vmatpush1.msra.mxu0 0.0
        %948 = vmatprep.subr.mxu0 0.0
        %949 = vmatpush1.msra.mxu0 0.0
        %950 = vmatprep.subr.mxu0 0.0
        %951 = vmatpush1.msra.mxu0 0.0
        %952 = vmatprep.subr.mxu0 0.0
        %953 = vmatpush1.msra.mxu0 0.0
        %954 = vmatprep.subr.mxu0 0.0
        %955 = vmatpush1.msra.mxu0 0.0
        %956 = vmatprep.subr.mxu0 0.0
        %957 = vmatpush1.msra.mxu0 0.0
        %958 = vmatprep.subr.mxu0 0.0
        %959 = vmatpush1.msra.mxu0 0.0
        %960 = vmatprep.subr.mxu0 0.0
        %961 = vmatpush1.msra.mxu0 0.0
        %962 = vmatprep.subr.mxu0 0.0
        %963 = vmatpush1.msra.mxu0 0.0
        %964 = vmatprep.subr.mxu0 0.0
        %965 = vmatpush1.msra.mxu0 0.0
        %966 = vmatprep.subr.mxu0 0.0
        %967 = vmatpush1.msra.mxu0 %v905
        %968 = vmatprep.subr.mxu0 0.0
        %969 = vmatpush1.msra.mxu0 %v904
        %970 = vmatprep.subr.mxu0 0.0
        %971 = vmatpush1.msra.mxu0 %v903
        %972 = vmatprep.subr.mxu0 0.0
        %973 = vmatpush1.msra.mxu0 %v902
        %974 = vmatprep.subr.mxu0 0.0
        %975 = vmatpush2.msra.mxu0 0.0
        %976 = vmatprep.subr.mxu0 0.0
        %977 = vmatpush2.msra.mxu0 0.0
        %978 = vmatprep.subr.mxu0 0.0
        %979 = vmatpush2.msra.mxu0 0.0
        %980 = vmatprep.subr.mxu0 0.0
        %981 = vmatpush2.msra.mxu0 0.0
        %982 = vmatprep.subr.mxu0 0.0
        %983 = vmatpush2.msra.mxu0 0.0
        %984 = vmatprep.subr.mxu0 0.0
        %985 = vmatpush2.msra.mxu0 0.0
        %986 = vmatprep.subr.mxu0 0.0
        %987 = vmatpush2.msra.mxu0 0.0
        %988 = vmatprep.subr.mxu0 0.0
        %989 = vmatpush2.msra.mxu0 0.0
        %990 = vmatprep.subr.mxu0 0.0
        %991 = vmatpush2.msra.mxu0 0.0
        %992 = vmatprep.subr.mxu0 0.0
        %993 = vmatpush2.msra.mxu0 0.0
        %994 = vmatprep.subr.mxu0 0.0
        %995 = vmatpush2.msra.mxu0 0.0
        %996 = vmatprep.subr.mxu0 0.0
        %997 = vmatpush2.msra.mxu0 0.0
        %998 = vmatprep.subr.mxu0 0.0
        %999 = vmatpush2.msra.mxu0 0.0
        %1000 = vmatprep.subr.mxu0 0.0
        %1001 = vmatpush2.msra.mxu0 0.0
        %1002 = vmatprep.subr.mxu0 0.0
        %1003 = vmatpush2.msra.mxu0 0.0
        %1004 = vmatprep.subr.mxu0 0.0
        %1005 = vmatpush2.msra.mxu0 0.0
        %1006 = vmatprep.mubr.f32.mxu0 0.0
        %1007 = vmatmul.mubr.f32.gmra.mxu0 %v907
        %v1008 = vpop.f32.mrf.mxu0
        %v1009 = vadd.f32 0.0, %v1008
        %v1010 = vpop.f32.mrf.mxu0
        %1011 = vmatprep.mubr.f32.mxu0 0.0
        %1012 = vmatmul.mubr.f32.gmra.mxu0 %v910
        %v1013 = vpop.f32.mrf.mxu0
        %v1014 = vadd.f32 0.0, %v1013
        %v1015 = vpop.f32.mrf.mxu0
        %1016 = vmatprep.mubr.f32.mxu0 0.0
        %1017 = vmatmul.mubr.f32.gmra.mxu0 %v913
        %v1018 = vpop.f32.mrf.mxu0
        %v1019 = vadd.f32 0.0, %v1018
        %v1020 = vpop.f32.mrf.mxu0
        %1021 = vmatprep.mubr.f32.mxu0 0.0
        %1022 = vmatmul.mubr.f32.gmra.mxu0 %v916
        %v1023 = vpop.f32.mrf.mxu0
        %v1024 = vadd.f32 0.0, %v1023
        %v1025 = vpop.f32.mrf.mxu0
        %1026 = vmatprep.mubr.f32.mxu0 0.0
        %1027 = vmatmul.mubr.f32.gmra.mxu0 %v919
        %v1028 = vpop.f32.mrf.mxu0
        %v1029 = vadd.f32 0.0, %v1028
        %v1030 = vpop.f32.mrf.mxu0
        %1031 = vmatprep.mubr.f32.mxu0 0.0
        %1032 = vmatmul.mubr.f32.gmra.mxu0 %v922
        %v1033 = vpop.f32.mrf.mxu0
        %v1034 = vadd.f32 0.0, %v1033
        %v1035 = vpop.f32.mrf.mxu0
        %1036 = vmatprep.mubr.f32.mxu0 0.0
        %1037 = vmatmul.mubr.f32.gmra.mxu0 %v925
        %v1038 = vpop.f32.mrf.mxu0
        %v1039 = vadd.f32 0.0, %v1038
        %v1040 = vpop.f32.mrf.mxu0
        %1041 = vmatprep.mubr.f32.mxu0 0.0
        %1042 = vmatmul.mubr.f32.gmra.mxu0 %v928
        %v1043 = vpop.f32.mrf.mxu0
        %v1044 = vadd.f32 0.0, %v1043
        %v1045 = vpop.f32.mrf.mxu0
        %1046 = vmatprep.mubr.f32.mxu0 0.0
        %1047 = vmatmul.mubr.f32.gmra.mxu0 %v931
        %v1048 = vpop.f32.mrf.mxu0
        %v1049 = vadd.f32 0.0, %v1048
        %v1050 = vpop.f32.mrf.mxu0
        %1051 = vmatprep.mubr.f32.mxu0 0.0
        %1052 = vmatmul.mubr.f32.gmra.mxu0 %v934
        %v1053 = vpop.f32.mrf.mxu0
        %v1054 = vadd.f32 0.0, %v1053
        %v1055 = vpop.f32.mrf.mxu0
        %1056 = vmatprep.mubr.f32.mxu0 0.0
        %1057 = vmatmul.mubr.f32.gmra.mxu0 %v937
        %v1058 = vpop.f32.mrf.mxu0
        %v1059 = vadd.f32 0.0, %v1058
        %v1060 = vpop.f32.mrf.mxu0
        %1061 = vmatprep.mubr.f32.mxu0 0.0
        %1062 = vmatmul.mubr.f32.gmra.mxu0 %v940
        %v1063 = vpop.f32.mrf.mxu0
        %v1064 = vadd.f32 0.0, %v1063
        %v1065 = vpop.f32.mrf.mxu0
        %1066 = vdwg.mxu0
        %v1068 = vsel %vm724, %v613, 0
        %v1071 = vsel %vm724, %v614, 0
        %v1074 = vsel %vm724, %v615, 0
        %v1077 = vsel %vm724, %v616, 0
        %v1080 = vsel %vm724, %v617, 0
        %v1083 = vsel %vm724, %v618, 0
        %v1086 = vsel %vm724, %v619, 0
        %v1089 = vsel %vm724, %v620, 0
        %v1092 = vsel %vm724, %v621, 0
        %v1095 = vsel %vm724, %v622, 0
        %v1098 = vsel %vm724, %v623, 0
        %v1101 = vsel %vm724, %v624, 0
        %1103 = vmatprep.subr.mxu0 0.0
        %1104 = vmatpush1.msra.mxu0 0.0
        %1105 = vmatprep.subr.mxu0 0.0
        %1106 = vmatpush1.msra.mxu0 0.0
        %1107 = vmatprep.subr.mxu0 0.0
        %1108 = vmatpush1.msra.mxu0 0.0
        %1109 = vmatprep.subr.mxu0 0.0
        %1110 = vmatpush1.msra.mxu0 0.0
        %1111 = vmatprep.subr.mxu0 0.0
        %1112 = vmatpush1.msra.mxu0 0.0
        %1113 = vmatprep.subr.mxu0 0.0
        %1114 = vmatpush1.msra.mxu0 0.0
        %1115 = vmatprep.subr.mxu0 0.0
        %1116 = vmatpush1.msra.mxu0 0.0
        %1117 = vmatprep.subr.mxu0 0.0
        %1118 = vmatpush1.msra.mxu0 0.0
        %1119 = vmatprep.subr.mxu0 0.0
        %1120 = vmatpush1.msra.mxu0 0.0
        %1121 = vmatprep.subr.mxu0 0.0
        %1122 = vmatpush1.msra.mxu0 0.0
        %1123 = vmatprep.subr.mxu0 0.0
        %1124 = vmatpush1.msra.mxu0 0.0
        %1125 = vmatprep.subr.mxu0 0.0
        %1126 = vmatpush1.msra.mxu0 0.0
        %1127 = vmatprep.subr.mxu0 0.0
        %1128 = vmatpush1.msra.mxu0 %v901
        %1129 = vmatprep.subr.mxu0 0.0
        %1130 = vmatpush1.msra.mxu0 %v900
        %1131 = vmatprep.subr.mxu0 0.0
        %1132 = vmatpush1.msra.mxu0 %v899
        %1133 = vmatprep.subr.mxu0 0.0
        %1134 = vmatpush1.msra.mxu0 %v898
        %1135 = vmatprep.subr.mxu0 0.0
        %1136 = vmatpush2.msra.mxu0 0.0
        %1137 = vmatprep.subr.mxu0 0.0
        %1138 = vmatpush2.msra.mxu0 0.0
        %1139 = vmatprep.subr.mxu0 0.0
        %1140 = vmatpush2.msra.mxu0 0.0
        %1141 = vmatprep.subr.mxu0 0.0
        %1142 = vmatpush2.msra.mxu0 0.0
        %1143 = vmatprep.subr.mxu0 0.0
        %1144 = vmatpush2.msra.mxu0 0.0
        %1145 = vmatprep.subr.mxu0 0.0
        %1146 = vmatpush2.msra.mxu0 0.0
        %1147 = vmatprep.subr.mxu0 0.0
        %1148 = vmatpush2.msra.mxu0 0.0
        %1149 = vmatprep.subr.mxu0 0.0
        %1150 = vmatpush2.msra.mxu0 0.0
        %1151 = vmatprep.subr.mxu0 0.0
        %1152 = vmatpush2.msra.mxu0 0.0
        %1153 = vmatprep.subr.mxu0 0.0
        %1154 = vmatpush2.msra.mxu0 0.0
        %1155 = vmatprep.subr.mxu0 0.0
        %1156 = vmatpush2.msra.mxu0 0.0
        %1157 = vmatprep.subr.mxu0 0.0
        %1158 = vmatpush2.msra.mxu0 0.0
        %1159 = vmatprep.subr.mxu0 0.0
        %1160 = vmatpush2.msra.mxu0 0.0
        %1161 = vmatprep.subr.mxu0 0.0
        %1162 = vmatpush2.msra.mxu0 0.0
        %1163 = vmatprep.subr.mxu0 0.0
        %1164 = vmatpush2.msra.mxu0 0.0
        %1165 = vmatprep.subr.mxu0 0.0
        %1166 = vmatpush2.msra.mxu0 0.0
        %1167 = vmatprep.mubr.f32.mxu0 0.0
        %1168 = vmatmul.mubr.f32.gmra.mxu0 %v1068
        %v1169 = vpop.f32.mrf.mxu0
        %v1170 = vadd.f32 %v1009, %v1169
        %v1171 = vpop.f32.mrf.mxu0
        %1172 = vmatprep.mubr.f32.mxu0 0.0
        %1173 = vmatmul.mubr.f32.gmra.mxu0 %v1071
        %v1174 = vpop.f32.mrf.mxu0
        %v1175 = vadd.f32 %v1014, %v1174
        %v1176 = vpop.f32.mrf.mxu0
        %1177 = vmatprep.mubr.f32.mxu0 0.0
        %1178 = vmatmul.mubr.f32.gmra.mxu0 %v1074
        %v1179 = vpop.f32.mrf.mxu0
        %v1180 = vadd.f32 %v1019, %v1179
        %v1181 = vpop.f32.mrf.mxu0
        %1182 = vmatprep.mubr.f32.mxu0 0.0
        %1183 = vmatmul.mubr.f32.gmra.mxu0 %v1077
        %v1184 = vpop.f32.mrf.mxu0
        %v1185 = vadd.f32 %v1024, %v1184
        %v1186 = vpop.f32.mrf.mxu0
        %1187 = vmatprep.mubr.f32.mxu0 0.0
        %1188 = vmatmul.mubr.f32.gmra.mxu0 %v1080
        %v1189 = vpop.f32.mrf.mxu0
        %v1190 = vadd.f32 %v1029, %v1189
        %v1191 = vpop.f32.mrf.mxu0
        %1192 = vmatprep.mubr.f32.mxu0 0.0
        %1193 = vmatmul.mubr.f32.gmra.mxu0 %v1083
        %v1194 = vpop.f32.mrf.mxu0
        %v1195 = vadd.f32 %v1034, %v1194
        %v1196 = vpop.f32.mrf.mxu0
        %1197 = vmatprep.mubr.f32.mxu0 0.0
        %1198 = vmatmul.mubr.f32.gmra.mxu0 %v1086
        %v1199 = vpop.f32.mrf.mxu0
        %v1200 = vadd.f32 %v1039, %v1199
        %v1201 = vpop.f32.mrf.mxu0
        %1202 = vmatprep.mubr.f32.mxu0 0.0
        %1203 = vmatmul.mubr.f32.gmra.mxu0 %v1089
        %v1204 = vpop.f32.mrf.mxu0
        %v1205 = vadd.f32 %v1044, %v1204
        %v1206 = vpop.f32.mrf.mxu0
        %1207 = vmatprep.mubr.f32.mxu0 0.0
        %1208 = vmatmul.mubr.f32.gmra.mxu0 %v1092
        %v1209 = vpop.f32.mrf.mxu0
        %v1210 = vadd.f32 %v1049, %v1209
        %v1211 = vpop.f32.mrf.mxu0
        %1212 = vmatprep.mubr.f32.mxu0 0.0
        %1213 = vmatmul.mubr.f32.gmra.mxu0 %v1095
        %v1214 = vpop.f32.mrf.mxu0
        %v1215 = vadd.f32 %v1054, %v1214
        %v1216 = vpop.f32.mrf.mxu0
        %1217 = vmatprep.mubr.f32.mxu0 0.0
        %1218 = vmatmul.mubr.f32.gmra.mxu0 %v1098
        %v1219 = vpop.f32.mrf.mxu0
        %v1220 = vadd.f32 %v1059, %v1219
        %v1221 = vpop.f32.mrf.mxu0
        %1222 = vmatprep.mubr.f32.mxu0 0.0
        %1223 = vmatmul.mubr.f32.gmra.mxu0 %v1101
        %v1224 = vpop.f32.mrf.mxu0
        %v1225 = vadd.f32 %v1064, %v1224
        %v1226 = vpop.f32.mrf.mxu0
        %1227 = vdwg.mxu0
        %v1228 = vld [vmem:[%s2 + $0x78] sm:$0x1]
        %v1229 = vlaneseq
        %v1230 = vshrl.u32 %v1229, 7
        %v1231 = vsub.s32 0, %v1230
        %v1232 = vrot.slane %v1228, %v1231
        %v1233 = vadd.f32 %v1170, %v1232
        %v1234 = vadd.f32 %v1175, %v1232
        %v1235 = vadd.f32 %v1180, %v1232
        %v1236 = vadd.f32 %v1185, %v1232
        %v1237 = vadd.f32 %v1190, %v1232
        %v1238 = vadd.f32 %v1195, %v1232
        %v1239 = vadd.f32 %v1200, %v1232
        %v1240 = vadd.f32 %v1205, %v1232
        %v1241 = vadd.f32 %v1210, %v1232
        %v1242 = vadd.f32 %v1215, %v1232
        %v1243 = vadd.f32 %v1220, %v1232
        %v1244 = vadd.f32 %v1225, %v1232
        %v1245 = vmax.f32 %v1233, 0.0
        %v1246 = vmax.f32 %v1234, 0.0
        %v1247 = vmax.f32 %v1235, 0.0
        %v1248 = vmax.f32 %v1236, 0.0
        %v1249 = vmax.f32 %v1237, 0.0
        %v1250 = vmax.f32 %v1238, 0.0
        %v1251 = vmax.f32 %v1239, 0.0
        %v1252 = vmax.f32 %v1240, 0.0
        %v1253 = vmax.f32 %v1241, 0.0
        %v1254 = vmax.f32 %v1242, 0.0
        %v1255 = vmax.f32 %v1243, 0.0
        %v1256 = vmax.f32 %v1244, 0.0
        %v1257 = vsel %vm724, %v1245, 0.0
        %v1258 = vsel %vm724, %v1246, 0.0
        %v1259 = vadd.f32 %v1257, %v1258
        %v1260 = vsel %vm724, %v1247, 0.0
        %v1261 = vadd.f32 %v1259, %v1260
        %v1262 = vsel %vm724, %v1248, 0.0
        %v1263 = vadd.f32 %v1261, %v1262
        %v1264 = vsel %vm724, %v1249, 0.0
        %v1265 = vadd.f32 %v1263, %v1264
        %v1266 = vsel %vm724, %v1250, 0.0
        %v1267 = vadd.f32 %v1265, %v1266
        %v1268 = vsel %vm724, %v1251, 0.0
        %v1269 = vadd.f32 %v1267, %v1268
        %v1270 = vsel %vm724, %v1252, 0.0
        %v1271 = vadd.f32 %v1269, %v1270
        %v1272 = vsel %vm724, %v1253, 0.0
        %v1273 = vadd.f32 %v1271, %v1272
        %v1274 = vsel %vm724, %v1254, 0.0
        %v1275 = vadd.f32 %v1273, %v1274
        %v1276 = vsel %vm724, %v1255, 0.0
        %v1277 = vadd.f32 %v1275, %v1276
        %vm1278 = vcmask 254976
        %v1279 = vsel %vm1278, %v1256, 0.0
        %v1280 = vadd.f32 %v1277, %v1279
        %v1281 = vrot.slane %v1280, 4
        %v1282 = vadd.f32 %v1280, %v1281
        %v1283 = vrot.slane %v1282, 2
        %v1284 = vadd.f32 %v1282, %v1283
        %v1285 = vrot.slane %v1284, 1
        %v1286 = vadd.f32 %v1284, %v1285
        %v1287 = vrcp.pop 90.0
        %v1288 = vmul.f32 %v1286, %v1287
        %v1289 = vld [vmem:[%s2 + $0x80] sm:$0xf]
        %v1290 = vld [vmem:[%s2 + $0x88] sm:$0x1]
        %v1291 = vlaneseq
        %v1292 = vshrl.u32 %v1291, 7
        %v1293 = vsub.s32 0, %v1292
        %v1294 = vrot.slane %v1290, %v1293
        %v1296 = vsel %vm484, %v1289, 0
        %1298 = vmatprep.subr.mxu0 0.0
        %1299 = vmatpush1.msra.mxu0 0.0
        %1300 = vmatprep.subr.mxu0 0.0
        %1301 = vmatpush1.msra.mxu0 0.0
        %1302 = vmatprep.subr.mxu0 0.0
        %1303 = vmatpush1.msra.mxu0 0.0
        %1304 = vmatprep.subr.mxu0 0.0
        %1305 = vmatpush1.msra.mxu0 0.0
        %1306 = vmatprep.subr.mxu0 0.0
        %1307 = vmatpush1.msra.mxu0 0.0
        %1308 = vmatprep.subr.mxu0 0.0
        %1309 = vmatpush1.msra.mxu0 0.0
        %1310 = vmatprep.subr.mxu0 0.0
        %1311 = vmatpush1.msra.mxu0 0.0
        %1312 = vmatprep.subr.mxu0 0.0
        %1313 = vmatpush1.msra.mxu0 0.0
        %1314 = vmatprep.subr.mxu0 0.0
        %1315 = vmatpush1.msra.mxu0 0.0
        %1316 = vmatprep.subr.mxu0 0.0
        %1317 = vmatpush1.msra.mxu0 0.0
        %1318 = vmatprep.subr.mxu0 0.0
        %1319 = vmatpush1.msra.mxu0 0.0
        %1320 = vmatprep.subr.mxu0 0.0
        %1321 = vmatpush1.msra.mxu0 0.0
        %1322 = vmatprep.subr.mxu0 0.0
        %1323 = vmatpush1.msra.mxu0 0.0
        %1324 = vmatprep.subr.mxu0 0.0
        %1325 = vmatpush1.msra.mxu0 0.0
        %1326 = vmatprep.subr.mxu0 0.0
        %1327 = vmatpush1.msra.mxu0 0.0
        %1328 = vmatprep.subr.mxu0 0.0
        %1329 = vmatpush1.msra.mxu0 %v1296
        %1330 = vmatprep.subr.mxu0 0.0
        %1331 = vmatpush2.msra.mxu0 0.0
        %1332 = vmatprep.subr.mxu0 0.0
        %1333 = vmatpush2.msra.mxu0 0.0
        %1334 = vmatprep.subr.mxu0 0.0
        %1335 = vmatpush2.msra.mxu0 0.0
        %1336 = vmatprep.subr.mxu0 0.0
        %1337 = vmatpush2.msra.mxu0 0.0
        %1338 = vmatprep.subr.mxu0 0.0
        %1339 = vmatpush2.msra.mxu0 0.0
        %1340 = vmatprep.subr.mxu0 0.0
        %1341 = vmatpush2.msra.mxu0 0.0
        %1342 = vmatprep.subr.mxu0 0.0
        %1343 = vmatpush2.msra.mxu0 0.0
        %1344 = vmatprep.subr.mxu0 0.0
        %1345 = vmatpush2.msra.mxu0 0.0
        %1346 = vmatprep.subr.mxu0 0.0
        %1347 = vmatpush2.msra.mxu0 0.0
        %1348 = vmatprep.subr.mxu0 0.0
        %1349 = vmatpush2.msra.mxu0 0.0
        %1350 = vmatprep.subr.mxu0 0.0
        %1351 = vmatpush2.msra.mxu0 0.0
        %1352 = vmatprep.subr.mxu0 0.0
        %1353 = vmatpush2.msra.mxu0 0.0
        %1354 = vmatprep.subr.mxu0 0.0
        %1355 = vmatpush2.msra.mxu0 0.0
        %1356 = vmatprep.subr.mxu0 0.0
        %1357 = vmatpush2.msra.mxu0 0.0
        %1358 = vmatprep.subr.mxu0 0.0
        %1359 = vmatpush2.msra.mxu0 0.0
        %1360 = vmatprep.subr.mxu0 0.0
        %1361 = vmatpush2.msra.mxu0 0.0
        %1362 = vmatprep.mubr.f32.mxu0 0.0
        %1363 = vmatmul.mubr.f32.gmra.mxu0 %v449
        %v1364 = vpop.f32.mrf.mxu0
        %v1365 = vadd.f32 %v1294, %v1364
        %v1366 = vpop.f32.mrf.mxu0
        %1367 = vmatprep.mubr.f32.mxu0 0.0
        %1368 = vmatmul.mubr.f32.gmra.mxu0 %v452
        %v1369 = vpop.f32.mrf.mxu0
        %v1370 = vadd.f32 %v1294, %v1369
        %v1371 = vpop.f32.mrf.mxu0
        %1372 = vmatprep.mubr.f32.mxu0 0.0
        %1373 = vmatmul.mubr.f32.gmra.mxu0 %v455
        %v1374 = vpop.f32.mrf.mxu0
        %v1375 = vadd.f32 %v1294, %v1374
        %v1376 = vpop.f32.mrf.mxu0
        %1377 = vmatprep.mubr.f32.mxu0 0.0
        %1378 = vmatmul.mubr.f32.gmra.mxu0 %v458
        %v1379 = vpop.f32.mrf.mxu0
        %v1380 = vadd.f32 %v1294, %v1379
        %v1381 = vpop.f32.mrf.mxu0
        %1382 = vmatprep.mubr.f32.mxu0 0.0
        %1383 = vmatmul.mubr.f32.gmra.mxu0 %v461
        %v1384 = vpop.f32.mrf.mxu0
        %v1385 = vadd.f32 %v1294, %v1384
        %v1386 = vpop.f32.mrf.mxu0
        %1387 = vmatprep.mubr.f32.mxu0 0.0
        %1388 = vmatmul.mubr.f32.gmra.mxu0 %v464
        %v1389 = vpop.f32.mrf.mxu0
        %v1390 = vadd.f32 %v1294, %v1389
        %v1391 = vpop.f32.mrf.mxu0
        %1392 = vmatprep.mubr.f32.mxu0 0.0
        %1393 = vmatmul.mubr.f32.gmra.mxu0 %v467
        %v1394 = vpop.f32.mrf.mxu0
        %v1395 = vadd.f32 %v1294, %v1394
        %v1396 = vpop.f32.mrf.mxu0
        %1397 = vmatprep.mubr.f32.mxu0 0.0
        %1398 = vmatmul.mubr.f32.gmra.mxu0 %v470
        %v1399 = vpop.f32.mrf.mxu0
        %v1400 = vadd.f32 %v1294, %v1399
        %v1401 = vpop.f32.mrf.mxu0
        %1402 = vmatprep.mubr.f32.mxu0 0.0
        %1403 = vmatmul.mubr.f32.gmra.mxu0 %v473
        %v1404 = vpop.f32.mrf.mxu0
        %v1405 = vadd.f32 %v1294, %v1404
        %v1406 = vpop.f32.mrf.mxu0
        %1407 = vmatprep.mubr.f32.mxu0 0.0
        %1408 = vmatmul.mubr.f32.gmra.mxu0 %v476
        %v1409 = vpop.f32.mrf.mxu0
        %v1410 = vadd.f32 %v1294, %v1409
        %v1411 = vpop.f32.mrf.mxu0
        %1412 = vmatprep.mubr.f32.mxu0 0.0
        %1413 = vmatmul.mubr.f32.gmra.mxu0 %v479
        %v1414 = vpop.f32.mrf.mxu0
        %v1415 = vadd.f32 %v1294, %v1414
        %v1416 = vpop.f32.mrf.mxu0
        %1417 = vmatprep.mubr.f32.mxu0 0.0
        %1418 = vmatmul.mubr.f32.gmra.mxu0 %v482
        %v1419 = vpop.f32.mrf.mxu0
        %v1420 = vadd.f32 %v1294, %v1419
        %v1421 = vpop.f32.mrf.mxu0
        %1422 = vdwg.mxu0
        %v1423 = vmax.f32 %v1365, 0.0
        %v1424 = vmax.f32 %v1370, 0.0
        %v1425 = vmax.f32 %v1375, 0.0
        %v1426 = vmax.f32 %v1380, 0.0
        %v1427 = vmax.f32 %v1385, 0.0
        %v1428 = vmax.f32 %v1390, 0.0
        %v1429 = vmax.f32 %v1395, 0.0
        %v1430 = vmax.f32 %v1400, 0.0
        %v1431 = vmax.f32 %v1405, 0.0
        %v1432 = vmax.f32 %v1410, 0.0
        %v1433 = vmax.f32 %v1415, 0.0
        %v1434 = vmax.f32 %v1420, 0.0
        %v1435 = vpack.c.bf16 %v1424, %v1423
        %v1436 = vpack.c.bf16 %v1426, %v1425
        %v1437 = vpack.c.bf16 %v1428, %v1427
        %v1438 = vpack.c.bf16 %v1430, %v1429
        %v1439 = vpack.c.bf16 %v1432, %v1431
        %v1440 = vpack.c.bf16 %v1434, %v1433
        %v1442 = vsel %vm356, %v1440, 0
        %1444 = vmatprep.subr.bf16.mxu0 0
        %1445 = vmatpush1.bf16.msra.mxu0 0
        %1446 = vmatprep.subr.bf16.mxu0 0
        %1447 = vmatpush1.bf16.msra.mxu0 0
        %1448 = vmatprep.subr.bf16.mxu0 0
        %1449 = vmatpush1.bf16.msra.mxu0 %v1442
        %1450 = vmatprep.subr.bf16.mxu0 0
        %1451 = vmatpush1.bf16.msra.mxu0 %v1439
        %1452 = vmatprep.subr.bf16.mxu0 0
        %1453 = vmatpush1.bf16.msra.mxu0 %v1438
        %1454 = vmatprep.subr.bf16.mxu0 0
        %1455 = vmatpush1.bf16.msra.mxu0 %v1437
        %1456 = vmatprep.subr.bf16.mxu0 0
        %1457 = vmatpush1.bf16.msra.mxu0 %v1436
        %1458 = vmatprep.subr.bf16.mxu0 0
        %1459 = vmatpush1.bf16.msra.mxu0 %v1435
        %1460 = vmatprep.subr.bf16.mxu0 0
        %1461 = vmatpush2.bf16.msra.mxu0 0
        %1462 = vmatprep.subr.bf16.mxu0 0
        %1463 = vmatpush2.bf16.msra.mxu0 0
        %1464 = vmatprep.subr.bf16.mxu0 0
        %1465 = vmatpush2.bf16.msra.mxu0 0
        %1466 = vmatprep.subr.bf16.mxu0 0
        %1467 = vmatpush2.bf16.msra.mxu0 0
        %1468 = vmatprep.subr.bf16.mxu0 0
        %1469 = vmatpush2.bf16.msra.mxu0 0
        %1470 = vmatprep.subr.bf16.mxu0 0
        %1471 = vmatpush2.bf16.msra.mxu0 0
        %1472 = vmatprep.subr.bf16.mxu0 0
        %1473 = vmatpush2.bf16.msra.mxu0 0
        %1474 = vmatprep.subr.bf16.mxu0 0
        %1475 = vmatpush2.bf16.msra.mxu0 0
        %1476 = vmatprep.mubr.bf16.mxu0 0
        %1477 = vmatmul.mubr.bf16.gmra.mxu0 %v339
        %v1478 = vpop.f32.mrf.mxu0
        %v1479 = vadd.f32 0.0, %v1478
        %v1480 = vpop.f32.mrf.mxu0
        %v1481 = vpop.f32.mrf.mxu0
        %v1482 = vadd.f32 0.0, %v1481
        %v1483 = vpop.f32.mrf.mxu0
        %1484 = vmatprep.mubr.bf16.mxu0 0
        %1485 = vmatmul.mubr.bf16.gmra.mxu0 %v342
        %v1486 = vpop.f32.mrf.mxu0
        %v1487 = vadd.f32 0.0, %v1486
        %v1488 = vpop.f32.mrf.mxu0
        %v1489 = vpop.f32.mrf.mxu0
        %v1490 = vadd.f32 0.0, %v1489
        %v1491 = vpop.f32.mrf.mxu0
        %1492 = vmatprep.mubr.bf16.mxu0 0
        %1493 = vmatmul.mubr.bf16.gmra.mxu0 %v345
        %v1494 = vpop.f32.mrf.mxu0
        %v1495 = vadd.f32 0.0, %v1494
        %v1496 = vpop.f32.mrf.mxu0
        %v1497 = vpop.f32.mrf.mxu0
        %v1498 = vadd.f32 0.0, %v1497
        %v1499 = vpop.f32.mrf.mxu0
        %1500 = vmatprep.mubr.bf16.mxu0 0
        %1501 = vmatmul.mubr.bf16.gmra.mxu0 %v348
        %v1502 = vpop.f32.mrf.mxu0
        %v1503 = vadd.f32 0.0, %v1502
        %v1504 = vpop.f32.mrf.mxu0
        %v1505 = vpop.f32.mrf.mxu0
        %v1506 = vadd.f32 0.0, %v1505
        %v1507 = vpop.f32.mrf.mxu0
        %1508 = vmatprep.mubr.bf16.mxu0 0
        %1509 = vmatmul.mubr.bf16.gmra.mxu0 %v351
        %v1510 = vpop.f32.mrf.mxu0
        %v1511 = vadd.f32 0.0, %v1510
        %v1512 = vpop.f32.mrf.mxu0
        %v1513 = vpop.f32.mrf.mxu0
        %v1514 = vadd.f32 0.0, %v1513
        %v1515 = vpop.f32.mrf.mxu0
        %1516 = vmatprep.mubr.bf16.mxu0 0
        %1517 = vmatmul.mubr.bf16.gmra.mxu0 %v354
        %v1518 = vpop.f32.mrf.mxu0
        %v1519 = vadd.f32 0.0, %v1518
        %v1520 = vpop.f32.mrf.mxu0
        %v1521 = vpop.f32.mrf.mxu0
        %v1522 = vadd.f32 0.0, %v1521
        %v1523 = vpop.f32.mrf.mxu0
        %1524 = vdwg.mxu0
        %v1525 = vld [vmem:[%s2 + $0x90] sm:$0xff]
        %v1526 = vld [vmem:[%s2 + $0x98] sm:$0xff]
        %v1527 = vld [vmem:[%s2 + $0xa0] sm:$0xff]
        %v1528 = vld [vmem:[%s2 + $0xa8] sm:$0xff]
        %v1529 = vld [vmem:[%s2 + $0xb0] sm:$0x1]
        %v1530 = vlaneseq
        %v1531 = vshrl.u32 %v1530, 7
        %v1532 = vsub.s32 0, %v1531
        %v1533 = vrot.slane %v1529, %v1532
        %v1535 = vsel %vm724, %v1479, 0
        %v1538 = vsel %vm724, %v1482, 0
        %v1541 = vsel %vm724, %v1487, 0
        %v1544 = vsel %vm724, %v1490, 0
        %v1547 = vsel %vm724, %v1495, 0
        %v1550 = vsel %vm724, %v1498, 0
        %v1553 = vsel %vm724, %v1503, 0
        %v1556 = vsel %vm724, %v1506, 0
        %v1559 = vsel %vm724, %v1511, 0
        %v1562 = vsel %vm724, %v1514, 0
        %v1565 = vsel %vm724, %v1519, 0
        %v1568 = vsel %vm724, %v1522, 0
        %1570 = vmatprep.subr.mxu0 0.0
        %1571 = vmatpush1.msra.mxu0 0.0
        %1572 = vmatprep.subr.mxu0 0.0
        %1573 = vmatpush1.msra.mxu0 0.0
        %1574 = vmatprep.subr.mxu0 0.0
        %1575 = vmatpush1.msra.mxu0 0.0
        %1576 = vmatprep.subr.mxu0 0.0
        %1577 = vmatpush1.msra.mxu0 0.0
        %1578 = vmatprep.subr.mxu0 0.0
        %1579 = vmatpush1.msra.mxu0 0.0
        %1580 = vmatprep.subr.mxu0 0.0
        %1581 = vmatpush1.msra.mxu0 0.0
        %1582 = vmatprep.subr.mxu0 0.0
        %1583 = vmatpush1.msra.mxu0 0.0
        %1584 = vmatprep.subr.mxu0 0.0
        %1585 = vmatpush1.msra.mxu0 0.0
        %1586 = vmatprep.subr.mxu0 0.0
        %1587 = vmatpush1.msra.mxu0 0.0
        %1588 = vmatprep.subr.mxu0 0.0
        %1589 = vmatpush1.msra.mxu0 0.0
        %1590 = vmatprep.subr.mxu0 0.0
        %1591 = vmatpush1.msra.mxu0 0.0
        %1592 = vmatprep.subr.mxu0 0.0
        %1593 = vmatpush1.msra.mxu0 0.0
        %1594 = vmatprep.subr.mxu0 0.0
        %1595 = vmatpush1.msra.mxu0 %v1528
        %1596 = vmatprep.subr.mxu0 0.0
        %1597 = vmatpush1.msra.mxu0 %v1527
        %1598 = vmatprep.subr.mxu0 0.0
        %1599 = vmatpush1.msra.mxu0 %v1526
        %1600 = vmatprep.subr.mxu0 0.0
        %1601 = vmatpush1.msra.mxu0 %v1525
        %1602 = vmatprep.subr.mxu0 0.0
        %1603 = vmatpush2.msra.mxu0 0.0
        %1604 = vmatprep.subr.mxu0 0.0
        %1605 = vmatpush2.msra.mxu0 0.0
        %1606 = vmatprep.subr.mxu0 0.0
        %1607 = vmatpush2.msra.mxu0 0.0
        %1608 = vmatprep.subr.mxu0 0.0
        %1609 = vmatpush2.msra.mxu0 0.0
        %1610 = vmatprep.subr.mxu0 0.0
        %1611 = vmatpush2.msra.mxu0 0.0
        %1612 = vmatprep.subr.mxu0 0.0
        %1613 = vmatpush2.msra.mxu0 0.0
        %1614 = vmatprep.subr.mxu0 0.0
        %1615 = vmatpush2.msra.mxu0 0.0
        %1616 = vmatprep.subr.mxu0 0.0
        %1617 = vmatpush2.msra.mxu0 0.0
        %1618 = vmatprep.subr.mxu0 0.0
        %1619 = vmatpush2.msra.mxu0 0.0
        %1620 = vmatprep.subr.mxu0 0.0
        %1621 = vmatpush2.msra.mxu0 0.0
        %1622 = vmatprep.subr.mxu0 0.0
        %1623 = vmatpush2.msra.mxu0 0.0
        %1624 = vmatprep.subr.mxu0 0.0
        %1625 = vmatpush2.msra.mxu0 0.0
        %1626 = vmatprep.subr.mxu0 0.0
        %1627 = vmatpush2.msra.mxu0 0.0
        %1628 = vmatprep.subr.mxu0 0.0
        %1629 = vmatpush2.msra.mxu0 0.0
        %1630 = vmatprep.subr.mxu0 0.0
        %1631 = vmatpush2.msra.mxu0 0.0
        %1632 = vmatprep.subr.mxu0 0.0
        %1633 = vmatpush2.msra.mxu0 0.0
        %1634 = vmatprep.mubr.f32.mxu0 0.0
        %1635 = vmatmul.mubr.f32.gmra.mxu0 %v1535
        %v1636 = vpop.f32.mrf.mxu0
        %v1637 = vadd.f32 %v1533, %v1636
        %v1638 = vpop.f32.mrf.mxu0
        %1639 = vmatprep.mubr.f32.mxu0 0.0
        %1640 = vmatmul.mubr.f32.gmra.mxu0 %v1538
        %v1641 = vpop.f32.mrf.mxu0
        %v1642 = vadd.f32 %v1533, %v1641
        %v1643 = vpop.f32.mrf.mxu0
        %1644 = vmatprep.mubr.f32.mxu0 0.0
        %1645 = vmatmul.mubr.f32.gmra.mxu0 %v1541
        %v1646 = vpop.f32.mrf.mxu0
        %v1647 = vadd.f32 %v1533, %v1646
        %v1648 = vpop.f32.mrf.mxu0
        %1649 = vmatprep.mubr.f32.mxu0 0.0
        %1650 = vmatmul.mubr.f32.gmra.mxu0 %v1544
        %v1651 = vpop.f32.mrf.mxu0
        %v1652 = vadd.f32 %v1533, %v1651
        %v1653 = vpop.f32.mrf.mxu0
        %1654 = vmatprep.mubr.f32.mxu0 0.0
        %1655 = vmatmul.mubr.f32.gmra.mxu0 %v1547
        %v1656 = vpop.f32.mrf.mxu0
        %v1657 = vadd.f32 %v1533, %v1656
        %v1658 = vpop.f32.mrf.mxu0
        %1659 = vmatprep.mubr.f32.mxu0 0.0
        %1660 = vmatmul.mubr.f32.gmra.mxu0 %v1550
        %v1661 = vpop.f32.mrf.mxu0
        %v1662 = vadd.f32 %v1533, %v1661
        %v1663 = vpop.f32.mrf.mxu0
        %1664 = vmatprep.mubr.f32.mxu0 0.0
        %1665 = vmatmul.mubr.f32.gmra.mxu0 %v1553
        %v1666 = vpop.f32.mrf.mxu0
        %v1667 = vadd.f32 %v1533, %v1666
        %v1668 = vpop.f32.mrf.mxu0
        %1669 = vmatprep.mubr.f32.mxu0 0.0
        %1670 = vmatmul.mubr.f32.gmra.mxu0 %v1556
        %v1671 = vpop.f32.mrf.mxu0
        %v1672 = vadd.f32 %v1533, %v1671
        %v1673 = vpop.f32.mrf.mxu0
        %1674 = vmatprep.mubr.f32.mxu0 0.0
        %1675 = vmatmul.mubr.f32.gmra.mxu0 %v1559
        %v1676 = vpop.f32.mrf.mxu0
        %v1677 = vadd.f32 %v1533, %v1676
        %v1678 = vpop.f32.mrf.mxu0
        %1679 = vmatprep.mubr.f32.mxu0 0.0
        %1680 = vmatmul.mubr.f32.gmra.mxu0 %v1562
        %v1681 = vpop.f32.mrf.mxu0
        %v1682 = vadd.f32 %v1533, %v1681
        %v1683 = vpop.f32.mrf.mxu0
        %1684 = vmatprep.mubr.f32.mxu0 0.0
        %1685 = vmatmul.mubr.f32.gmra.mxu0 %v1565
        %v1686 = vpop.f32.mrf.mxu0
        %v1687 = vadd.f32 %v1533, %v1686
        %v1688 = vpop.f32.mrf.mxu0
        %1689 = vmatprep.mubr.f32.mxu0 0.0
        %1690 = vmatmul.mubr.f32.gmra.mxu0 %v1568
        %v1691 = vpop.f32.mrf.mxu0
        %v1692 = vadd.f32 %v1533, %v1691
        %v1693 = vpop.f32.mrf.mxu0
        %1694 = vdwg.mxu0
        %v1695 = vmax.f32 %v1637, 0.0
        %v1696 = vmax.f32 %v1642, 0.0
        %v1697 = vmax.f32 %v1647, 0.0
        %v1698 = vmax.f32 %v1652, 0.0
        %v1699 = vmax.f32 %v1657, 0.0
        %v1700 = vmax.f32 %v1662, 0.0
        %v1701 = vmax.f32 %v1667, 0.0
        %v1702 = vmax.f32 %v1672, 0.0
        %v1703 = vmax.f32 %v1677, 0.0
        %v1704 = vmax.f32 %v1682, 0.0
        %v1705 = vmax.f32 %v1687, 0.0
        %v1706 = vmax.f32 %v1692, 0.0
        %v1707 = vld [vmem:[%s2 + $0xb8] sm:$0xff]
        %v1708 = vld [vmem:[%s2 + $0xc0] sm:$0xff]
        %v1709 = vld [vmem:[%s2 + $0xc8] sm:$0xff]
        %v1710 = vld [vmem:[%s2 + $0xd0] sm:$0xff]
        %v1711 = vld [vmem:[%s2 + $0xd8] sm:$0xff]
        %v1712 = vld [vmem:[%s2 + $0xe0] sm:$0xff]
        %v1713 = vld [vmem:[%s2 + $0xe8] sm:$0xff]
        %v1714 = vld [vmem:[%s2 + $0xf0] sm:$0xff]
        %v1715 = vld [vmem:[%s2 + $0xf8] sm:$0xff]
        %v1716 = vld [vmem:[%s2 + $0x100] sm:$0xff]
        %v1717 = vld [vmem:[%s2 + $0x108] sm:$0xff]
        %v1718 = vld [vmem:[%s2 + $0x110] sm:$0xff]
        %v1719 = vld [vmem:[%s2 + $0x118] sm:$0xff]
        %v1720 = vld [vmem:[%s2 + $0x120] sm:$0xff]
        %v1721 = vld [vmem:[%s2 + $0x128] sm:$0xff]
        %v1722 = vld [vmem:[%s2 + $0x130] sm:$0x3]
        %v1724 = vsel %vm252, %v1695, 0
        %v1727 = vsel %vm252, %v1696, 0
        %v1730 = vsel %vm252, %v1697, 0
        %v1733 = vsel %vm252, %v1698, 0
        %v1736 = vsel %vm252, %v1699, 0
        %v1739 = vsel %vm252, %v1700, 0
        %v1742 = vsel %vm252, %v1701, 0
        %v1745 = vsel %vm252, %v1702, 0
        %v1748 = vsel %vm252, %v1703, 0
        %v1751 = vsel %vm252, %v1704, 0
        %v1754 = vsel %vm252, %v1705, 0
        %v1757 = vsel %vm252, %v1706, 0
        %vm1759 = vcmask 1041408
        %v1761 = vsel %vm1759, %v1722, 0
        %1763 = vmatprep.subr.mxu0 0.0
        %1764 = vmatpush1.msra.mxu0 0.0
        %1765 = vmatprep.subr.mxu0 0.0
        %1766 = vmatpush1.msra.mxu0 0.0
        %1767 = vmatprep.subr.mxu0 0.0
        %1768 = vmatpush1.msra.mxu0 0.0
        %1769 = vmatprep.subr.mxu0 0.0
        %1770 = vmatpush1.msra.mxu0 0.0
        %1771 = vmatprep.subr.mxu0 0.0
        %1772 = vmatpush1.msra.mxu0 %v1761
        %1773 = vmatprep.subr.mxu0 0.0
        %1774 = vmatpush1.msra.mxu0 %v1721
        %1775 = vmatprep.subr.mxu0 0.0
        %1776 = vmatpush1.msra.mxu0 %v1720
        %1777 = vmatprep.subr.mxu0 0.0
        %1778 = vmatpush1.msra.mxu0 %v1719
        %1779 = vmatprep.subr.mxu0 0.0
        %1780 = vmatpush1.msra.mxu0 %v1718
        %1781 = vmatprep.subr.mxu0 0.0
        %1782 = vmatpush1.msra.mxu0 %v1717
        %1783 = vmatprep.subr.mxu0 0.0
        %1784 = vmatpush1.msra.mxu0 %v1716
        %1785 = vmatprep.subr.mxu0 0.0
        %1786 = vmatpush1.msra.mxu0 %v1715
        %1787 = vmatprep.subr.mxu0 0.0
        %1788 = vmatpush1.msra.mxu0 %v1714
        %1789 = vmatprep.subr.mxu0 0.0
        %1790 = vmatpush1.msra.mxu0 %v1713
        %1791 = vmatprep.subr.mxu0 0.0
        %1792 = vmatpush1.msra.mxu0 %v1712
        %1793 = vmatprep.subr.mxu0 0.0
        %1794 = vmatpush1.msra.mxu0 %v1711
        %1795 = vmatprep.subr.mxu0 0.0
        %1796 = vmatpush2.msra.mxu0 0.0
        %1797 = vmatprep.subr.mxu0 0.0
        %1798 = vmatpush2.msra.mxu0 0.0
        %1799 = vmatprep.subr.mxu0 0.0
        %1800 = vmatpush2.msra.mxu0 0.0
        %1801 = vmatprep.subr.mxu0 0.0
        %1802 = vmatpush2.msra.mxu0 0.0
        %1803 = vmatprep.subr.mxu0 0.0
        %1804 = vmatpush2.msra.mxu0 0.0
        %1805 = vmatprep.subr.mxu0 0.0
        %1806 = vmatpush2.msra.mxu0 0.0
        %1807 = vmatprep.subr.mxu0 0.0
        %1808 = vmatpush2.msra.mxu0 0.0
        %1809 = vmatprep.subr.mxu0 0.0
        %1810 = vmatpush2.msra.mxu0 0.0
        %1811 = vmatprep.subr.mxu0 0.0
        %1812 = vmatpush2.msra.mxu0 0.0
        %1813 = vmatprep.subr.mxu0 0.0
        %1814 = vmatpush2.msra.mxu0 0.0
        %1815 = vmatprep.subr.mxu0 0.0
        %1816 = vmatpush2.msra.mxu0 0.0
        %1817 = vmatprep.subr.mxu0 0.0
        %1818 = vmatpush2.msra.mxu0 0.0
        %1819 = vmatprep.subr.mxu0 0.0
        %1820 = vmatpush2.msra.mxu0 0.0
        %1821 = vmatprep.subr.mxu0 0.0
        %1822 = vmatpush2.msra.mxu0 0.0
        %1823 = vmatprep.subr.mxu0 0.0
        %1824 = vmatpush2.msra.mxu0 0.0
        %1825 = vmatprep.subr.mxu0 0.0
        %1826 = vmatpush2.msra.mxu0 0.0
        %1827 = vmatprep.mubr.f32.mxu0 0.0
        %1828 = vmatmul.mubr.f32.gmra.mxu0 %v1724
        %v1829 = vpop.f32.mrf.mxu0
        %v1830 = vadd.f32 0.0, %v1829
        %v1831 = vpop.f32.mrf.mxu0
        %1832 = vmatprep.mubr.f32.mxu0 0.0
        %1833 = vmatmul.mubr.f32.gmra.mxu0 %v1727
        %v1834 = vpop.f32.mrf.mxu0
        %v1835 = vadd.f32 0.0, %v1834
        %v1836 = vpop.f32.mrf.mxu0
        %1837 = vmatprep.mubr.f32.mxu0 0.0
        %1838 = vmatmul.mubr.f32.gmra.mxu0 %v1730
        %v1839 = vpop.f32.mrf.mxu0
        %v1840 = vadd.f32 0.0, %v1839
        %v1841 = vpop.f32.mrf.mxu0
        %1842 = vmatprep.mubr.f32.mxu0 0.0
        %1843 = vmatmul.mubr.f32.gmra.mxu0 %v1733
        %v1844 = vpop.f32.mrf.mxu0
        %v1845 = vadd.f32 0.0, %v1844
        %v1846 = vpop.f32.mrf.mxu0
        %1847 = vmatprep.mubr.f32.mxu0 0.0
        %1848 = vmatmul.mubr.f32.gmra.mxu0 %v1736
        %v1849 = vpop.f32.mrf.mxu0
        %v1850 = vadd.f32 0.0, %v1849
        %v1851 = vpop.f32.mrf.mxu0
        %1852 = vmatprep.mubr.f32.mxu0 0.0
        %1853 = vmatmul.mubr.f32.gmra.mxu0 %v1739
        %v1854 = vpop.f32.mrf.mxu0
        %v1855 = vadd.f32 0.0, %v1854
        %v1856 = vpop.f32.mrf.mxu0
        %1857 = vmatprep.mubr.f32.mxu0 0.0
        %1858 = vmatmul.mubr.f32.gmra.mxu0 %v1742
        %v1859 = vpop.f32.mrf.mxu0
        %v1860 = vadd.f32 0.0, %v1859
        %v1861 = vpop.f32.mrf.mxu0
        %1862 = vmatprep.mubr.f32.mxu0 0.0
        %1863 = vmatmul.mubr.f32.gmra.mxu0 %v1745
        %v1864 = vpop.f32.mrf.mxu0
        %v1865 = vadd.f32 0.0, %v1864
        %v1866 = vpop.f32.mrf.mxu0
        %1867 = vmatprep.mubr.f32.mxu0 0.0
        %1868 = vmatmul.mubr.f32.gmra.mxu0 %v1748
        %v1869 = vpop.f32.mrf.mxu0
        %v1870 = vadd.f32 0.0, %v1869
        %v1871 = vpop.f32.mrf.mxu0
        %1872 = vmatprep.mubr.f32.mxu0 0.0
        %1873 = vmatmul.mubr.f32.gmra.mxu0 %v1751
        %v1874 = vpop.f32.mrf.mxu0
        %v1875 = vadd.f32 0.0, %v1874
        %v1876 = vpop.f32.mrf.mxu0
        %1877 = vmatprep.mubr.f32.mxu0 0.0
        %1878 = vmatmul.mubr.f32.gmra.mxu0 %v1754
        %v1879 = vpop.f32.mrf.mxu0
        %v1880 = vadd.f32 0.0, %v1879
        %v1881 = vpop.f32.mrf.mxu0
        %1882 = vmatprep.mubr.f32.mxu0 0.0
        %1883 = vmatmul.mubr.f32.gmra.mxu0 %v1757
        %v1884 = vpop.f32.mrf.mxu0
        %v1885 = vadd.f32 0.0, %v1884
        %v1886 = vpop.f32.mrf.mxu0
        %1887 = vdwg.mxu0
        %v1889 = vsel %vm724, %v1423, 0
        %v1892 = vsel %vm724, %v1424, 0
        %v1895 = vsel %vm724, %v1425, 0
        %v1898 = vsel %vm724, %v1426, 0
        %v1901 = vsel %vm724, %v1427, 0
        %v1904 = vsel %vm724, %v1428, 0
        %v1907 = vsel %vm724, %v1429, 0
        %v1910 = vsel %vm724, %v1430, 0
        %v1913 = vsel %vm724, %v1431, 0
        %v1916 = vsel %vm724, %v1432, 0
        %v1919 = vsel %vm724, %v1433, 0
        %v1922 = vsel %vm724, %v1434, 0
        %1924 = vmatprep.subr.mxu0 0.0
        %1925 = vmatpush1.msra.mxu0 0.0
        %1926 = vmatprep.subr.mxu0 0.0
        %1927 = vmatpush1.msra.mxu0 0.0
        %1928 = vmatprep.subr.mxu0 0.0
        %1929 = vmatpush1.msra.mxu0 0.0
        %1930 = vmatprep.subr.mxu0 0.0
        %1931 = vmatpush1.msra.mxu0 0.0
        %1932 = vmatprep.subr.mxu0 0.0
        %1933 = vmatpush1.msra.mxu0 0.0
        %1934 = vmatprep.subr.mxu0 0.0
        %1935 = vmatpush1.msra.mxu0 0.0
        %1936 = vmatprep.subr.mxu0 0.0
        %1937 = vmatpush1.msra.mxu0 0.0
        %1938 = vmatprep.subr.mxu0 0.0
        %1939 = vmatpush1.msra.mxu0 0.0
        %1940 = vmatprep.subr.mxu0 0.0
        %1941 = vmatpush1.msra.mxu0 0.0
        %1942 = vmatprep.subr.mxu0 0.0
        %1943 = vmatpush1.msra.mxu0 0.0
        %1944 = vmatprep.subr.mxu0 0.0
        %1945 = vmatpush1.msra.mxu0 0.0
        %1946 = vmatprep.subr.mxu0 0.0
        %1947 = vmatpush1.msra.mxu0 0.0
        %1948 = vmatprep.subr.mxu0 0.0
        %1949 = vmatpush1.msra.mxu0 %v1710
        %1950 = vmatprep.subr.mxu0 0.0
        %1951 = vmatpush1.msra.mxu0 %v1709
        %1952 = vmatprep.subr.mxu0 0.0
        %1953 = vmatpush1.msra.mxu0 %v1708
        %1954 = vmatprep.subr.mxu0 0.0
        %1955 = vmatpush1.msra.mxu0 %v1707
        %1956 = vmatprep.subr.mxu0 0.0
        %1957 = vmatpush2.msra.mxu0 0.0
        %1958 = vmatprep.subr.mxu0 0.0
        %1959 = vmatpush2.msra.mxu0 0.0
        %1960 = vmatprep.subr.mxu0 0.0
        %1961 = vmatpush2.msra.mxu0 0.0
        %1962 = vmatprep.subr.mxu0 0.0
        %1963 = vmatpush2.msra.mxu0 0.0
        %1964 = vmatprep.subr.mxu0 0.0
        %1965 = vmatpush2.msra.mxu0 0.0
        %1966 = vmatprep.subr.mxu0 0.0
        %1967 = vmatpush2.msra.mxu0 0.0
        %1968 = vmatprep.subr.mxu0 0.0
        %1969 = vmatpush2.msra.mxu0 0.0
        %1970 = vmatprep.subr.mxu0 0.0
        %1971 = vmatpush2.msra.mxu0 0.0
        %1972 = vmatprep.subr.mxu0 0.0
        %1973 = vmatpush2.msra.mxu0 0.0
        %1974 = vmatprep.subr.mxu0 0.0
        %1975 = vmatpush2.msra.mxu0 0.0
        %1976 = vmatprep.subr.mxu0 0.0
        %1977 = vmatpush2.msra.mxu0 0.0
        %1978 = vmatprep.subr.mxu0 0.0
        %1979 = vmatpush2.msra.mxu0 0.0
        %1980 = vmatprep.subr.mxu0 0.0
        %1981 = vmatpush2.msra.mxu0 0.0
        %1982 = vmatprep.subr.mxu0 0.0
        %1983 = vmatpush2.msra.mxu0 0.0
        %1984 = vmatprep.subr.mxu0 0.0
        %1985 = vmatpush2.msra.mxu0 0.0
        %1986 = vmatprep.subr.mxu0 0.0
        %1987 = vmatpush2.msra.mxu0 0.0
        %1988 = vmatprep.mubr.f32.mxu0 0.0
        %1989 = vmatmul.mubr.f32.gmra.mxu0 %v1889
        %v1990 = vpop.f32.mrf.mxu0
        %v1991 = vadd.f32 %v1830, %v1990
        %v1992 = vpop.f32.mrf.mxu0
        %1993 = vmatprep.mubr.f32.mxu0 0.0
        %1994 = vmatmul.mubr.f32.gmra.mxu0 %v1892
        %v1995 = vpop.f32.mrf.mxu0
        %v1996 = vadd.f32 %v1835, %v1995
        %v1997 = vpop.f32.mrf.mxu0
        %1998 = vmatprep.mubr.f32.mxu0 0.0
        %1999 = vmatmul.mubr.f32.gmra.mxu0 %v1895
        %v2000 = vpop.f32.mrf.mxu0
        %v2001 = vadd.f32 %v1840, %v2000
        %v2002 = vpop.f32.mrf.mxu0
        %2003 = vmatprep.mubr.f32.mxu0 0.0
        %2004 = vmatmul.mubr.f32.gmra.mxu0 %v1898
        %v2005 = vpop.f32.mrf.mxu0
        %v2006 = vadd.f32 %v1845, %v2005
        %v2007 = vpop.f32.mrf.mxu0
        %2008 = vmatprep.mubr.f32.mxu0 0.0
        %2009 = vmatmul.mubr.f32.gmra.mxu0 %v1901
        %v2010 = vpop.f32.mrf.mxu0
        %v2011 = vadd.f32 %v1850, %v2010
        %v2012 = vpop.f32.mrf.mxu0
        %2013 = vmatprep.mubr.f32.mxu0 0.0
        %2014 = vmatmul.mubr.f32.gmra.mxu0 %v1904
        %v2015 = vpop.f32.mrf.mxu0
        %v2016 = vadd.f32 %v1855, %v2015
        %v2017 = vpop.f32.mrf.mxu0
        %2018 = vmatprep.mubr.f32.mxu0 0.0
        %2019 = vmatmul.mubr.f32.gmra.mxu0 %v1907
        %v2020 = vpop.f32.mrf.mxu0
        %v2021 = vadd.f32 %v1860, %v2020
        %v2022 = vpop.f32.mrf.mxu0
        %2023 = vmatprep.mubr.f32.mxu0 0.0
        %2024 = vmatmul.mubr.f32.gmra.mxu0 %v1910
        %v2025 = vpop.f32.mrf.mxu0
        %v2026 = vadd.f32 %v1865, %v2025
        %v2027 = vpop.f32.mrf.mxu0
        %2028 = vmatprep.mubr.f32.mxu0 0.0
        %2029 = vmatmul.mubr.f32.gmra.mxu0 %v1913
        %v2030 = vpop.f32.mrf.mxu0
        %v2031 = vadd.f32 %v1870, %v2030
        %v2032 = vpop.f32.mrf.mxu0
        %2033 = vmatprep.mubr.f32.mxu0 0.0
        %2034 = vmatmul.mubr.f32.gmra.mxu0 %v1916
        %v2035 = vpop.f32.mrf.mxu0
        %v2036 = vadd.f32 %v1875, %v2035
        %v2037 = vpop.f32.mrf.mxu0
        %2038 = vmatprep.mubr.f32.mxu0 0.0
        %2039 = vmatmul.mubr.f32.gmra.mxu0 %v1919
        %v2040 = vpop.f32.mrf.mxu0
        %v2041 = vadd.f32 %v1880, %v2040
        %v2042 = vpop.f32.mrf.mxu0
        %2043 = vmatprep.mubr.f32.mxu0 0.0
        %2044 = vmatmul.mubr.f32.gmra.mxu0 %v1922
        %v2045 = vpop.f32.mrf.mxu0
        %v2046 = vadd.f32 %v1885, %v2045
        %v2047 = vpop.f32.mrf.mxu0
        %2048 = vdwg.mxu0
        %v2049 = vld [vmem:[%s2 + $0x138] sm:$0x1]
        %v2050 = vlaneseq
        %v2051 = vshrl.u32 %v2050, 7
        %v2052 = vsub.s32 0, %v2051
        %v2053 = vrot.slane %v2049, %v2052
        %v2054 = vadd.f32 %v1991, %v2053
        %v2055 = vadd.f32 %v1996, %v2053
        %v2056 = vadd.f32 %v2001, %v2053
        %v2057 = vadd.f32 %v2006, %v2053
        %v2058 = vadd.f32 %v2011, %v2053
        %v2059 = vadd.f32 %v2016, %v2053
        %v2060 = vadd.f32 %v2021, %v2053
        %v2061 = vadd.f32 %v2026, %v2053
        %v2062 = vadd.f32 %v2031, %v2053
        %v2063 = vadd.f32 %v2036, %v2053
        %v2064 = vadd.f32 %v2041, %v2053
        %v2065 = vadd.f32 %v2046, %v2053
        %v2066 = vsel %vm252, %v2054, -inf
        %2067 = vmax.xlane.f32.xlu0 %v2066
        %v2068 = vpop.xlane.xlu0 %2067
        %v2069 = vsel %vm252, %v2055, -inf
        %2070 = vmax.xlane.f32.xlu0 %v2069
        %v2071 = vpop.xlane.xlu0 %2070
        %v2072 = vsel %vm252, %v2056, -inf
        %2073 = vmax.xlane.f32.xlu0 %v2072
        %v2074 = vpop.xlane.xlu0 %2073
        %v2075 = vsel %vm252, %v2057, -inf
        %2076 = vmax.xlane.f32.xlu0 %v2075
        %v2077 = vpop.xlane.xlu0 %2076
        %v2078 = vsel %vm252, %v2058, -inf
        %2079 = vmax.xlane.f32.xlu0 %v2078
        %v2080 = vpop.xlane.xlu0 %2079
        %v2081 = vsel %vm252, %v2059, -inf
        %2082 = vmax.xlane.f32.xlu0 %v2081
        %v2083 = vpop.xlane.xlu0 %2082
        %v2084 = vsel %vm252, %v2060, -inf
        %2085 = vmax.xlane.f32.xlu0 %v2084
        %v2086 = vpop.xlane.xlu0 %2085
        %v2087 = vsel %vm252, %v2061, -inf
        %2088 = vmax.xlane.f32.xlu0 %v2087
        %v2089 = vpop.xlane.xlu0 %2088
        %v2090 = vsel %vm252, %v2062, -inf
        %2091 = vmax.xlane.f32.xlu0 %v2090
        %v2092 = vpop.xlane.xlu0 %2091
        %v2093 = vsel %vm252, %v2063, -inf
        %2094 = vmax.xlane.f32.xlu0 %v2093
        %v2095 = vpop.xlane.xlu0 %2094
        %v2096 = vsel %vm252, %v2064, -inf
        %2097 = vmax.xlane.f32.xlu0 %v2096
        %v2098 = vpop.xlane.xlu0 %2097
        %v2099 = vsel %vm286, %v2065, -inf
        %2100 = vmax.xlane.f32.xlu0 %v2099
        %v2101 = vpop.xlane.xlu0 %2100
        %v2102 = vsub.f32 %v2054, %v2068
        %v2103 = vsub.f32 %v2055, %v2071
        %v2104 = vsub.f32 %v2056, %v2074
        %v2105 = vsub.f32 %v2057, %v2077
        %v2106 = vsub.f32 %v2058, %v2080
        %v2107 = vsub.f32 %v2059, %v2083
        %v2108 = vsub.f32 %v2060, %v2086
        %v2109 = vsub.f32 %v2061, %v2089
        %v2110 = vsub.f32 %v2062, %v2092
        %v2111 = vsub.f32 %v2063, %v2095
        %v2112 = vsub.f32 %v2064, %v2098
        %v2113 = vsub.f32 %v2065, %v2101
        %v2114 = vmul.f32 %v2102, 1.442695
        %v2115 = vpow.pop %v2114
        %v2116 = vmul.f32 %v2103, 1.442695
        %v2117 = vpow.pop %v2116
        %v2118 = vmul.f32 %v2104, 1.442695
        %v2119 = vpow.pop %v2118
        %v2120 = vmul.f32 %v2105, 1.442695
        %v2121 = vpow.pop %v2120
        %v2122 = vmul.f32 %v2106, 1.442695
        %v2123 = vpow.pop %v2122
        %v2124 = vmul.f32 %v2107, 1.442695
        %v2125 = vpow.pop %v2124
        %v2126 = vmul.f32 %v2108, 1.442695
        %v2127 = vpow.pop %v2126
        %v2128 = vmul.f32 %v2109, 1.442695
        %v2129 = vpow.pop %v2128
        %v2130 = vmul.f32 %v2110, 1.442695
        %v2131 = vpow.pop %v2130
        %v2132 = vmul.f32 %v2111, 1.442695
        %v2133 = vpow.pop %v2132
        %v2134 = vmul.f32 %v2112, 1.442695
        %v2135 = vpow.pop %v2134
        %v2136 = vmul.f32 %v2113, 1.442695
        %v2137 = vpow.pop %v2136
        %v2138 = vsel %vm252, %v2115, 0.0
        %2139 = vadd.xlane.f32.xlu0 %v2138
        %v2140 = vpop.xlane.xlu0 %2139
        %v2141 = vsel %vm252, %v2117, 0.0
        %2142 = vadd.xlane.f32.xlu0 %v2141
        %v2143 = vpop.xlane.xlu0 %2142
        %v2144 = vsel %vm252, %v2119, 0.0
        %2145 = vadd.xlane.f32.xlu0 %v2144
        %v2146 = vpop.xlane.xlu0 %2145
        %v2147 = vsel %vm252, %v2121, 0.0
        %2148 = vadd.xlane.f32.xlu0 %v2147
        %v2149 = vpop.xlane.xlu0 %2148
        %v2150 = vsel %vm252, %v2123, 0.0
        %2151 = vadd.xlane.f32.xlu0 %v2150
        %v2152 = vpop.xlane.xlu0 %2151
        %v2153 = vsel %vm252, %v2125, 0.0
        %2154 = vadd.xlane.f32.xlu0 %v2153
        %v2155 = vpop.xlane.xlu0 %2154
        %v2156 = vsel %vm252, %v2127, 0.0
        %2157 = vadd.xlane.f32.xlu0 %v2156
        %v2158 = vpop.xlane.xlu0 %2157
        %v2159 = vsel %vm252, %v2129, 0.0
        %2160 = vadd.xlane.f32.xlu0 %v2159
        %v2161 = vpop.xlane.xlu0 %2160
        %v2162 = vsel %vm252, %v2131, 0.0
        %2163 = vadd.xlane.f32.xlu0 %v2162
        %v2164 = vpop.xlane.xlu0 %2163
        %v2165 = vsel %vm252, %v2133, 0.0
        %2166 = vadd.xlane.f32.xlu0 %v2165
        %v2167 = vpop.xlane.xlu0 %2166
        %v2168 = vsel %vm252, %v2135, 0.0
        %2169 = vadd.xlane.f32.xlu0 %v2168
        %v2170 = vpop.xlane.xlu0 %2169
        %v2171 = vsel %vm286, %v2137, 0.0
        %2172 = vadd.xlane.f32.xlu0 %v2171
        %v2173 = vpop.xlane.xlu0 %2172
        %v2174 = vrcp.pop %v2140
        %v2175 = vrcp.pop %v2143
        %v2176 = vrcp.pop %v2146
        %v2177 = vrcp.pop %v2149
        %v2178 = vrcp.pop %v2152
        %v2179 = vrcp.pop %v2155
        %v2180 = vrcp.pop %v2158
        %v2181 = vrcp.pop %v2161
        %v2182 = vrcp.pop %v2164
        %v2183 = vrcp.pop %v2167
        %v2184 = vrcp.pop %v2170
        %v2185 = vrcp.pop %v2173
        %v2186 = vmul.f32 %v2115, %v2174
        %v2187 = vmul.f32 %v2117, %v2175
        %v2188 = vmul.f32 %v2119, %v2176
        %v2189 = vmul.f32 %v2121, %v2177
        %v2190 = vmul.f32 %v2123, %v2178
        %v2191 = vmul.f32 %v2125, %v2179
        %v2192 = vmul.f32 %v2127, %v2180
        %v2193 = vmul.f32 %v2129, %v2181
        %v2194 = vmul.f32 %v2131, %v2182
        %v2195 = vmul.f32 %v2133, %v2183
        %v2196 = vmul.f32 %v2135, %v2184
        %v2197 = vmul.f32 %v2137, %v2185
        %2198 = vxpose.xlu0.b32.start [1/16] %v2186, 128
        %2199 = vxpose.xlu0.b32.cont [2/16] %v2187, 128
        %2200 = vxpose.xlu0.b32.cont [3/16] %v2188, 128
        %2201 = vxpose.xlu0.b32.cont [4/16] %v2189, 128
        %2202 = vxpose.xlu0.b32.cont [5/16] %v2190, 128
        %2203 = vxpose.xlu0.b32.cont [6/16] %v2191, 128
        %2204 = vxpose.xlu0.b32.cont [7/16] %v2192, 128
        %2205 = vxpose.xlu0.b32.cont [8/16] %v2193, 128
        %2206 = vxpose.xlu0.b32.cont [9/16] %v2194, 128
        %2207 = vxpose.xlu0.b32.cont [10/16] %v2195, 128
        %2208 = vxpose.xlu0.b32.cont [11/16] %v2196, 128
        %2209 = vxpose.xlu0.b32.cont [12/16] %v2197, 128
        %2210 = vxpose.xlu0.b32.cont [13/16] 0.0, 128
        %2211 = vxpose.xlu0.b32.cont [14/16] 0.0, 128
        %2212 = vxpose.xlu0.b32.cont [15/16] 0.0, 128
        %2213 = vxpose.xlu0.b32.end [16/16] 0.0, 128
        %v2214 = vpop.trf.xlu0
        %v2215 = vpop.trf.xlu0
        %v2216 = vpop.trf.xlu0
        %v2217 = vpop.trf.xlu0
        %v2218 = vpop.trf.xlu0
        %v2219 = vpop.trf.xlu0
        %v2220 = vpop.trf.xlu0
        %v2221 = vpop.trf.xlu0
        %v2222 = vpop.trf.xlu0
        %v2223 = vpop.trf.xlu0
        %v2224 = vpop.trf.xlu0
        %v2225 = vpop.trf.xlu0
        %v2226 = vpop.trf.xlu0
        %v2227 = vpop.trf.xlu0
        %v2228 = vpop.trf.xlu0
        %v2229 = vpop.trf.xlu0
        %v2230 = vpack.c.bf16 %v2215, %v2214
        %v2231 = vpack.c.bf16 %v2217, %v2216
        %v2232 = vpack.c.bf16 %v2219, %v2218
        %v2233 = vpack.c.bf16 %v2221, %v2220
        %v2234 = vpack.c.bf16 %v2223, %v2222
        %v2235 = vpack.c.bf16 %v2225, %v2224
        %v2236 = vpack.c.bf16 %v2187, %v2186
        %v2237 = vpack.c.bf16 %v2189, %v2188
        %v2238 = vpack.c.bf16 %v2191, %v2190
        %v2239 = vpack.c.bf16 %v2193, %v2192
        %v2240 = vpack.c.bf16 %v2195, %v2194
        %v2241 = vpack.c.bf16 %v2197, %v2196
        %v2242 = vpack.c.bf16 %v1246, %v1245
        %v2243 = vpack.c.bf16 %v1248, %v1247
        %v2244 = vpack.c.bf16 %v1250, %v1249
        %v2245 = vpack.c.bf16 %v1252, %v1251
        %v2246 = vpack.c.bf16 %v1254, %v1253
        %v2247 = vpack.c.bf16 %v1256, %v1255
        %v2249 = vsel %vm252, %v2230, 0
        %v2252 = vsel %vm252, %v2231, 0
        %v2255 = vsel %vm252, %v2232, 0
        %v2258 = vsel %vm252, %v2233, 0
        %v2261 = vsel %vm252, %v2234, 0
        %v2264 = vsel %vm252, %v2235, 0
        %v2267 = vsel %vm356, %v2247, 0
        %2269 = vmatprep.subr.bf16.mxu0 0
        %2270 = vmatpush1.bf16.msra.mxu0 0
        %2271 = vmatprep.subr.bf16.mxu0 0
        %2272 = vmatpush1.bf16.msra.mxu0 0
        %2273 = vmatprep.subr.bf16.mxu0 0
        %2274 = vmatpush1.bf16.msra.mxu0 %v2267
        %2275 = vmatprep.subr.bf16.mxu0 0
        %2276 = vmatpush1.bf16.msra.mxu0 %v2246
        %2277 = vmatprep.subr.bf16.mxu0 0
        %2278 = vmatpush1.bf16.msra.mxu0 %v2245
        %2279 = vmatprep.subr.bf16.mxu0 0
        %2280 = vmatpush1.bf16.msra.mxu0 %v2244
        %2281 = vmatprep.subr.bf16.mxu0 0
        %2282 = vmatpush1.bf16.msra.mxu0 %v2243
        %2283 = vmatprep.subr.bf16.mxu0 0
        %2284 = vmatpush1.bf16.msra.mxu0 %v2242
        %2285 = vmatprep.subr.bf16.mxu0 0
        %2286 = vmatpush2.bf16.msra.mxu0 0
        %2287 = vmatprep.subr.bf16.mxu0 0
        %2288 = vmatpush2.bf16.msra.mxu0 0
        %2289 = vmatprep.subr.bf16.mxu0 0
        %2290 = vmatpush2.bf16.msra.mxu0 0
        %2291 = vmatprep.subr.bf16.mxu0 0
        %2292 = vmatpush2.bf16.msra.mxu0 0
        %2293 = vmatprep.subr.bf16.mxu0 0
        %2294 = vmatpush2.bf16.msra.mxu0 0
        %2295 = vmatprep.subr.bf16.mxu0 0
        %2296 = vmatpush2.bf16.msra.mxu0 0
        %2297 = vmatprep.subr.bf16.mxu0 0
        %2298 = vmatpush2.bf16.msra.mxu0 0
        %2299 = vmatprep.subr.bf16.mxu0 0
        %2300 = vmatpush2.bf16.msra.mxu0 0
        %2301 = vmatprep.mubr.bf16.mxu0 0
        %2302 = vmatmul.mubr.bf16.gmra.mxu0 %v2249
        %v2303 = vpop.f32.mrf.mxu0
        %v2304 = vadd.f32 0.0, %v2303
        %v2305 = vpop.f32.mrf.mxu0
        %v2306 = vpop.f32.mrf.mxu0
        %v2307 = vadd.f32 0.0, %v2306
        %v2308 = vpop.f32.mrf.mxu0
        %2309 = vmatprep.mubr.bf16.mxu0 0
        %2310 = vmatmul.mubr.bf16.gmra.mxu0 %v2252
        %v2311 = vpop.f32.mrf.mxu0
        %v2312 = vadd.f32 0.0, %v2311
        %v2313 = vpop.f32.mrf.mxu0
        %v2314 = vpop.f32.mrf.mxu0
        %v2315 = vadd.f32 0.0, %v2314
        %v2316 = vpop.f32.mrf.mxu0
        %2317 = vmatprep.mubr.bf16.mxu0 0
        %2318 = vmatmul.mubr.bf16.gmra.mxu0 %v2255
        %v2319 = vpop.f32.mrf.mxu0
        %v2320 = vadd.f32 0.0, %v2319
        %v2321 = vpop.f32.mrf.mxu0
        %v2322 = vpop.f32.mrf.mxu0
        %v2323 = vadd.f32 0.0, %v2322
        %v2324 = vpop.f32.mrf.mxu0
        %2325 = vmatprep.mubr.bf16.mxu0 0
        %2326 = vmatmul.mubr.bf16.gmra.mxu0 %v2258
        %v2327 = vpop.f32.mrf.mxu0
        %v2328 = vadd.f32 0.0, %v2327
        %v2329 = vpop.f32.mrf.mxu0
        %v2330 = vpop.f32.mrf.mxu0
        %v2331 = vadd.f32 0.0, %v2330
        %v2332 = vpop.f32.mrf.mxu0
        %2333 = vmatprep.mubr.bf16.mxu0 0
        %2334 = vmatmul.mubr.bf16.gmra.mxu0 %v2261
        %v2335 = vpop.f32.mrf.mxu0
        %v2336 = vadd.f32 0.0, %v2335
        %v2337 = vpop.f32.mrf.mxu0
        %v2338 = vpop.f32.mrf.mxu0
        %v2339 = vadd.f32 0.0, %v2338
        %v2340 = vpop.f32.mrf.mxu0
        %2341 = vmatprep.mubr.bf16.mxu0 0
        %2342 = vmatmul.mubr.bf16.gmra.mxu0 %v2264
        %v2343 = vpop.f32.mrf.mxu0
        %v2344 = vadd.f32 0.0, %v2343
        %v2345 = vpop.f32.mrf.mxu0
        %v2346 = vpop.f32.mrf.mxu0
        %v2347 = vadd.f32 0.0, %v2346
        %v2348 = vpop.f32.mrf.mxu0
        %2349 = vdwg.mxu0
        %v2350 = vpack.c.bf16 %v202, %v201
        %v2351 = vpack.c.bf16 %v204, %v203
        %v2352 = vpack.c.bf16 %v206, %v205
        %v2353 = vpack.c.bf16 %v208, %v207
        %v2354 = vpack.c.bf16 %v210, %v209
        %v2355 = vpack.c.bf16 %v212, %v211
        %v2357 = vsel %vm356, %v2355, 0
        %2359 = vmatprep.subr.bf16.mxu0 0
        %2360 = vmatpush1.bf16.msra.mxu0 0
        %2361 = vmatprep.subr.bf16.mxu0 0
        %2362 = vmatpush1.bf16.msra.mxu0 0
        %2363 = vmatprep.subr.bf16.mxu0 0
        %2364 = vmatpush1.bf16.msra.mxu0 %v2357
        %2365 = vmatprep.subr.bf16.mxu0 0
        %2366 = vmatpush1.bf16.msra.mxu0 %v2354
        %2367 = vmatprep.subr.bf16.mxu0 0
        %2368 = vmatpush1.bf16.msra.mxu0 %v2353
        %2369 = vmatprep.subr.bf16.mxu0 0
        %2370 = vmatpush1.bf16.msra.mxu0 %v2352
        %2371 = vmatprep.subr.bf16.mxu0 0
        %2372 = vmatpush1.bf16.msra.mxu0 %v2351
        %2373 = vmatprep.subr.bf16.mxu0 0
        %2374 = vmatpush1.bf16.msra.mxu0 %v2350
        %2375 = vmatprep.subr.bf16.mxu0 0
        %2376 = vmatpush2.bf16.msra.mxu0 0
        %2377 = vmatprep.subr.bf16.mxu0 0
        %2378 = vmatpush2.bf16.msra.mxu0 0
        %2379 = vmatprep.subr.bf16.mxu0 0
        %2380 = vmatpush2.bf16.msra.mxu0 0
        %2381 = vmatprep.subr.bf16.mxu0 0
        %2382 = vmatpush2.bf16.msra.mxu0 0
        %2383 = vmatprep.subr.bf16.mxu0 0
        %2384 = vmatpush2.bf16.msra.mxu0 0
        %2385 = vmatprep.subr.bf16.mxu0 0
        %2386 = vmatpush2.bf16.msra.mxu0 0
        %2387 = vmatprep.subr.bf16.mxu0 0
        %2388 = vmatpush2.bf16.msra.mxu0 0
        %2389 = vmatprep.subr.bf16.mxu0 0
        %2390 = vmatpush2.bf16.msra.mxu0 0
        %2391 = vmatprep.mubr.bf16.mxu0 0
        %2392 = vmatmul.mubr.bf16.gmra.mxu0 %v2249
        %v2393 = vpop.f32.mrf.mxu0
        %v2394 = vadd.f32 0.0, %v2393
        %v2395 = vpop.f32.mrf.mxu0
        %v2396 = vpop.f32.mrf.mxu0
        %v2397 = vadd.f32 0.0, %v2396
        %v2398 = vpop.f32.mrf.mxu0
        %2399 = vmatprep.mubr.bf16.mxu0 0
        %2400 = vmatmul.mubr.bf16.gmra.mxu0 %v2252
        %v2401 = vpop.f32.mrf.mxu0
        %v2402 = vadd.f32 0.0, %v2401
        %v2403 = vpop.f32.mrf.mxu0
        %v2404 = vpop.f32.mrf.mxu0
        %v2405 = vadd.f32 0.0, %v2404
        %v2406 = vpop.f32.mrf.mxu0
        %2407 = vmatprep.mubr.bf16.mxu0 0
        %2408 = vmatmul.mubr.bf16.gmra.mxu0 %v2255
        %v2409 = vpop.f32.mrf.mxu0
        %v2410 = vadd.f32 0.0, %v2409
        %v2411 = vpop.f32.mrf.mxu0
        %v2412 = vpop.f32.mrf.mxu0
        %v2413 = vadd.f32 0.0, %v2412
        %v2414 = vpop.f32.mrf.mxu0
        %2415 = vmatprep.mubr.bf16.mxu0 0
        %2416 = vmatmul.mubr.bf16.gmra.mxu0 %v2258
        %v2417 = vpop.f32.mrf.mxu0
        %v2418 = vadd.f32 0.0, %v2417
        %v2419 = vpop.f32.mrf.mxu0
        %v2420 = vpop.f32.mrf.mxu0
        %v2421 = vadd.f32 0.0, %v2420
        %v2422 = vpop.f32.mrf.mxu0
        %2423 = vmatprep.mubr.bf16.mxu0 0
        %2424 = vmatmul.mubr.bf16.gmra.mxu0 %v2261
        %v2425 = vpop.f32.mrf.mxu0
        %v2426 = vadd.f32 0.0, %v2425
        %v2427 = vpop.f32.mrf.mxu0
        %v2428 = vpop.f32.mrf.mxu0
        %v2429 = vadd.f32 0.0, %v2428
        %v2430 = vpop.f32.mrf.mxu0
        %2431 = vmatprep.mubr.bf16.mxu0 0
        %2432 = vmatmul.mubr.bf16.gmra.mxu0 %v2264
        %v2433 = vpop.f32.mrf.mxu0
        %v2434 = vadd.f32 0.0, %v2433
        %v2435 = vpop.f32.mrf.mxu0
        %v2436 = vpop.f32.mrf.mxu0
        %v2437 = vadd.f32 0.0, %v2436
        %v2438 = vpop.f32.mrf.mxu0
        %2439 = vdwg.mxu0
        %v2440 = vpack.c.bf16 %v2397, %v2394
        %v2441 = vpack.c.bf16 %v2405, %v2402
        %v2442 = vpack.c.bf16 %v2413, %v2410
        %v2443 = vpack.c.bf16 %v2421, %v2418
        %v2444 = vpack.c.bf16 %v2429, %v2426
        %v2445 = vpack.c.bf16 %v2437, %v2434
        %v2447 = vsel %vm252, %v2440, 0
        %v2450 = vsel %vm252, %v2441, 0
        %v2453 = vsel %vm252, %v2442, 0
        %v2456 = vsel %vm252, %v2443, 0
        %v2459 = vsel %vm252, %v2444, 0
        %v2462 = vsel %vm252, %v2445, 0
        %v2465 = vsel %vm356, %v2241, 0
        %2467 = vmatprep.subr.bf16.mxu0 0
        %2468 = vmatpush1.bf16.msra.mxu0 0
        %2469 = vmatprep.subr.bf16.mxu0 0
        %2470 = vmatpush1.bf16.msra.mxu0 0
        %2471 = vmatprep.subr.bf16.mxu0 0
        %2472 = vmatpush1.bf16.msra.mxu0 %v2465
        %2473 = vmatprep.subr.bf16.mxu0 0
        %2474 = vmatpush1.bf16.msra.mxu0 %v2240
        %2475 = vmatprep.subr.bf16.mxu0 0
        %2476 = vmatpush1.bf16.msra.mxu0 %v2239
        %2477 = vmatprep.subr.bf16.mxu0 0
        %2478 = vmatpush1.bf16.msra.mxu0 %v2238
        %2479 = vmatprep.subr.bf16.mxu0 0
        %2480 = vmatpush1.bf16.msra.mxu0 %v2237
        %2481 = vmatprep.subr.bf16.mxu0 0
        %2482 = vmatpush1.bf16.msra.mxu0 %v2236
        %2483 = vmatprep.subr.bf16.mxu0 0
        %2484 = vmatpush2.bf16.msra.mxu0 0
        %2485 = vmatprep.subr.bf16.mxu0 0
        %2486 = vmatpush2.bf16.msra.mxu0 0
        %2487 = vmatprep.subr.bf16.mxu0 0
        %2488 = vmatpush2.bf16.msra.mxu0 0
        %2489 = vmatprep.subr.bf16.mxu0 0
        %2490 = vmatpush2.bf16.msra.mxu0 0
        %2491 = vmatprep.subr.bf16.mxu0 0
        %2492 = vmatpush2.bf16.msra.mxu0 0
        %2493 = vmatprep.subr.bf16.mxu0 0
        %2494 = vmatpush2.bf16.msra.mxu0 0
        %2495 = vmatprep.subr.bf16.mxu0 0
        %2496 = vmatpush2.bf16.msra.mxu0 0
        %2497 = vmatprep.subr.bf16.mxu0 0
        %2498 = vmatpush2.bf16.msra.mxu0 0
        %2499 = vmatprep.mubr.bf16.mxu0 0
        %2500 = vmatmul.mubr.bf16.gmra.mxu0 %v2447
        %v2501 = vpop.f32.mrf.mxu0
        %v2502 = vadd.f32 0.0, %v2501
        %v2503 = vpop.f32.mrf.mxu0
        %v2504 = vpop.f32.mrf.mxu0
        %v2505 = vadd.f32 0.0, %v2504
        %v2506 = vpop.f32.mrf.mxu0
        %2507 = vmatprep.mubr.bf16.mxu0 0
        %2508 = vmatmul.mubr.bf16.gmra.mxu0 %v2450
        %v2509 = vpop.f32.mrf.mxu0
        %v2510 = vadd.f32 0.0, %v2509
        %v2511 = vpop.f32.mrf.mxu0
        %v2512 = vpop.f32.mrf.mxu0
        %v2513 = vadd.f32 0.0, %v2512
        %v2514 = vpop.f32.mrf.mxu0
        %2515 = vmatprep.mubr.bf16.mxu0 0
        %2516 = vmatmul.mubr.bf16.gmra.mxu0 %v2453
        %v2517 = vpop.f32.mrf.mxu0
        %v2518 = vadd.f32 0.0, %v2517
        %v2519 = vpop.f32.mrf.mxu0
        %v2520 = vpop.f32.mrf.mxu0
        %v2521 = vadd.f32 0.0, %v2520
        %v2522 = vpop.f32.mrf.mxu0
        %2523 = vmatprep.mubr.bf16.mxu0 0
        %2524 = vmatmul.mubr.bf16.gmra.mxu0 %v2456
        %v2525 = vpop.f32.mrf.mxu0
        %v2526 = vadd.f32 0.0, %v2525
        %v2527 = vpop.f32.mrf.mxu0
        %v2528 = vpop.f32.mrf.mxu0
        %v2529 = vadd.f32 0.0, %v2528
        %v2530 = vpop.f32.mrf.mxu0
        %2531 = vmatprep.mubr.bf16.mxu0 0
        %2532 = vmatmul.mubr.bf16.gmra.mxu0 %v2459
        %v2533 = vpop.f32.mrf.mxu0
        %v2534 = vadd.f32 0.0, %v2533
        %v2535 = vpop.f32.mrf.mxu0
        %v2536 = vpop.f32.mrf.mxu0
        %v2537 = vadd.f32 0.0, %v2536
        %v2538 = vpop.f32.mrf.mxu0
        %2539 = vmatprep.mubr.bf16.mxu0 0
        %2540 = vmatmul.mubr.bf16.gmra.mxu0 %v2462
        %v2541 = vpop.f32.mrf.mxu0
        %v2542 = vadd.f32 0.0, %v2541
        %v2543 = vpop.f32.mrf.mxu0
        %v2544 = vpop.f32.mrf.mxu0
        %v2545 = vadd.f32 0.0, %v2544
        %v2546 = vpop.f32.mrf.mxu0
        %2547 = vdwg.mxu0
        %v2548 = vsel %vm228, 1.0, %v2502
        %v2549 = vsel %vm229, 1.0, %v2505
        %v2550 = vsel %vm230, 1.0, %v2510
        %v2551 = vsel %vm231, 1.0, %v2513
        %v2552 = vsel %vm232, 1.0, %v2518
        %v2553 = vsel %vm233, 1.0, %v2521
        %v2554 = vsel %vm234, 1.0, %v2526
        %v2555 = vsel %vm235, 1.0, %v2529
        %v2556 = vsel %vm236, 1.0, %v2534
        %v2557 = vsel %vm237, 1.0, %v2537
        %v2558 = vsel %vm238, 1.0, %v2542
        %v2559 = vsel %vm239, 1.0, %v2545
        %v2560 = vsel %vm252, %v2548, 0.0
        %2561 = vadd.xlane.f32.xlu0 %v2560
        %v2562 = vpop.xlane.xlu0 %2561
        %v2563 = vsel %vm252, %v2549, 0.0
        %2564 = vadd.xlane.f32.xlu0 %v2563
        %v2565 = vpop.xlane.xlu0 %2564
        %v2566 = vsel %vm252, %v2550, 0.0
        %2567 = vadd.xlane.f32.xlu0 %v2566
        %v2568 = vpop.xlane.xlu0 %2567
        %v2569 = vsel %vm252, %v2551, 0.0
        %2570 = vadd.xlane.f32.xlu0 %v2569
        %v2571 = vpop.xlane.xlu0 %2570
        %v2572 = vsel %vm252, %v2552, 0.0
        %2573 = vadd.xlane.f32.xlu0 %v2572
        %v2574 = vpop.xlane.xlu0 %2573
        %v2575 = vsel %vm252, %v2553, 0.0
        %2576 = vadd.xlane.f32.xlu0 %v2575
        %v2577 = vpop.xlane.xlu0 %2576
        %v2578 = vsel %vm252, %v2554, 0.0
        %2579 = vadd.xlane.f32.xlu0 %v2578
        %v2580 = vpop.xlane.xlu0 %2579
        %v2581 = vsel %vm252, %v2555, 0.0
        %2582 = vadd.xlane.f32.xlu0 %v2581
        %v2583 = vpop.xlane.xlu0 %2582
        %v2584 = vsel %vm252, %v2556, 0.0
        %2585 = vadd.xlane.f32.xlu0 %v2584
        %v2586 = vpop.xlane.xlu0 %2585
        %v2587 = vsel %vm252, %v2557, 0.0
        %2588 = vadd.xlane.f32.xlu0 %v2587
        %v2589 = vpop.xlane.xlu0 %2588
        %v2590 = vsel %vm252, %v2558, 0.0
        %2591 = vadd.xlane.f32.xlu0 %v2590
        %v2592 = vpop.xlane.xlu0 %2591
        %v2593 = vsel %vm286, %v2559, 0.0
        %2594 = vadd.xlane.f32.xlu0 %v2593
        %v2595 = vpop.xlane.xlu0 %2594
        %v2596 = vmax.f32 %v2562, 1.0
        %v2597 = vmax.f32 %v2565, 1.0
        %v2598 = vmax.f32 %v2568, 1.0
        %v2599 = vmax.f32 %v2571, 1.0
        %v2600 = vmax.f32 %v2574, 1.0
        %v2601 = vmax.f32 %v2577, 1.0
        %v2602 = vmax.f32 %v2580, 1.0
        %v2603 = vmax.f32 %v2583, 1.0
        %v2604 = vmax.f32 %v2586, 1.0
        %v2605 = vmax.f32 %v2589, 1.0
        %v2606 = vmax.f32 %v2592, 1.0
        %v2607 = vmax.f32 %v2595, 1.0
        %v2608 = vrcp.pop %v2596
        %v2609 = vrcp.pop %v2597
        %v2610 = vrcp.pop %v2598
        %v2611 = vrcp.pop %v2599
        %v2612 = vrcp.pop %v2600
        %v2613 = vrcp.pop %v2601
        %v2614 = vrcp.pop %v2602
        %v2615 = vrcp.pop %v2603
        %v2616 = vrcp.pop %v2604
        %v2617 = vrcp.pop %v2605
        %v2618 = vrcp.pop %v2606
        %v2619 = vrcp.pop %v2607
        %v2620 = vmul.f32 %v2548, %v2608
        %v2621 = vmul.f32 %v2549, %v2609
        %v2622 = vmul.f32 %v2550, %v2610
        %v2623 = vmul.f32 %v2551, %v2611
        %v2624 = vmul.f32 %v2552, %v2612
        %v2625 = vmul.f32 %v2553, %v2613
        %v2626 = vmul.f32 %v2554, %v2614
        %v2627 = vmul.f32 %v2555, %v2615
        %v2628 = vmul.f32 %v2556, %v2616
        %v2629 = vmul.f32 %v2557, %v2617
        %v2630 = vmul.f32 %v2558, %v2618
        %v2631 = vmul.f32 %v2559, %v2619
        %v2632 = vpack.c.bf16 %v2621, %v2620
        %v2633 = vpack.c.bf16 %v2623, %v2622
        %v2634 = vpack.c.bf16 %v2625, %v2624
        %v2635 = vpack.c.bf16 %v2627, %v2626
        %v2636 = vpack.c.bf16 %v2629, %v2628
        %v2637 = vpack.c.bf16 %v2631, %v2630
        %v2638 = vpack.c.bf16 %v2307, %v2304
        %v2639 = vpack.c.bf16 %v2315, %v2312
        %v2640 = vpack.c.bf16 %v2323, %v2320
        %v2641 = vpack.c.bf16 %v2331, %v2328
        %v2642 = vpack.c.bf16 %v2339, %v2336
        %v2643 = vpack.c.bf16 %v2347, %v2344
        %v2645 = vsel %vm252, %v2632, 0
        %v2648 = vsel %vm252, %v2633, 0
        %v2651 = vsel %vm252, %v2634, 0
        %v2654 = vsel %vm252, %v2635, 0
        %v2657 = vsel %vm252, %v2636, 0
        %v2660 = vsel %vm252, %v2637, 0
        %v2663 = vsel %vm356, %v2643, 0
        %2665 = vmatprep.subr.bf16.mxu0 0
        %2666 = vmatpush1.bf16.msra.mxu0 0
        %2667 = vmatprep.subr.bf16.mxu0 0
        %2668 = vmatpush1.bf16.msra.mxu0 0
        %2669 = vmatprep.subr.bf16.mxu0 0
        %2670 = vmatpush1.bf16.msra.mxu0 %v2663
        %2671 = vmatprep.subr.bf16.mxu0 0
        %2672 = vmatpush1.bf16.msra.mxu0 %v2642
        %2673 = vmatprep.subr.bf16.mxu0 0
        %2674 = vmatpush1.bf16.msra.mxu0 %v2641
        %2675 = vmatprep.subr.bf16.mxu0 0
        %2676 = vmatpush1.bf16.msra.mxu0 %v2640
        %2677 = vmatprep.subr.bf16.mxu0 0
        %2678 = vmatpush1.bf16.msra.mxu0 %v2639
        %2679 = vmatprep.subr.bf16.mxu0 0
        %2680 = vmatpush1.bf16.msra.mxu0 %v2638
        %2681 = vmatprep.subr.bf16.mxu0 0
        %2682 = vmatpush2.bf16.msra.mxu0 0
        %2683 = vmatprep.subr.bf16.mxu0 0
        %2684 = vmatpush2.bf16.msra.mxu0 0
        %2685 = vmatprep.subr.bf16.mxu0 0
        %2686 = vmatpush2.bf16.msra.mxu0 0
        %2687 = vmatprep.subr.bf16.mxu0 0
        %2688 = vmatpush2.bf16.msra.mxu0 0
        %2689 = vmatprep.subr.bf16.mxu0 0
        %2690 = vmatpush2.bf16.msra.mxu0 0
        %2691 = vmatprep.subr.bf16.mxu0 0
        %2692 = vmatpush2.bf16.msra.mxu0 0
        %2693 = vmatprep.subr.bf16.mxu0 0
        %2694 = vmatpush2.bf16.msra.mxu0 0
        %2695 = vmatprep.subr.bf16.mxu0 0
        %2696 = vmatpush2.bf16.msra.mxu0 0
        %2697 = vmatprep.mubr.bf16.mxu0 0
        %2698 = vmatmul.mubr.bf16.gmra.mxu0 %v2645
        %v2699 = vpop.f32.mrf.mxu0
        %v2700 = vadd.f32 0.0, %v2699
        %v2701 = vpop.f32.mrf.mxu0
        %v2702 = vpop.f32.mrf.mxu0
        %v2703 = vadd.f32 0.0, %v2702
        %v2704 = vpop.f32.mrf.mxu0
        %2705 = vmatprep.mubr.bf16.mxu0 0
        %2706 = vmatmul.mubr.bf16.gmra.mxu0 %v2648
        %v2707 = vpop.f32.mrf.mxu0
        %v2708 = vadd.f32 0.0, %v2707
        %v2709 = vpop.f32.mrf.mxu0
        %v2710 = vpop.f32.mrf.mxu0
        %v2711 = vadd.f32 0.0, %v2710
        %v2712 = vpop.f32.mrf.mxu0
        %2713 = vmatprep.mubr.bf16.mxu0 0
        %2714 = vmatmul.mubr.bf16.gmra.mxu0 %v2651
        %v2715 = vpop.f32.mrf.mxu0
        %v2716 = vadd.f32 0.0, %v2715
        %v2717 = vpop.f32.mrf.mxu0
        %v2718 = vpop.f32.mrf.mxu0
        %v2719 = vadd.f32 0.0, %v2718
        %v2720 = vpop.f32.mrf.mxu0
        %2721 = vmatprep.mubr.bf16.mxu0 0
        %2722 = vmatmul.mubr.bf16.gmra.mxu0 %v2654
        %v2723 = vpop.f32.mrf.mxu0
        %v2724 = vadd.f32 0.0, %v2723
        %v2725 = vpop.f32.mrf.mxu0
        %v2726 = vpop.f32.mrf.mxu0
        %v2727 = vadd.f32 0.0, %v2726
        %v2728 = vpop.f32.mrf.mxu0
        %2729 = vmatprep.mubr.bf16.mxu0 0
        %2730 = vmatmul.mubr.bf16.gmra.mxu0 %v2657
        %v2731 = vpop.f32.mrf.mxu0
        %v2732 = vadd.f32 0.0, %v2731
        %v2733 = vpop.f32.mrf.mxu0
        %v2734 = vpop.f32.mrf.mxu0
        %v2735 = vadd.f32 0.0, %v2734
        %v2736 = vpop.f32.mrf.mxu0
        %2737 = vmatprep.mubr.bf16.mxu0 0
        %2738 = vmatmul.mubr.bf16.gmra.mxu0 %v2660
        %v2739 = vpop.f32.mrf.mxu0
        %v2740 = vadd.f32 0.0, %v2739
        %v2741 = vpop.f32.mrf.mxu0
        %v2742 = vpop.f32.mrf.mxu0
        %v2743 = vadd.f32 0.0, %v2742
        %v2744 = vpop.f32.mrf.mxu0
        %2745 = vdwg.mxu0
        %v2746 = vld [vmem:[%s2 + $0x140] sm:$0xff]
        %v2747 = vld [vmem:[%s2 + $0x148] sm:$0xff]
        %v2748 = vld [vmem:[%s2 + $0x150] sm:$0xff]
        %v2749 = vld [vmem:[%s2 + $0x158] sm:$0xff]
        %v2750 = vld [vmem:[%s2 + $0x160] sm:$0x1]
        %v2751 = vlaneseq
        %v2752 = vshrl.u32 %v2751, 7
        %v2753 = vsub.s32 0, %v2752
        %v2754 = vrot.slane %v2750, %v2753
        %v2756 = vsel %vm724, %v2700, 0
        %v2759 = vsel %vm724, %v2703, 0
        %v2762 = vsel %vm724, %v2708, 0
        %v2765 = vsel %vm724, %v2711, 0
        %v2768 = vsel %vm724, %v2716, 0
        %v2771 = vsel %vm724, %v2719, 0
        %v2774 = vsel %vm724, %v2724, 0
        %v2777 = vsel %vm724, %v2727, 0
        %v2780 = vsel %vm724, %v2732, 0
        %v2783 = vsel %vm724, %v2735, 0
        %v2786 = vsel %vm724, %v2740, 0
        %v2789 = vsel %vm724, %v2743, 0
        %2791 = vmatprep.subr.mxu0 0.0
        %2792 = vmatpush1.msra.mxu0 0.0
        %2793 = vmatprep.subr.mxu0 0.0
        %2794 = vmatpush1.msra.mxu0 0.0
        %2795 = vmatprep.subr.mxu0 0.0
        %2796 = vmatpush1.msra.mxu0 0.0
        %2797 = vmatprep.subr.mxu0 0.0
        %2798 = vmatpush1.msra.mxu0 0.0
        %2799 = vmatprep.subr.mxu0 0.0
        %2800 = vmatpush1.msra.mxu0 0.0
        %2801 = vmatprep.subr.mxu0 0.0
        %2802 = vmatpush1.msra.mxu0 0.0
        %2803 = vmatprep.subr.mxu0 0.0
        %2804 = vmatpush1.msra.mxu0 0.0
        %2805 = vmatprep.subr.mxu0 0.0
        %2806 = vmatpush1.msra.mxu0 0.0
        %2807 = vmatprep.subr.mxu0 0.0
        %2808 = vmatpush1.msra.mxu0 0.0
        %2809 = vmatprep.subr.mxu0 0.0
        %2810 = vmatpush1.msra.mxu0 0.0
        %2811 = vmatprep.subr.mxu0 0.0
        %2812 = vmatpush1.msra.mxu0 0.0
        %2813 = vmatprep.subr.mxu0 0.0
        %2814 = vmatpush1.msra.mxu0 0.0
        %2815 = vmatprep.subr.mxu0 0.0
        %2816 = vmatpush1.msra.mxu0 %v2749
        %2817 = vmatprep.subr.mxu0 0.0
        %2818 = vmatpush1.msra.mxu0 %v2748
        %2819 = vmatprep.subr.mxu0 0.0
        %2820 = vmatpush1.msra.mxu0 %v2747
        %2821 = vmatprep.subr.mxu0 0.0
        %2822 = vmatpush1.msra.mxu0 %v2746
        %2823 = vmatprep.subr.mxu0 0.0
        %2824 = vmatpush2.msra.mxu0 0.0
        %2825 = vmatprep.subr.mxu0 0.0
        %2826 = vmatpush2.msra.mxu0 0.0
        %2827 = vmatprep.subr.mxu0 0.0
        %2828 = vmatpush2.msra.mxu0 0.0
        %2829 = vmatprep.subr.mxu0 0.0
        %2830 = vmatpush2.msra.mxu0 0.0
        %2831 = vmatprep.subr.mxu0 0.0
        %2832 = vmatpush2.msra.mxu0 0.0
        %2833 = vmatprep.subr.mxu0 0.0
        %2834 = vmatpush2.msra.mxu0 0.0
        %2835 = vmatprep.subr.mxu0 0.0
        %2836 = vmatpush2.msra.mxu0 0.0
        %2837 = vmatprep.subr.mxu0 0.0
        %2838 = vmatpush2.msra.mxu0 0.0
        %2839 = vmatprep.subr.mxu0 0.0
        %2840 = vmatpush2.msra.mxu0 0.0
        %2841 = vmatprep.subr.mxu0 0.0
        %2842 = vmatpush2.msra.mxu0 0.0
        %2843 = vmatprep.subr.mxu0 0.0
        %2844 = vmatpush2.msra.mxu0 0.0
        %2845 = vmatprep.subr.mxu0 0.0
        %2846 = vmatpush2.msra.mxu0 0.0
        %2847 = vmatprep.subr.mxu0 0.0
        %2848 = vmatpush2.msra.mxu0 0.0
        %2849 = vmatprep.subr.mxu0 0.0
        %2850 = vmatpush2.msra.mxu0 0.0
        %2851 = vmatprep.subr.mxu0 0.0
        %2852 = vmatpush2.msra.mxu0 0.0
        %2853 = vmatprep.subr.mxu0 0.0
        %2854 = vmatpush2.msra.mxu0 0.0
        %2855 = vmatprep.mubr.f32.mxu0 0.0
        %2856 = vmatmul.mubr.f32.gmra.mxu0 %v2756
        %v2857 = vpop.f32.mrf.mxu0
        %v2858 = vadd.f32 %v2754, %v2857
        %v2859 = vpop.f32.mrf.mxu0
        %2860 = vmatprep.mubr.f32.mxu0 0.0
        %2861 = vmatmul.mubr.f32.gmra.mxu0 %v2759
        %v2862 = vpop.f32.mrf.mxu0
        %v2863 = vadd.f32 %v2754, %v2862
        %v2864 = vpop.f32.mrf.mxu0
        %2865 = vmatprep.mubr.f32.mxu0 0.0
        %2866 = vmatmul.mubr.f32.gmra.mxu0 %v2762
        %v2867 = vpop.f32.mrf.mxu0
        %v2868 = vadd.f32 %v2754, %v2867
        %v2869 = vpop.f32.mrf.mxu0
        %2870 = vmatprep.mubr.f32.mxu0 0.0
        %2871 = vmatmul.mubr.f32.gmra.mxu0 %v2765
        %v2872 = vpop.f32.mrf.mxu0
        %v2873 = vadd.f32 %v2754, %v2872
        %v2874 = vpop.f32.mrf.mxu0
        %2875 = vmatprep.mubr.f32.mxu0 0.0
        %2876 = vmatmul.mubr.f32.gmra.mxu0 %v2768
        %v2877 = vpop.f32.mrf.mxu0
        %v2878 = vadd.f32 %v2754, %v2877
        %v2879 = vpop.f32.mrf.mxu0
        %2880 = vmatprep.mubr.f32.mxu0 0.0
        %2881 = vmatmul.mubr.f32.gmra.mxu0 %v2771
        %v2882 = vpop.f32.mrf.mxu0
        %v2883 = vadd.f32 %v2754, %v2882
        %v2884 = vpop.f32.mrf.mxu0
        %2885 = vmatprep.mubr.f32.mxu0 0.0
        %2886 = vmatmul.mubr.f32.gmra.mxu0 %v2774
        %v2887 = vpop.f32.mrf.mxu0
        %v2888 = vadd.f32 %v2754, %v2887
        %v2889 = vpop.f32.mrf.mxu0
        %2890 = vmatprep.mubr.f32.mxu0 0.0
        %2891 = vmatmul.mubr.f32.gmra.mxu0 %v2777
        %v2892 = vpop.f32.mrf.mxu0
        %v2893 = vadd.f32 %v2754, %v2892
        %v2894 = vpop.f32.mrf.mxu0
        %2895 = vmatprep.mubr.f32.mxu0 0.0
        %2896 = vmatmul.mubr.f32.gmra.mxu0 %v2780
        %v2897 = vpop.f32.mrf.mxu0
        %v2898 = vadd.f32 %v2754, %v2897
        %v2899 = vpop.f32.mrf.mxu0
        %2900 = vmatprep.mubr.f32.mxu0 0.0
        %2901 = vmatmul.mubr.f32.gmra.mxu0 %v2783
        %v2902 = vpop.f32.mrf.mxu0
        %v2903 = vadd.f32 %v2754, %v2902
        %v2904 = vpop.f32.mrf.mxu0
        %2905 = vmatprep.mubr.f32.mxu0 0.0
        %2906 = vmatmul.mubr.f32.gmra.mxu0 %v2786
        %v2907 = vpop.f32.mrf.mxu0
        %v2908 = vadd.f32 %v2754, %v2907
        %v2909 = vpop.f32.mrf.mxu0
        %2910 = vmatprep.mubr.f32.mxu0 0.0
        %2911 = vmatmul.mubr.f32.gmra.mxu0 %v2789
        %v2912 = vpop.f32.mrf.mxu0
        %v2913 = vadd.f32 %v2754, %v2912
        %v2914 = vpop.f32.mrf.mxu0
        %2915 = vdwg.mxu0
        %v2916 = vmax.f32 %v2858, 0.0
        %v2917 = vmax.f32 %v2863, 0.0
        %v2918 = vmax.f32 %v2868, 0.0
        %v2919 = vmax.f32 %v2873, 0.0
        %v2920 = vmax.f32 %v2878, 0.0
        %v2921 = vmax.f32 %v2883, 0.0
        %v2922 = vmax.f32 %v2888, 0.0
        %v2923 = vmax.f32 %v2893, 0.0
        %v2924 = vmax.f32 %v2898, 0.0
        %v2925 = vmax.f32 %v2903, 0.0
        %v2926 = vmax.f32 %v2908, 0.0
        %v2927 = vmax.f32 %v2913, 0.0
        %v2928 = vpack.c.bf16 %v2917, %v2916
        %v2929 = vpack.c.bf16 %v2919, %v2918
        %v2930 = vpack.c.bf16 %v2921, %v2920
        %v2931 = vpack.c.bf16 %v2923, %v2922
        %v2932 = vpack.c.bf16 %v2925, %v2924
        %v2933 = vpack.c.bf16 %v2927, %v2926
        %v2935 = vsel %vm356, %v2933, 0
        %2937 = vmatprep.subr.bf16.mxu0 0
        %2938 = vmatpush1.bf16.msra.mxu0 0
        %2939 = vmatprep.subr.bf16.mxu0 0
        %2940 = vmatpush1.bf16.msra.mxu0 0
        %2941 = vmatprep.subr.bf16.mxu0 0
        %2942 = vmatpush1.bf16.msra.mxu0 %v2935
        %2943 = vmatprep.subr.bf16.mxu0 0
        %2944 = vmatpush1.bf16.msra.mxu0 %v2932
        %2945 = vmatprep.subr.bf16.mxu0 0
        %2946 = vmatpush1.bf16.msra.mxu0 %v2931
        %2947 = vmatprep.subr.bf16.mxu0 0
        %2948 = vmatpush1.bf16.msra.mxu0 %v2930
        %2949 = vmatprep.subr.bf16.mxu0 0
        %2950 = vmatpush1.bf16.msra.mxu0 %v2929
        %2951 = vmatprep.subr.bf16.mxu0 0
        %2952 = vmatpush1.bf16.msra.mxu0 %v2928
        %2953 = vmatprep.subr.bf16.mxu0 0
        %2954 = vmatpush2.bf16.msra.mxu0 0
        %2955 = vmatprep.subr.bf16.mxu0 0
        %2956 = vmatpush2.bf16.msra.mxu0 0
        %2957 = vmatprep.subr.bf16.mxu0 0
        %2958 = vmatpush2.bf16.msra.mxu0 0
        %2959 = vmatprep.subr.bf16.mxu0 0
        %2960 = vmatpush2.bf16.msra.mxu0 0
        %2961 = vmatprep.subr.bf16.mxu0 0
        %2962 = vmatpush2.bf16.msra.mxu0 0
        %2963 = vmatprep.subr.bf16.mxu0 0
        %2964 = vmatpush2.bf16.msra.mxu0 0
        %2965 = vmatprep.subr.bf16.mxu0 0
        %2966 = vmatpush2.bf16.msra.mxu0 0
        %2967 = vmatprep.subr.bf16.mxu0 0
        %2968 = vmatpush2.bf16.msra.mxu0 0
        %2969 = vmatprep.mubr.bf16.mxu0 0
        %2970 = vmatmul.mubr.bf16.gmra.mxu0 %v2645
        %v2971 = vpop.f32.mrf.mxu0
        %v2972 = vadd.f32 0.0, %v2971
        %v2973 = vpop.f32.mrf.mxu0
        %v2974 = vpop.f32.mrf.mxu0
        %v2975 = vadd.f32 0.0, %v2974
        %v2976 = vpop.f32.mrf.mxu0
        %2977 = vmatprep.mubr.bf16.mxu0 0
        %2978 = vmatmul.mubr.bf16.gmra.mxu0 %v2648
        %v2979 = vpop.f32.mrf.mxu0
        %v2980 = vadd.f32 0.0, %v2979
        %v2981 = vpop.f32.mrf.mxu0
        %v2982 = vpop.f32.mrf.mxu0
        %v2983 = vadd.f32 0.0, %v2982
        %v2984 = vpop.f32.mrf.mxu0
        %2985 = vmatprep.mubr.bf16.mxu0 0
        %2986 = vmatmul.mubr.bf16.gmra.mxu0 %v2651
        %v2987 = vpop.f32.mrf.mxu0
        %v2988 = vadd.f32 0.0, %v2987
        %v2989 = vpop.f32.mrf.mxu0
        %v2990 = vpop.f32.mrf.mxu0
        %v2991 = vadd.f32 0.0, %v2990
        %v2992 = vpop.f32.mrf.mxu0
        %2993 = vmatprep.mubr.bf16.mxu0 0
        %2994 = vmatmul.mubr.bf16.gmra.mxu0 %v2654
        %v2995 = vpop.f32.mrf.mxu0
        %v2996 = vadd.f32 0.0, %v2995
        %v2997 = vpop.f32.mrf.mxu0
        %v2998 = vpop.f32.mrf.mxu0
        %v2999 = vadd.f32 0.0, %v2998
        %v3000 = vpop.f32.mrf.mxu0
        %3001 = vmatprep.mubr.bf16.mxu0 0
        %3002 = vmatmul.mubr.bf16.gmra.mxu0 %v2657
        %v3003 = vpop.f32.mrf.mxu0
        %v3004 = vadd.f32 0.0, %v3003
        %v3005 = vpop.f32.mrf.mxu0
        %v3006 = vpop.f32.mrf.mxu0
        %v3007 = vadd.f32 0.0, %v3006
        %v3008 = vpop.f32.mrf.mxu0
        %3009 = vmatprep.mubr.bf16.mxu0 0
        %3010 = vmatmul.mubr.bf16.gmra.mxu0 %v2660
        %v3011 = vpop.f32.mrf.mxu0
        %v3012 = vadd.f32 0.0, %v3011
        %v3013 = vpop.f32.mrf.mxu0
        %v3014 = vpop.f32.mrf.mxu0
        %v3015 = vadd.f32 0.0, %v3014
        %v3016 = vpop.f32.mrf.mxu0
        %3017 = vdwg.mxu0
        %v3018 = vld [vmem:[%s2 + $0x168] sm:$0xff]
        %v3019 = vld [vmem:[%s2 + $0x170] sm:$0xff]
        %v3020 = vld [vmem:[%s2 + $0x178] sm:$0xff]
        %v3021 = vld [vmem:[%s2 + $0x180] sm:$0xff]
        %v3022 = vld [vmem:[%s2 + $0x188] sm:$0x1]
        %v3023 = vlaneseq
        %v3024 = vshrl.u32 %v3023, 7
        %v3025 = vsub.s32 0, %v3024
        %v3026 = vrot.slane %v3022, %v3025
        %v3028 = vsel %vm724, %v2972, 0
        %v3031 = vsel %vm724, %v2975, 0
        %v3034 = vsel %vm724, %v2980, 0
        %v3037 = vsel %vm724, %v2983, 0
        %v3040 = vsel %vm724, %v2988, 0
        %v3043 = vsel %vm724, %v2991, 0
        %v3046 = vsel %vm724, %v2996, 0
        %v3049 = vsel %vm724, %v2999, 0
        %v3052 = vsel %vm724, %v3004, 0
        %v3055 = vsel %vm724, %v3007, 0
        %v3058 = vsel %vm724, %v3012, 0
        %v3061 = vsel %vm724, %v3015, 0
        %3063 = vmatprep.subr.mxu0 0.0
        %3064 = vmatpush1.msra.mxu0 0.0
        %3065 = vmatprep.subr.mxu0 0.0
        %3066 = vmatpush1.msra.mxu0 0.0
        %3067 = vmatprep.subr.mxu0 0.0
        %3068 = vmatpush1.msra.mxu0 0.0
        %3069 = vmatprep.subr.mxu0 0.0
        %3070 = vmatpush1.msra.mxu0 0.0
        %3071 = vmatprep.subr.mxu0 0.0
        %3072 = vmatpush1.msra.mxu0 0.0
        %3073 = vmatprep.subr.mxu0 0.0
        %3074 = vmatpush1.msra.mxu0 0.0
        %3075 = vmatprep.subr.mxu0 0.0
        %3076 = vmatpush1.msra.mxu0 0.0
        %3077 = vmatprep.subr.mxu0 0.0
        %3078 = vmatpush1.msra.mxu0 0.0
        %3079 = vmatprep.subr.mxu0 0.0
        %3080 = vmatpush1.msra.mxu0 0.0
        %3081 = vmatprep.subr.mxu0 0.0
        %3082 = vmatpush1.msra.mxu0 0.0
        %3083 = vmatprep.subr.mxu0 0.0
        %3084 = vmatpush1.msra.mxu0 0.0
        %3085 = vmatprep.subr.mxu0 0.0
        %3086 = vmatpush1.msra.mxu0 0.0
        %3087 = vmatprep.subr.mxu0 0.0
        %3088 = vmatpush1.msra.mxu0 %v3021
        %3089 = vmatprep.subr.mxu0 0.0
        %3090 = vmatpush1.msra.mxu0 %v3020
        %3091 = vmatprep.subr.mxu0 0.0
        %3092 = vmatpush1.msra.mxu0 %v3019
        %3093 = vmatprep.subr.mxu0 0.0
        %3094 = vmatpush1.msra.mxu0 %v3018
        %3095 = vmatprep.subr.mxu0 0.0
        %3096 = vmatpush2.msra.mxu0 0.0
        %3097 = vmatprep.subr.mxu0 0.0
        %3098 = vmatpush2.msra.mxu0 0.0
        %3099 = vmatprep.subr.mxu0 0.0
        %3100 = vmatpush2.msra.mxu0 0.0
        %3101 = vmatprep.subr.mxu0 0.0
        %3102 = vmatpush2.msra.mxu0 0.0
        %3103 = vmatprep.subr.mxu0 0.0
        %3104 = vmatpush2.msra.mxu0 0.0
        %3105 = vmatprep.subr.mxu0 0.0
        %3106 = vmatpush2.msra.mxu0 0.0
        %3107 = vmatprep.subr.mxu0 0.0
        %3108 = vmatpush2.msra.mxu0 0.0
        %3109 = vmatprep.subr.mxu0 0.0
        %3110 = vmatpush2.msra.mxu0 0.0
        %3111 = vmatprep.subr.mxu0 0.0
        %3112 = vmatpush2.msra.mxu0 0.0
        %3113 = vmatprep.subr.mxu0 0.0
        %3114 = vmatpush2.msra.mxu0 0.0
        %3115 = vmatprep.subr.mxu0 0.0
        %3116 = vmatpush2.msra.mxu0 0.0
        %3117 = vmatprep.subr.mxu0 0.0
        %3118 = vmatpush2.msra.mxu0 0.0
        %3119 = vmatprep.subr.mxu0 0.0
        %3120 = vmatpush2.msra.mxu0 0.0
        %3121 = vmatprep.subr.mxu0 0.0
        %3122 = vmatpush2.msra.mxu0 0.0
        %3123 = vmatprep.subr.mxu0 0.0
        %3124 = vmatpush2.msra.mxu0 0.0
        %3125 = vmatprep.subr.mxu0 0.0
        %3126 = vmatpush2.msra.mxu0 0.0
        %3127 = vmatprep.mubr.f32.mxu0 0.0
        %3128 = vmatmul.mubr.f32.gmra.mxu0 %v3028
        %v3129 = vpop.f32.mrf.mxu0
        %v3130 = vadd.f32 %v3026, %v3129
        %v3131 = vpop.f32.mrf.mxu0
        %3132 = vmatprep.mubr.f32.mxu0 0.0
        %3133 = vmatmul.mubr.f32.gmra.mxu0 %v3031
        %v3134 = vpop.f32.mrf.mxu0
        %v3135 = vadd.f32 %v3026, %v3134
        %v3136 = vpop.f32.mrf.mxu0
        %3137 = vmatprep.mubr.f32.mxu0 0.0
        %3138 = vmatmul.mubr.f32.gmra.mxu0 %v3034
        %v3139 = vpop.f32.mrf.mxu0
        %v3140 = vadd.f32 %v3026, %v3139
        %v3141 = vpop.f32.mrf.mxu0
        %3142 = vmatprep.mubr.f32.mxu0 0.0
        %3143 = vmatmul.mubr.f32.gmra.mxu0 %v3037
        %v3144 = vpop.f32.mrf.mxu0
        %v3145 = vadd.f32 %v3026, %v3144
        %v3146 = vpop.f32.mrf.mxu0
        %3147 = vmatprep.mubr.f32.mxu0 0.0
        %3148 = vmatmul.mubr.f32.gmra.mxu0 %v3040
        %v3149 = vpop.f32.mrf.mxu0
        %v3150 = vadd.f32 %v3026, %v3149
        %v3151 = vpop.f32.mrf.mxu0
        %3152 = vmatprep.mubr.f32.mxu0 0.0
        %3153 = vmatmul.mubr.f32.gmra.mxu0 %v3043
        %v3154 = vpop.f32.mrf.mxu0
        %v3155 = vadd.f32 %v3026, %v3154
        %v3156 = vpop.f32.mrf.mxu0
        %3157 = vmatprep.mubr.f32.mxu0 0.0
        %3158 = vmatmul.mubr.f32.gmra.mxu0 %v3046
        %v3159 = vpop.f32.mrf.mxu0
        %v3160 = vadd.f32 %v3026, %v3159
        %v3161 = vpop.f32.mrf.mxu0
        %3162 = vmatprep.mubr.f32.mxu0 0.0
        %3163 = vmatmul.mubr.f32.gmra.mxu0 %v3049
        %v3164 = vpop.f32.mrf.mxu0
        %v3165 = vadd.f32 %v3026, %v3164
        %v3166 = vpop.f32.mrf.mxu0
        %3167 = vmatprep.mubr.f32.mxu0 0.0
        %3168 = vmatmul.mubr.f32.gmra.mxu0 %v3052
        %v3169 = vpop.f32.mrf.mxu0
        %v3170 = vadd.f32 %v3026, %v3169
        %v3171 = vpop.f32.mrf.mxu0
        %3172 = vmatprep.mubr.f32.mxu0 0.0
        %3173 = vmatmul.mubr.f32.gmra.mxu0 %v3055
        %v3174 = vpop.f32.mrf.mxu0
        %v3175 = vadd.f32 %v3026, %v3174
        %v3176 = vpop.f32.mrf.mxu0
        %3177 = vmatprep.mubr.f32.mxu0 0.0
        %3178 = vmatmul.mubr.f32.gmra.mxu0 %v3058
        %v3179 = vpop.f32.mrf.mxu0
        %v3180 = vadd.f32 %v3026, %v3179
        %v3181 = vpop.f32.mrf.mxu0
        %3182 = vmatprep.mubr.f32.mxu0 0.0
        %3183 = vmatmul.mubr.f32.gmra.mxu0 %v3061
        %v3184 = vpop.f32.mrf.mxu0
        %v3185 = vadd.f32 %v3026, %v3184
        %v3186 = vpop.f32.mrf.mxu0
        %3187 = vdwg.mxu0
        %v3188 = vmax.f32 %v3130, 0.0
        %v3189 = vmax.f32 %v3135, 0.0
        %v3190 = vmax.f32 %v3140, 0.0
        %v3191 = vmax.f32 %v3145, 0.0
        %v3192 = vmax.f32 %v3150, 0.0
        %v3193 = vmax.f32 %v3155, 0.0
        %v3194 = vmax.f32 %v3160, 0.0
        %v3195 = vmax.f32 %v3165, 0.0
        %v3196 = vmax.f32 %v3170, 0.0
        %v3197 = vmax.f32 %v3175, 0.0
        %v3198 = vmax.f32 %v3180, 0.0
        %v3199 = vmax.f32 %v3185, 0.0
        %v3200 = vld [vmem:[%s2 + $0x190] sm:$0xff]
        %v3201 = vld [vmem:[%s2 + $0x198] sm:$0xff]
        %v3202 = vld [vmem:[%s2 + $0x1a0] sm:$0xff]
        %v3203 = vld [vmem:[%s2 + $0x1a8] sm:$0xff]
        %v3204 = vld [vmem:[%s2 + $0x1b0] sm:$0xff]
        %v3205 = vld [vmem:[%s2 + $0x1b8] sm:$0xff]
        %v3206 = vld [vmem:[%s2 + $0x1c0] sm:$0xff]
        %v3207 = vld [vmem:[%s2 + $0x1c8] sm:$0xff]
        %v3209 = vsel %vm724, %v3188, 0
        %v3212 = vsel %vm724, %v3189, 0
        %v3215 = vsel %vm724, %v3190, 0
        %v3218 = vsel %vm724, %v3191, 0
        %v3221 = vsel %vm724, %v3192, 0
        %v3224 = vsel %vm724, %v3193, 0
        %v3227 = vsel %vm724, %v3194, 0
        %v3230 = vsel %vm724, %v3195, 0
        %v3233 = vsel %vm724, %v3196, 0
        %v3236 = vsel %vm724, %v3197, 0
        %v3239 = vsel %vm724, %v3198, 0
        %v3242 = vsel %vm724, %v3199, 0
        %3244 = vmatprep.subr.mxu0 0.0
        %3245 = vmatpush1.msra.mxu0 0.0
        %3246 = vmatprep.subr.mxu0 0.0
        %3247 = vmatpush1.msra.mxu0 0.0
        %3248 = vmatprep.subr.mxu0 0.0
        %3249 = vmatpush1.msra.mxu0 0.0
        %3250 = vmatprep.subr.mxu0 0.0
        %3251 = vmatpush1.msra.mxu0 0.0
        %3252 = vmatprep.subr.mxu0 0.0
        %3253 = vmatpush1.msra.mxu0 0.0
        %3254 = vmatprep.subr.mxu0 0.0
        %3255 = vmatpush1.msra.mxu0 0.0
        %3256 = vmatprep.subr.mxu0 0.0
        %3257 = vmatpush1.msra.mxu0 0.0
        %3258 = vmatprep.subr.mxu0 0.0
        %3259 = vmatpush1.msra.mxu0 0.0
        %3260 = vmatprep.subr.mxu0 0.0
        %3261 = vmatpush1.msra.mxu0 0.0
        %3262 = vmatprep.subr.mxu0 0.0
        %3263 = vmatpush1.msra.mxu0 0.0
        %3264 = vmatprep.subr.mxu0 0.0
        %3265 = vmatpush1.msra.mxu0 0.0
        %3266 = vmatprep.subr.mxu0 0.0
        %3267 = vmatpush1.msra.mxu0 0.0
        %3268 = vmatprep.subr.mxu0 0.0
        %3269 = vmatpush1.msra.mxu0 %v3207
        %3270 = vmatprep.subr.mxu0 0.0
        %3271 = vmatpush1.msra.mxu0 %v3206
        %3272 = vmatprep.subr.mxu0 0.0
        %3273 = vmatpush1.msra.mxu0 %v3205
        %3274 = vmatprep.subr.mxu0 0.0
        %3275 = vmatpush1.msra.mxu0 %v3204
        %3276 = vmatprep.subr.mxu0 0.0
        %3277 = vmatpush2.msra.mxu0 0.0
        %3278 = vmatprep.subr.mxu0 0.0
        %3279 = vmatpush2.msra.mxu0 0.0
        %3280 = vmatprep.subr.mxu0 0.0
        %3281 = vmatpush2.msra.mxu0 0.0
        %3282 = vmatprep.subr.mxu0 0.0
        %3283 = vmatpush2.msra.mxu0 0.0
        %3284 = vmatprep.subr.mxu0 0.0
        %3285 = vmatpush2.msra.mxu0 0.0
        %3286 = vmatprep.subr.mxu0 0.0
        %3287 = vmatpush2.msra.mxu0 0.0
        %3288 = vmatprep.subr.mxu0 0.0
        %3289 = vmatpush2.msra.mxu0 0.0
        %3290 = vmatprep.subr.mxu0 0.0
        %3291 = vmatpush2.msra.mxu0 0.0
        %3292 = vmatprep.subr.mxu0 0.0
        %3293 = vmatpush2.msra.mxu0 0.0
        %3294 = vmatprep.subr.mxu0 0.0
        %3295 = vmatpush2.msra.mxu0 0.0
        %3296 = vmatprep.subr.mxu0 0.0
        %3297 = vmatpush2.msra.mxu0 0.0
        %3298 = vmatprep.subr.mxu0 0.0
        %3299 = vmatpush2.msra.mxu0 0.0
        %3300 = vmatprep.subr.mxu0 0.0
        %3301 = vmatpush2.msra.mxu0 0.0
        %3302 = vmatprep.subr.mxu0 0.0
        %3303 = vmatpush2.msra.mxu0 0.0
        %3304 = vmatprep.subr.mxu0 0.0
        %3305 = vmatpush2.msra.mxu0 0.0
        %3306 = vmatprep.subr.mxu0 0.0
        %3307 = vmatpush2.msra.mxu0 0.0
        %3308 = vmatprep.mubr.f32.mxu0 0.0
        %3309 = vmatmul.mubr.f32.gmra.mxu0 %v3209
        %v3310 = vpop.f32.mrf.mxu0
        %v3311 = vadd.f32 0.0, %v3310
        %v3312 = vpop.f32.mrf.mxu0
        %3313 = vmatprep.mubr.f32.mxu0 0.0
        %3314 = vmatmul.mubr.f32.gmra.mxu0 %v3212
        %v3315 = vpop.f32.mrf.mxu0
        %v3316 = vadd.f32 0.0, %v3315
        %v3317 = vpop.f32.mrf.mxu0
        %3318 = vmatprep.mubr.f32.mxu0 0.0
        %3319 = vmatmul.mubr.f32.gmra.mxu0 %v3215
        %v3320 = vpop.f32.mrf.mxu0
        %v3321 = vadd.f32 0.0, %v3320
        %v3322 = vpop.f32.mrf.mxu0
        %3323 = vmatprep.mubr.f32.mxu0 0.0
        %3324 = vmatmul.mubr.f32.gmra.mxu0 %v3218
        %v3325 = vpop.f32.mrf.mxu0
        %v3326 = vadd.f32 0.0, %v3325
        %v3327 = vpop.f32.mrf.mxu0
        %3328 = vmatprep.mubr.f32.mxu0 0.0
        %3329 = vmatmul.mubr.f32.gmra.mxu0 %v3221
        %v3330 = vpop.f32.mrf.mxu0
        %v3331 = vadd.f32 0.0, %v3330
        %v3332 = vpop.f32.mrf.mxu0
        %3333 = vmatprep.mubr.f32.mxu0 0.0
        %3334 = vmatmul.mubr.f32.gmra.mxu0 %v3224
        %v3335 = vpop.f32.mrf.mxu0
        %v3336 = vadd.f32 0.0, %v3335
        %v3337 = vpop.f32.mrf.mxu0
        %3338 = vmatprep.mubr.f32.mxu0 0.0
        %3339 = vmatmul.mubr.f32.gmra.mxu0 %v3227
        %v3340 = vpop.f32.mrf.mxu0
        %v3341 = vadd.f32 0.0, %v3340
        %v3342 = vpop.f32.mrf.mxu0
        %3343 = vmatprep.mubr.f32.mxu0 0.0
        %3344 = vmatmul.mubr.f32.gmra.mxu0 %v3230
        %v3345 = vpop.f32.mrf.mxu0
        %v3346 = vadd.f32 0.0, %v3345
        %v3347 = vpop.f32.mrf.mxu0
        %3348 = vmatprep.mubr.f32.mxu0 0.0
        %3349 = vmatmul.mubr.f32.gmra.mxu0 %v3233
        %v3350 = vpop.f32.mrf.mxu0
        %v3351 = vadd.f32 0.0, %v3350
        %v3352 = vpop.f32.mrf.mxu0
        %3353 = vmatprep.mubr.f32.mxu0 0.0
        %3354 = vmatmul.mubr.f32.gmra.mxu0 %v3236
        %v3355 = vpop.f32.mrf.mxu0
        %v3356 = vadd.f32 0.0, %v3355
        %v3357 = vpop.f32.mrf.mxu0
        %3358 = vmatprep.mubr.f32.mxu0 0.0
        %3359 = vmatmul.mubr.f32.gmra.mxu0 %v3239
        %v3360 = vpop.f32.mrf.mxu0
        %v3361 = vadd.f32 0.0, %v3360
        %v3362 = vpop.f32.mrf.mxu0
        %3363 = vmatprep.mubr.f32.mxu0 0.0
        %3364 = vmatmul.mubr.f32.gmra.mxu0 %v3242
        %v3365 = vpop.f32.mrf.mxu0
        %v3366 = vadd.f32 0.0, %v3365
        %v3367 = vpop.f32.mrf.mxu0
        %3368 = vdwg.mxu0
        %v3370 = vsel %vm724, %v2916, 0
        %v3373 = vsel %vm724, %v2917, 0
        %v3376 = vsel %vm724, %v2918, 0
        %v3379 = vsel %vm724, %v2919, 0
        %v3382 = vsel %vm724, %v2920, 0
        %v3385 = vsel %vm724, %v2921, 0
        %v3388 = vsel %vm724, %v2922, 0
        %v3391 = vsel %vm724, %v2923, 0
        %v3394 = vsel %vm724, %v2924, 0
        %v3397 = vsel %vm724, %v2925, 0
        %v3400 = vsel %vm724, %v2926, 0
        %v3403 = vsel %vm724, %v2927, 0
        %3405 = vmatprep.subr.mxu0 0.0
        %3406 = vmatpush1.msra.mxu0 0.0
        %3407 = vmatprep.subr.mxu0 0.0
        %3408 = vmatpush1.msra.mxu0 0.0
        %3409 = vmatprep.subr.mxu0 0.0
        %3410 = vmatpush1.msra.mxu0 0.0
        %3411 = vmatprep.subr.mxu0 0.0
        %3412 = vmatpush1.msra.mxu0 0.0
        %3413 = vmatprep.subr.mxu0 0.0
        %3414 = vmatpush1.msra.mxu0 0.0
        %3415 = vmatprep.subr.mxu0 0.0
        %3416 = vmatpush1.msra.mxu0 0.0
        %3417 = vmatprep.subr.mxu0 0.0
        %3418 = vmatpush1.msra.mxu0 0.0
        %3419 = vmatprep.subr.mxu0 0.0
        %3420 = vmatpush1.msra.mxu0 0.0
        %3421 = vmatprep.subr.mxu0 0.0
        %3422 = vmatpush1.msra.mxu0 0.0
        %3423 = vmatprep.subr.mxu0 0.0
        %3424 = vmatpush1.msra.mxu0 0.0
        %3425 = vmatprep.subr.mxu0 0.0
        %3426 = vmatpush1.msra.mxu0 0.0
        %3427 = vmatprep.subr.mxu0 0.0
        %3428 = vmatpush1.msra.mxu0 0.0
        %3429 = vmatprep.subr.mxu0 0.0
        %3430 = vmatpush1.msra.mxu0 %v3203
        %3431 = vmatprep.subr.mxu0 0.0
        %3432 = vmatpush1.msra.mxu0 %v3202
        %3433 = vmatprep.subr.mxu0 0.0
        %3434 = vmatpush1.msra.mxu0 %v3201
        %3435 = vmatprep.subr.mxu0 0.0
        %3436 = vmatpush1.msra.mxu0 %v3200
        %3437 = vmatprep.subr.mxu0 0.0
        %3438 = vmatpush2.msra.mxu0 0.0
        %3439 = vmatprep.subr.mxu0 0.0
        %3440 = vmatpush2.msra.mxu0 0.0
        %3441 = vmatprep.subr.mxu0 0.0
        %3442 = vmatpush2.msra.mxu0 0.0
        %3443 = vmatprep.subr.mxu0 0.0
        %3444 = vmatpush2.msra.mxu0 0.0
        %3445 = vmatprep.subr.mxu0 0.0
        %3446 = vmatpush2.msra.mxu0 0.0
        %3447 = vmatprep.subr.mxu0 0.0
        %3448 = vmatpush2.msra.mxu0 0.0
        %3449 = vmatprep.subr.mxu0 0.0
        %3450 = vmatpush2.msra.mxu0 0.0
        %3451 = vmatprep.subr.mxu0 0.0
        %3452 = vmatpush2.msra.mxu0 0.0
        %3453 = vmatprep.subr.mxu0 0.0
        %3454 = vmatpush2.msra.mxu0 0.0
        %3455 = vmatprep.subr.mxu0 0.0
        %3456 = vmatpush2.msra.mxu0 0.0
        %3457 = vmatprep.subr.mxu0 0.0
        %3458 = vmatpush2.msra.mxu0 0.0
        %3459 = vmatprep.subr.mxu0 0.0
        %3460 = vmatpush2.msra.mxu0 0.0
        %3461 = vmatprep.subr.mxu0 0.0
        %3462 = vmatpush2.msra.mxu0 0.0
        %3463 = vmatprep.subr.mxu0 0.0
        %3464 = vmatpush2.msra.mxu0 0.0
        %3465 = vmatprep.subr.mxu0 0.0
        %3466 = vmatpush2.msra.mxu0 0.0
        %3467 = vmatprep.subr.mxu0 0.0
        %3468 = vmatpush2.msra.mxu0 0.0
        %3469 = vmatprep.mubr.f32.mxu0 0.0
        %3470 = vmatmul.mubr.f32.gmra.mxu0 %v3370
        %v3471 = vpop.f32.mrf.mxu0
        %v3472 = vadd.f32 %v3311, %v3471
        %v3473 = vpop.f32.mrf.mxu0
        %3474 = vmatprep.mubr.f32.mxu0 0.0
        %3475 = vmatmul.mubr.f32.gmra.mxu0 %v3373
        %v3476 = vpop.f32.mrf.mxu0
        %v3477 = vadd.f32 %v3316, %v3476
        %v3478 = vpop.f32.mrf.mxu0
        %3479 = vmatprep.mubr.f32.mxu0 0.0
        %3480 = vmatmul.mubr.f32.gmra.mxu0 %v3376
        %v3481 = vpop.f32.mrf.mxu0
        %v3482 = vadd.f32 %v3321, %v3481
        %v3483 = vpop.f32.mrf.mxu0
        %3484 = vmatprep.mubr.f32.mxu0 0.0
        %3485 = vmatmul.mubr.f32.gmra.mxu0 %v3379
        %v3486 = vpop.f32.mrf.mxu0
        %v3487 = vadd.f32 %v3326, %v3486
        %v3488 = vpop.f32.mrf.mxu0
        %3489 = vmatprep.mubr.f32.mxu0 0.0
        %3490 = vmatmul.mubr.f32.gmra.mxu0 %v3382
        %v3491 = vpop.f32.mrf.mxu0
        %v3492 = vadd.f32 %v3331, %v3491
        %v3493 = vpop.f32.mrf.mxu0
        %3494 = vmatprep.mubr.f32.mxu0 0.0
        %3495 = vmatmul.mubr.f32.gmra.mxu0 %v3385
        %v3496 = vpop.f32.mrf.mxu0
        %v3497 = vadd.f32 %v3336, %v3496
        %v3498 = vpop.f32.mrf.mxu0
        %3499 = vmatprep.mubr.f32.mxu0 0.0
        %3500 = vmatmul.mubr.f32.gmra.mxu0 %v3388
        %v3501 = vpop.f32.mrf.mxu0
        %v3502 = vadd.f32 %v3341, %v3501
        %v3503 = vpop.f32.mrf.mxu0
        %3504 = vmatprep.mubr.f32.mxu0 0.0
        %3505 = vmatmul.mubr.f32.gmra.mxu0 %v3391
        %v3506 = vpop.f32.mrf.mxu0
        %v3507 = vadd.f32 %v3346, %v3506
        %v3508 = vpop.f32.mrf.mxu0
        %3509 = vmatprep.mubr.f32.mxu0 0.0
        %3510 = vmatmul.mubr.f32.gmra.mxu0 %v3394
        %v3511 = vpop.f32.mrf.mxu0
        %v3512 = vadd.f32 %v3351, %v3511
        %v3513 = vpop.f32.mrf.mxu0
        %3514 = vmatprep.mubr.f32.mxu0 0.0
        %3515 = vmatmul.mubr.f32.gmra.mxu0 %v3397
        %v3516 = vpop.f32.mrf.mxu0
        %v3517 = vadd.f32 %v3356, %v3516
        %v3518 = vpop.f32.mrf.mxu0
        %3519 = vmatprep.mubr.f32.mxu0 0.0
        %3520 = vmatmul.mubr.f32.gmra.mxu0 %v3400
        %v3521 = vpop.f32.mrf.mxu0
        %v3522 = vadd.f32 %v3361, %v3521
        %v3523 = vpop.f32.mrf.mxu0
        %3524 = vmatprep.mubr.f32.mxu0 0.0
        %3525 = vmatmul.mubr.f32.gmra.mxu0 %v3403
        %v3526 = vpop.f32.mrf.mxu0
        %v3527 = vadd.f32 %v3366, %v3526
        %v3528 = vpop.f32.mrf.mxu0
        %3529 = vdwg.mxu0
        %v3530 = vld [vmem:[%s2 + $0x1d0] sm:$0x1]
        %v3531 = vlaneseq
        %v3532 = vshrl.u32 %v3531, 7
        %v3533 = vsub.s32 0, %v3532
        %v3534 = vrot.slane %v3530, %v3533
        %v3535 = vadd.f32 %v3472, %v3534
        %v3536 = vadd.f32 %v3477, %v3534
        %v3537 = vadd.f32 %v3482, %v3534
        %v3538 = vadd.f32 %v3487, %v3534
        %v3539 = vadd.f32 %v3492, %v3534
        %v3540 = vadd.f32 %v3497, %v3534
        %v3541 = vadd.f32 %v3502, %v3534
        %v3542 = vadd.f32 %v3507, %v3534
        %v3543 = vadd.f32 %v3512, %v3534
        %v3544 = vadd.f32 %v3517, %v3534
        %v3545 = vadd.f32 %v3522, %v3534
        %v3546 = vadd.f32 %v3527, %v3534
        %v3547 = vmax.f32 %v3535, 0.0
        %v3548 = vmax.f32 %v3536, 0.0
        %v3549 = vmax.f32 %v3537, 0.0
        %v3550 = vmax.f32 %v3538, 0.0
        %v3551 = vmax.f32 %v3539, 0.0
        %v3552 = vmax.f32 %v3540, 0.0
        %v3553 = vmax.f32 %v3541, 0.0
        %v3554 = vmax.f32 %v3542, 0.0
        %v3555 = vmax.f32 %v3543, 0.0
        %v3556 = vmax.f32 %v3544, 0.0
        %v3557 = vmax.f32 %v3545, 0.0
        %v3558 = vmax.f32 %v3546, 0.0
        %v3559 = vsel %vm724, %v3547, 0.0
        %v3560 = vsel %vm724, %v3548, 0.0
        %v3561 = vadd.f32 %v3559, %v3560
        %v3562 = vsel %vm724, %v3549, 0.0
        %v3563 = vadd.f32 %v3561, %v3562
        %v3564 = vsel %vm724, %v3550, 0.0
        %v3565 = vadd.f32 %v3563, %v3564
        %v3566 = vsel %vm724, %v3551, 0.0
        %v3567 = vadd.f32 %v3565, %v3566
        %v3568 = vsel %vm724, %v3552, 0.0
        %v3569 = vadd.f32 %v3567, %v3568
        %v3570 = vsel %vm724, %v3553, 0.0
        %v3571 = vadd.f32 %v3569, %v3570
        %v3572 = vsel %vm724, %v3554, 0.0
        %v3573 = vadd.f32 %v3571, %v3572
        %v3574 = vsel %vm724, %v3555, 0.0
        %v3575 = vadd.f32 %v3573, %v3574
        %v3576 = vsel %vm724, %v3556, 0.0
        %v3577 = vadd.f32 %v3575, %v3576
        %v3578 = vsel %vm724, %v3557, 0.0
        %v3579 = vadd.f32 %v3577, %v3578
        %v3580 = vsel %vm1278, %v3558, 0.0
        %v3581 = vadd.f32 %v3579, %v3580
        %v3582 = vrot.slane %v3581, 4
        %v3583 = vadd.f32 %v3581, %v3582
        %v3584 = vrot.slane %v3583, 2
        %v3585 = vadd.f32 %v3583, %v3584
        %v3586 = vrot.slane %v3585, 1
        %v3587 = vadd.f32 %v3585, %v3586
        %v3588 = vmul.f32 %v3587, %v1287
        %v3589 = vld [vmem:[%s2 + $0x218] sm:$0x1]
        %v3590 = vld [vmem:[%s2 + $0x1d8] sm:$0xff]
        %v3591 = vld [vmem:[%s2 + $0x1e0] sm:$0xff]
        %v3592 = vld [vmem:[%s2 + $0x1e8] sm:$0xff]
        %v3593 = vld [vmem:[%s2 + $0x1f0] sm:$0xff]
        %v3595 = vsel %vm724, %v1288, 0
        %3597 = vmatprep.subr.mxu0 0.0
        %3598 = vmatpush1.msra.mxu0 0.0
        %3599 = vmatprep.subr.mxu0 0.0
        %3600 = vmatpush1.msra.mxu0 0.0
        %3601 = vmatprep.subr.mxu0 0.0
        %3602 = vmatpush1.msra.mxu0 0.0
        %3603 = vmatprep.subr.mxu0 0.0
        %3604 = vmatpush1.msra.mxu0 0.0
        %3605 = vmatprep.subr.mxu0 0.0
        %3606 = vmatpush1.msra.mxu0 0.0
        %3607 = vmatprep.subr.mxu0 0.0
        %3608 = vmatpush1.msra.mxu0 0.0
        %3609 = vmatprep.subr.mxu0 0.0
        %3610 = vmatpush1.msra.mxu0 0.0
        %3611 = vmatprep.subr.mxu0 0.0
        %3612 = vmatpush1.msra.mxu0 0.0
        %3613 = vmatprep.subr.mxu0 0.0
        %3614 = vmatpush1.msra.mxu0 0.0
        %3615 = vmatprep.subr.mxu0 0.0
        %3616 = vmatpush1.msra.mxu0 0.0
        %3617 = vmatprep.subr.mxu0 0.0
        %3618 = vmatpush1.msra.mxu0 0.0
        %3619 = vmatprep.subr.mxu0 0.0
        %3620 = vmatpush1.msra.mxu0 0.0
        %3621 = vmatprep.subr.mxu0 0.0
        %3622 = vmatpush1.msra.mxu0 %v3593
        %3623 = vmatprep.subr.mxu0 0.0
        %3624 = vmatpush1.msra.mxu0 %v3592
        %3625 = vmatprep.subr.mxu0 0.0
        %3626 = vmatpush1.msra.mxu0 %v3591
        %3627 = vmatprep.subr.mxu0 0.0
        %3628 = vmatpush1.msra.mxu0 %v3590
        %3629 = vmatprep.subr.mxu0 0.0
        %3630 = vmatpush2.msra.mxu0 0.0
        %3631 = vmatprep.subr.mxu0 0.0
        %3632 = vmatpush2.msra.mxu0 0.0
        %3633 = vmatprep.subr.mxu0 0.0
        %3634 = vmatpush2.msra.mxu0 0.0
        %3635 = vmatprep.subr.mxu0 0.0
        %3636 = vmatpush2.msra.mxu0 0.0
        %3637 = vmatprep.subr.mxu0 0.0
        %3638 = vmatpush2.msra.mxu0 0.0
        %3639 = vmatprep.subr.mxu0 0.0
        %3640 = vmatpush2.msra.mxu0 0.0
        %3641 = vmatprep.subr.mxu0 0.0
        %3642 = vmatpush2.msra.mxu0 0.0
        %3643 = vmatprep.subr.mxu0 0.0
        %3644 = vmatpush2.msra.mxu0 0.0
        %3645 = vmatprep.subr.mxu0 0.0
        %3646 = vmatpush2.msra.mxu0 0.0
        %3647 = vmatprep.subr.mxu0 0.0
        %3648 = vmatpush2.msra.mxu0 0.0
        %3649 = vmatprep.subr.mxu0 0.0
        %3650 = vmatpush2.msra.mxu0 0.0
        %3651 = vmatprep.subr.mxu0 0.0
        %3652 = vmatpush2.msra.mxu0 0.0
        %3653 = vmatprep.subr.mxu0 0.0
        %3654 = vmatpush2.msra.mxu0 0.0
        %3655 = vmatprep.subr.mxu0 0.0
        %3656 = vmatpush2.msra.mxu0 0.0
        %3657 = vmatprep.subr.mxu0 0.0
        %3658 = vmatpush2.msra.mxu0 0.0
        %3659 = vmatprep.subr.mxu0 0.0
        %3660 = vmatpush2.msra.mxu0 0.0
        %3661 = vmatprep.mubr.f32.mxu0 0.0
        %3662 = vmatmul.mubr.f32.gmra.mxu0 %v3595
        %v3663 = vpop.f32.mrf.mxu0
        %v3664 = vadd.f32 0.0, %v3663
        %v3665 = vpop.f32.mrf.mxu0
        %3666 = vdwg.mxu0
        %v3667 = vadd.f32 %v3589, %v3664
        %v3668 = vld [vmem:[%s2 + $0x1f8] sm:$0xff]
        %v3669 = vld [vmem:[%s2 + $0x200] sm:$0xff]
        %v3670 = vld [vmem:[%s2 + $0x208] sm:$0xff]
        %v3671 = vld [vmem:[%s2 + $0x210] sm:$0xff]
        %v3673 = vsel %vm724, %v3588, 0
        %3675 = vmatprep.subr.mxu0 0.0
        %3676 = vmatpush1.msra.mxu0 0.0
        %3677 = vmatprep.subr.mxu0 0.0
        %3678 = vmatpush1.msra.mxu0 0.0
        %3679 = vmatprep.subr.mxu0 0.0
        %3680 = vmatpush1.msra.mxu0 0.0
        %3681 = vmatprep.subr.mxu0 0.0
        %3682 = vmatpush1.msra.mxu0 0.0
        %3683 = vmatprep.subr.mxu0 0.0
        %3684 = vmatpush1.msra.mxu0 0.0
        %3685 = vmatprep.subr.mxu0 0.0
        %3686 = vmatpush1.msra.mxu0 0.0
        %3687 = vmatprep.subr.mxu0 0.0
        %3688 = vmatpush1.msra.mxu0 0.0
        %3689 = vmatprep.subr.mxu0 0.0
        %3690 = vmatpush1.msra.mxu0 0.0
        %3691 = vmatprep.subr.mxu0 0.0
        %3692 = vmatpush1.msra.mxu0 0.0
        %3693 = vmatprep.subr.mxu0 0.0
        %3694 = vmatpush1.msra.mxu0 0.0
        %3695 = vmatprep.subr.mxu0 0.0
        %3696 = vmatpush1.msra.mxu0 0.0
        %3697 = vmatprep.subr.mxu0 0.0
        %3698 = vmatpush1.msra.mxu0 0.0
        %3699 = vmatprep.subr.mxu0 0.0
        %3700 = vmatpush1.msra.mxu0 %v3671
        %3701 = vmatprep.subr.mxu0 0.0
        %3702 = vmatpush1.msra.mxu0 %v3670
        %3703 = vmatprep.subr.mxu0 0.0
        %3704 = vmatpush1.msra.mxu0 %v3669
        %3705 = vmatprep.subr.mxu0 0.0
        %3706 = vmatpush1.msra.mxu0 %v3668
        %3707 = vmatprep.subr.mxu0 0.0
        %3708 = vmatpush2.msra.mxu0 0.0
        %3709 = vmatprep.subr.mxu0 0.0
        %3710 = vmatpush2.msra.mxu0 0.0
        %3711 = vmatprep.subr.mxu0 0.0
        %3712 = vmatpush2.msra.mxu0 0.0
        %3713 = vmatprep.subr.mxu0 0.0
        %3714 = vmatpush2.msra.mxu0 0.0
        %3715 = vmatprep.subr.mxu0 0.0
        %3716 = vmatpush2.msra.mxu0 0.0
        %3717 = vmatprep.subr.mxu0 0.0
        %3718 = vmatpush2.msra.mxu0 0.0
        %3719 = vmatprep.subr.mxu0 0.0
        %3720 = vmatpush2.msra.mxu0 0.0
        %3721 = vmatprep.subr.mxu0 0.0
        %3722 = vmatpush2.msra.mxu0 0.0
        %3723 = vmatprep.subr.mxu0 0.0
        %3724 = vmatpush2.msra.mxu0 0.0
        %3725 = vmatprep.subr.mxu0 0.0
        %3726 = vmatpush2.msra.mxu0 0.0
        %3727 = vmatprep.subr.mxu0 0.0
        %3728 = vmatpush2.msra.mxu0 0.0
        %3729 = vmatprep.subr.mxu0 0.0
        %3730 = vmatpush2.msra.mxu0 0.0
        %3731 = vmatprep.subr.mxu0 0.0
        %3732 = vmatpush2.msra.mxu0 0.0
        %3733 = vmatprep.subr.mxu0 0.0
        %3734 = vmatpush2.msra.mxu0 0.0
        %3735 = vmatprep.subr.mxu0 0.0
        %3736 = vmatpush2.msra.mxu0 0.0
        %3737 = vmatprep.subr.mxu0 0.0
        %3738 = vmatpush2.msra.mxu0 0.0
        %3739 = vmatprep.mubr.f32.mxu0 0.0
        %3740 = vmatmul.mubr.f32.gmra.mxu0 %v3673
        %v3741 = vpop.f32.mrf.mxu0
        %v3742 = vadd.f32 0.0, %v3741
        %v3743 = vpop.f32.mrf.mxu0
        %3744 = vdwg.mxu0
        %v3745 = vadd.f32 %v3667, %v3742
        %v3746 = vmax.f32 %v3745, 0.0
        %v3747 = vld [vmem:[%s2 + $0x220] sm:$0xff]
        %v3748 = vld [vmem:[%s2 + $0x228] sm:$0xff]
        %v3749 = vld [vmem:[%s2 + $0x230] sm:$0xff]
        %v3750 = vld [vmem:[%s2 + $0x238] sm:$0xff]
        %v3751 = vld [vmem:[%s2 + $0x240] sm:$0x1]
        %v3753 = vsel %vm724, %v3746, 0
        %3755 = vmatprep.subr.mxu0 0.0
        %3756 = vmatpush1.msra.mxu0 0.0
        %3757 = vmatprep.subr.mxu0 0.0
        %3758 = vmatpush1.msra.mxu0 0.0
        %3759 = vmatprep.subr.mxu0 0.0
        %3760 = vmatpush1.msra.mxu0 0.0
        %3761 = vmatprep.subr.mxu0 0.0
        %3762 = vmatpush1.msra.mxu0 0.0
        %3763 = vmatprep.subr.mxu0 0.0
        %3764 = vmatpush1.msra.mxu0 0.0
        %3765 = vmatprep.subr.mxu0 0.0
        %3766 = vmatpush1.msra.mxu0 0.0
        %3767 = vmatprep.subr.mxu0 0.0
        %3768 = vmatpush1.msra.mxu0 0.0
        %3769 = vmatprep.subr.mxu0 0.0
        %3770 = vmatpush1.msra.mxu0 0.0
        %3771 = vmatprep.subr.mxu0 0.0
        %3772 = vmatpush1.msra.mxu0 0.0
        %3773 = vmatprep.subr.mxu0 0.0
        %3774 = vmatpush1.msra.mxu0 0.0
        %3775 = vmatprep.subr.mxu0 0.0
        %3776 = vmatpush1.msra.mxu0 0.0
        %3777 = vmatprep.subr.mxu0 0.0
        %3778 = vmatpush1.msra.mxu0 0.0
        %3779 = vmatprep.subr.mxu0 0.0
        %3780 = vmatpush1.msra.mxu0 %v3750
        %3781 = vmatprep.subr.mxu0 0.0
        %3782 = vmatpush1.msra.mxu0 %v3749
        %3783 = vmatprep.subr.mxu0 0.0
        %3784 = vmatpush1.msra.mxu0 %v3748
        %3785 = vmatprep.subr.mxu0 0.0
        %3786 = vmatpush1.msra.mxu0 %v3747
        %3787 = vmatprep.subr.mxu0 0.0
        %3788 = vmatpush2.msra.mxu0 0.0
        %3789 = vmatprep.subr.mxu0 0.0
        %3790 = vmatpush2.msra.mxu0 0.0
        %3791 = vmatprep.subr.mxu0 0.0
        %3792 = vmatpush2.msra.mxu0 0.0
        %3793 = vmatprep.subr.mxu0 0.0
        %3794 = vmatpush2.msra.mxu0 0.0
        %3795 = vmatprep.subr.mxu0 0.0
        %3796 = vmatpush2.msra.mxu0 0.0
        %3797 = vmatprep.subr.mxu0 0.0
        %3798 = vmatpush2.msra.mxu0 0.0
        %3799 = vmatprep.subr.mxu0 0.0
        %3800 = vmatpush2.msra.mxu0 0.0
        %3801 = vmatprep.subr.mxu0 0.0
        %3802 = vmatpush2.msra.mxu0 0.0
        %3803 = vmatprep.subr.mxu0 0.0
        %3804 = vmatpush2.msra.mxu0 0.0
        %3805 = vmatprep.subr.mxu0 0.0
        %3806 = vmatpush2.msra.mxu0 0.0
        %3807 = vmatprep.subr.mxu0 0.0
        %3808 = vmatpush2.msra.mxu0 0.0
        %3809 = vmatprep.subr.mxu0 0.0
        %3810 = vmatpush2.msra.mxu0 0.0
        %3811 = vmatprep.subr.mxu0 0.0
        %3812 = vmatpush2.msra.mxu0 0.0
        %3813 = vmatprep.subr.mxu0 0.0
        %3814 = vmatpush2.msra.mxu0 0.0
        %3815 = vmatprep.subr.mxu0 0.0
        %3816 = vmatpush2.msra.mxu0 0.0
        %3817 = vmatprep.subr.mxu0 0.0
        %3818 = vmatpush2.msra.mxu0 0.0
        %3819 = vmatprep.mubr.f32.mxu0 0.0
        %3820 = vmatmul.mubr.f32.gmra.mxu0 %v3753
        %v3821 = vpop.f32.mrf.mxu0
        %v3822 = vadd.f32 %v3751, %v3821
        %v3823 = vpop.f32.mrf.mxu0
        %3824 = vdwg.mxu0
        %vm3825 = vcmask 1040384
        %v3826 = vsel %vm3825, %v3822, -inf
        %3827 = vmax.xlane.f32.xlu0 %v3826
        %v3828 = vpop.xlane.xlu0 %3827
        %v3829 = vsub.f32 %v3822, %v3828
        %v3830 = vmul.f32 %v3829, 1.442695
        %v3831 = vpow.pop %v3830
        %v3832 = vsel %vm3825, %v3831, 0.0
        %3833 = vadd.xlane.f32.xlu0 %v3832
        %v3834 = vpop.xlane.xlu0 %3833
        %v3835 = vlog2.pop %v3834
        %v3836 = vmul.f32 %v3835, 0.6931472
        %v3837 = vsub.f32 %v3829, %v3836
        %3838 = vst [vmem:[%s177] sm:$0x1] %v3837
        %s3839 = sand.u32 %s98, 1
        %s3840 = scalar_lea.sflag [#allocation3], %s3839
        %s3841 = sand.u32 %s98, 1
        %s3842 = scalar_lea.vmem [#allocation2], %s3841
        // Predicated region
        $region33: #{diffpool_forward.1} parent=31 // pred_check
          %p3843 = pneg %p108
        $region34: #{diffpool_forward.1} parent=31 // pred_check_branch
          %3845 = sbr.rel (%p3843) target = $region36
        $region35: #{diffpool_forward.1} parent=31 // pred_region
          %s3847 = ssub.s32 16, 16
          %3848 = vsyncadd %s3840, %s3847
          %s3849 = smul.addr %s17, 16
          %s3850 = scalar_lea.hbm %s3, %s3849
          %s3852 = sshll.u32 %s3842, 4
          %s3853 = int_to_ptr.vmem [resolvable:$true] %s3852
          %3855 = dma.vmem_to_hbm [thread:$0]  %s3853, 16, %s3850, %s3840
        $region36: #{diffpool_forward.1} parent=31 // pred_fallthru
          _
      $region32: #{diffpool_forward.1} parent=5 // pred_fallthru
        _
      %p3856 = scmp.le.s32.totalorder 2, %s12
      // Predicated region
      $region37: #{diffpool_forward.1} parent=5 // pred_check
        %p3857 = pneg %p3856
      $region38: #{diffpool_forward.1} parent=5 // pred_check_branch
        %3859 = sbr.rel (%p3857) target = $region40
      $region39: #{diffpool_forward.1} parent=5 // pred_region
        %s3860 = ssub.s32 %s12, 2
        // Predicated region
        $region41: #{diffpool_forward.1} parent=39 // pred_check
          %p3861 = pneg %p114
        $region42: #{diffpool_forward.1} parent=39 // pred_check_branch
          %3863 = sbr.rel (%p3861) target = $region44
        $region43: #{diffpool_forward.1} parent=39 // pred_region
          %s3864 = sand.u32 %s99, 1
          %s3865 = scalar_lea.sflag [#allocation3], %s3864
          %s3866 = sand.u32 %s99, 1
          %s3867 = scalar_lea.vmem [#allocation2], %s3866
          %3868 = dma.done %s3865, 16
        $region44: #{diffpool_forward.1} parent=39 // pred_fallthru
          _
      $region40: #{diffpool_forward.1} parent=5 // pred_fallthru
        _
    $region6: #{diffpool_forward.1} parent=1 // loop_footer
      %s16 = sadd.s32 1, %s12
    $region7: #{diffpool_forward.1} parent=1 // loop_footer_branch
      %11 = sbr.rel target = $region3
    $region8: #{diffpool_forward.1} parent=1 // loop_exit
      _
    %3869 = vsyncpa [#allocation3], 1
    %s3870 = scalar_lea.sflag [#allocation3], 1
    %3871 = vsyncpa %s3870, 1

</llo_original>
